<compile_context>
chip_gen: v6e
topology: v6e:2x2x1
jax: 0.10.0
libtpu: 0.0.40
codegen_flags: <defaults>
</compile_context>

<pallas_src>
import jax
import jax.numpy as jnp
import numpy as np
from jax import lax
from jax.experimental import pallas as pl
from jax.experimental.pallas import tpu as pltpu


# ------------------------------ Pallas kernel -------------------------------

def _lenet_kernel(x_ref, c1w_ref, c1b_ref, c2w_ref, c2b_ref,
                  f1w_ref, f1b_ref, f2w_ref, f2b_ref, f3w_ref, f3b_ref,
                  o_ref):
    """Whole LeNet forward for one image, entirely in VMEM/vregs.

    x_ref  : (1, 4, 8, 96) bf16  input rows split by (h mod 4); lane = w*3 + c
    c1w_ref: (5, 96, 256) bf16   conv1 Toeplitz bands (one per kernel row di);
                                 out lane = 128*(wo%2) + co*14 + wo//2
    c1b_ref: (1, 128)  f32       conv1 bias broadcast to lane co*14 + pw
    c2w_ref: (5, 128, 256) bf16  conv2 bands; in lane = ci*14 + wi,
                                 out lane = 128*(wo%2) + co*5 + wo//2
    c2b_ref: (1, 128)  f32       conv2 bias at lane co*5 + pw
    f1w_ref: (5, 128, 128) bf16  fc1 weights split by conv2 output row h
    f1b/f2w/f2b/f3w/f3b          fc biases / weights, zero-padded to 128;
                                 f3b carries -1e30 in the 118 padded logit lanes
    o_ref  : (1, 1, 128) f32     log-softmax row (first 10 lanes valid)
    """
    # ---- conv1 + ReLU + 2x2 max-pool (Toeplitz-band matmuls) ---------------
    # Un-pooled conv rows are computed in four classes m = ho % 4 so that the
    # pooling over rows is an elementwise max of whole matmul results.
    y = []
    for m in range(4):
        acc = None
        for di in range(5):
            src = m + di                                   # input row class
            lhs = x_ref[0, src % 4, (src // 4):(src // 4) + 7, :]   # (7, 96)
            part = jnp.dot(lhs, c1w_ref[di], preferred_element_type=jnp.float32)
            acc = part if acc is None else acc + part
        y.append(acc)                                      # (7, 256) f32

    def _pool_w(t):  # max over the even / odd output-column lane halves
        return jnp.maximum(t[:, :128], t[:, 128:])

    c1b = c1b_ref[...]
    # pool(relu(conv + b)) == relu(max(conv) + b) (bias-add / ReLU monotone)
    p_even = jnp.maximum(jnp.maximum(_pool_w(y[0]), _pool_w(y[1])) + c1b, 0.0)
    p_odd = jnp.maximum(jnp.maximum(_pool_w(y[2]), _pool_w(y[3])) + c1b, 0.0)
    p = [p_even, p_odd]                                    # (7, 128) f32, ph even/odd

    # ---- conv2 + ReLU + 2x2 max-pool ---------------------------------------
    z = []
    for r in range(2):                                     # parity of un-pooled row
        acc = None
        for d in range(5):
            src = r + d
            lhs = p[src % 2][(src // 2):(src // 2) + 5, :].astype(jnp.bfloat16)
            part = jnp.dot(lhs, c2w_ref[d], preferred_element_type=jnp.float32)
            acc = part if acc is None else acc + part
        z.append(acc)                                      # (5, 256) f32

    q = jnp.maximum(
        jnp.maximum(_pool_w(z[0]), _pool_w(z[1])) + c2b_ref[...], 0.0)  # (5, 128)

    # ---- fc1 -> fc2 -> fc3 -> log_softmax (dropout = identity, eval mode) --
    h = None
    for r in range(5):     # contract over conv2 output rows; no in-kernel flatten
        lhs = q[r:r + 1, :].astype(jnp.bfloat16)           # (1, 128)
        part = jnp.dot(lhs, f1w_ref[r], preferred_element_type=jnp.float32)
        h = part if h is None else h + part
    h = jnp.maximum(h + f1b_ref[...], 0.0)
    h = jnp.dot(h.astype(jnp.bfloat16), f2w_ref[...],
                preferred_element_type=jnp.float32)
    h = jnp.maximum(h + f2b_ref[...], 0.0)
    zlog = jnp.dot(h.astype(jnp.bfloat16), f3w_ref[...],
                   preferred_element_type=jnp.float32)
    zlog = zlog + f3b_ref[...]          # padded logit lanes -> -1e30 -> exp()==0
    m = jnp.max(zlog, axis=-1, keepdims=True)
    s = zlog - m
    lse = jnp.log(jnp.sum(jnp.exp(s), axis=-1, keepdims=True))
    o_ref[0] = s - lse                                     # (1, 128) f32


# ------------------------------ Pallas wrapper -------------------------------

def _lenet_call(xr, prep):
    n = xr.shape[0]
    out = pl.pallas_call(
        _lenet_kernel,
        out_shape=jax.ShapeDtypeStruct((n, 1, 128), jnp.float32),
        grid=(n,),
        in_specs=[
            pl.BlockSpec((1, 4, 8, 96), lambda i: (i, 0, 0, 0)),   # input image
            pl.BlockSpec((5, 96, 256), lambda i: (0, 0, 0)),       # conv1 bands
            pl.BlockSpec((1, 128), lambda i: (0, 0)),              # conv1 bias
            pl.BlockSpec((5, 128, 256), lambda i: (0, 0, 0)),      # conv2 bands
            pl.BlockSpec((1, 128), lambda i: (0, 0)),              # conv2 bias
            pl.BlockSpec((5, 128, 128), lambda i: (0, 0, 0)),      # fc1 (per row)
            pl.BlockSpec((1, 128), lambda i: (0, 0)),              # fc1 bias
            pl.BlockSpec((128, 128), lambda i: (0, 0)),            # fc2
            pl.BlockSpec((1, 128), lambda i: (0, 0)),              # fc2 bias
            pl.BlockSpec((128, 128), lambda i: (0, 0)),            # fc3
            pl.BlockSpec((1, 128), lambda i: (0, 0)),              # fc3 bias (-1e30 pad)
        ],
        out_specs=pl.BlockSpec((1, 1, 128), lambda i: (i, 0, 0)),
        compiler_params=pltpu.CompilerParams(
            dimension_semantics=("parallel",),
            vmem_limit_bytes=32 * 1024 * 1024,
        ),
    )(xr, prep["c1w"], prep["c1b"], prep["c2w"], prep["c2b"],
      prep["f1w"], prep["f1b"], prep["f2w"], prep["f2b"],
      prep["f3w"], prep["f3b"])
    return out[:, 0, :10]


def forward(prep, x):
    """x: (N, 3, 32, 32) float32 NCHW -> (N, 10) float32 log-probabilities."""
    n = x.shape[0]
    assert tuple(x.shape[1:]) == (3, 32, 32), x.shape
    # Single byte-neutral relayout: NCHW -> per-row lanes (w*3 + c), rows split
    # by (h mod 4) so every in-kernel tap / pooling access is a contiguous slice.
    xr = jnp.transpose(x, (0, 2, 3, 1)).reshape(n, 32, 96)
    xr = xr.reshape(n, 8, 4, 96).transpose(0, 2, 1, 3).astype(jnp.bfloat16)
    return _lenet_call(xr, prep)


# -------------------------------- parameters ---------------------------------

def init_params(key):
    """Deterministic PyTorch-default-like uniform(-1/sqrt(fan_in), +) init."""
    def uni(k, shape, fan_in):
        bound = 1.0 / float(fan_in) ** 0.5
        return jax.random.uniform(k, shape, jnp.float32, -bound, bound)

    ks = jax.random.split(key, 10)
    return {
        "conv1_w": uni(ks[0], (6, 3, 5, 5), 3 * 5 * 5),
        "conv1_b": uni(ks[1], (6,), 3 * 5 * 5),
        "conv2_w": uni(ks[2], (16, 6, 5, 5), 6 * 5 * 5),
        "conv2_b": uni(ks[3], (16,), 6 * 5 * 5),
        "fc1_w": uni(ks[4], (120, 400), 400),
        "fc1_b": uni(ks[5], (120,), 400),
        "fc2_w": uni(ks[6], (84, 120), 120),
        "fc2_b": uni(ks[7], (84,), 120),
        "fc3_w": uni(ks[8], (10, 84), 84),
        "fc3_b": uni(ks[9], (10,), 84),
    }


def prepare_params(params):
    """One-time host-side layout prep (numerically equal to the torch module).

    The 5x5 convolutions become Toeplitz-band matrices so the sliding window
    along W (and the even/odd pooling split) happens inside a dense matmul;
    fc1 is split per conv2 output row so no in-kernel flatten is needed.
    """
    f32 = lambda a: np.asarray(a, np.float32)

    # conv1 bands: (di, wi*3 + ci, 128*(wo%2) + co*14 + wo//2)
    w1 = f32(params["conv1_w"])
    c1w = np.zeros((5, 96, 256), np.float32)
    for di in range(5):
        for co in range(6):
            for par in range(2):
                for pw in range(14):
                    wo = 2 * pw + par
                    col = 128 * par + co * 14 + pw
                    for dj in range(5):
                        for ci in range(3):
                            c1w[di, (wo + dj) * 3 + ci, col] = w1[co, ci, di, dj]

    # conv2 bands: (di, ci*14 + wi, 128*(wo%2) + co*5 + wo//2)
    w2 = f32(params["conv2_w"])
    c2w = np.zeros((5, 128, 256), np.float32)
    for di in range(5):
        for co in range(16):
            for par in range(2):
                for pw in range(5):
                    wo = 2 * pw + par
                    col = 128 * par + co * 5 + pw
                    for dj in range(5):
                        for ci in range(6):
                            c2w[di, ci * 14 + wo + dj, col] = w2[co, ci, di, dj]

    # bias rows broadcast to the pooled lane layouts
    c1b = np.zeros((1, 128), np.float32)
    for co in range(6):
        c1b[0, co * 14:co * 14 + 14] = f32(params["conv1_b"])[co]
    c2b = np.zeros((1, 128), np.float32)
    for co in range(16):
        c2b[0, co * 5:co * 5 + 5] = f32(params["conv2_b"])[co]

    # fc1 split by conv2 output row h; rows follow the Q lane layout co*5 + w,
    # columns follow torch's flatten order co*25 + h*5 + w.
    f1 = f32(params["fc1_w"]).reshape(120, 16, 5, 5)          # (j, co, h, w)
    f1 = np.transpose(f1, (2, 1, 3, 0)).reshape(5, 80, 120)    # (h, co*5+w, j)
    f1w = np.zeros((5, 128, 128), np.float32)
    f1w[:, :80, :120] = f1
    f1b = np.zeros((1, 128), np.float32); f1b[0, :120] = f32(params["fc1_b"])

    f2w = np.zeros((128, 128), np.float32); f2w[:120, :84] = f32(params["fc2_w"]).T
    f2b = np.zeros((1, 128), np.float32); f2b[0, :84] = f32(params["fc2_b"])

    f3w = np.zeros((128, 128), np.float32); f3w[:84, :10] = f32(params["fc3_w"]).T
    f3b = np.full((1, 128), -1e30, np.float32); f3b[0, :10] = f32(params["fc3_b"])

    bf = lambda a: jnp.asarray(a, jnp.bfloat16)
    fl = lambda a: jnp.asarray(a, jnp.float32)
    return {"c1w": bf(c1w), "c1b": fl(c1b), "c2w": bf(c2w), "c2b": fl(c2b),
            "f1w": bf(f1w), "f1b": fl(f1b), "f2w": bf(f2w), "f2b": fl(f2b),
            "f3w": bf(f3w), "f3b": fl(f3b)}


# ------------------------------ pure-JAX reference ---------------------------

def reference_forward(params, x):
    """f32 XLA reference of the PyTorch module (for correctness checking)."""
    def conv(h, w, b):
        y = lax.conv_general_dilated(h, w, (1, 1), "VALID",
                                     dimension_numbers=("NCHW", "OIHW", "NCHW"))
        return y + b.reshape(1, -1, 1, 1)

    def pool(h):
        return lax.reduce_window(h, -jnp.inf, lax.max,
                                 (1, 1, 2, 2), (1, 1, 2, 2), "VALID")

    h = pool(jax.nn.relu(conv(x, params["conv1_w"], params["conv1_b"])))
    h = pool(jax.nn.relu(conv(h, params["conv2_w"], params["conv2_b"])))
    h = h.reshape(x.shape[0], -1)
    h = jax.nn.relu(h @ params["fc1_w"].T + params["fc1_b"])
    h = jax.nn.relu(h @ params["fc2_w"].T + params["fc2_b"])
    z = h @ params["fc3_w"].T + params["fc3_b"]
    return jax.nn.log_softmax(z, axis=-1)


# ------------------------------------ main ------------------------------------

if __name__ == "__main__":
    key = jax.random.PRNGKey(0)
    pkey, xkey = jax.random.split(key)
    params = init_params(pkey)
    prep = prepare_params(params)
    x = jax.random.normal(xkey, (2, 3, 32, 32), dtype=jnp.float32)

    out = jax.jit(forward)(prep, x)
    out = jax.block_until_ready(out)

    assert out.shape == (2, 10), out.shape
    # log-probabilities must normalize
    row_sums = jnp.sum(jnp.exp(out), axis=1)
    assert bool(jnp.all(jnp.abs(row_sums - 1.0) < 1e-4)), row_sums
    # match the f32 reference up to bf16 matmul rounding
    ref = reference_forward(params, x)
    max_err = float(jnp.max(jnp.abs(out - ref)))
    assert max_err < 0.15, max_err
    print("KERNEL_OK")
</pallas_src>

<mosaic_0001>
module attributes {stable_mosaic.version = 11 : i64} {
  func.func @_lenet_kernel(%arg0: i32, %arg1: memref<1x4x8x96xbf16, #tpu.memory_space<vmem>>, %arg2: memref<5x96x256xbf16, #tpu.memory_space<vmem>>, %arg3: memref<1x128xf32, #tpu.memory_space<vmem>>, %arg4: memref<5x128x256xbf16, #tpu.memory_space<vmem>>, %arg5: memref<1x128xf32, #tpu.memory_space<vmem>>, %arg6: memref<5x128x128xbf16, #tpu.memory_space<vmem>>, %arg7: memref<1x128xf32, #tpu.memory_space<vmem>>, %arg8: memref<128x128xbf16, #tpu.memory_space<vmem>>, %arg9: memref<1x128xf32, #tpu.memory_space<vmem>>, %arg10: memref<128x128xbf16, #tpu.memory_space<vmem>>, %arg11: memref<1x128xf32, #tpu.memory_space<vmem>>, %arg12: memref<1x1x128xf32, #tpu.memory_space<vmem>>) attributes {dimension_semantics = [#tpu.dimension_semantics<parallel>], iteration_bounds = array<i64: 2>, scalar_prefetch = 0 : i64, scratch_operands = 0 : i64, tpu.core_type = #tpu.core_type<tc>, window_params = [{transform_indices = @transform_0, window_bounds = array<i64: 1, 4, 8, 96>}, {pipeline_mode = #tpu.pipeline_mode<synchronous>, transform_indices = @transform_1, window_bounds = array<i64: 5, 96, 256>}, {pipeline_mode = #tpu.pipeline_mode<synchronous>, transform_indices = @transform_2, window_bounds = array<i64: 1, 128>}, {pipeline_mode = #tpu.pipeline_mode<synchronous>, transform_indices = @transform_3, window_bounds = array<i64: 5, 128, 256>}, {pipeline_mode = #tpu.pipeline_mode<synchronous>, transform_indices = @transform_4, window_bounds = array<i64: 1, 128>}, {pipeline_mode = #tpu.pipeline_mode<synchronous>, transform_indices = @transform_5, window_bounds = array<i64: 5, 128, 128>}, {pipeline_mode = #tpu.pipeline_mode<synchronous>, transform_indices = @transform_6, window_bounds = array<i64: 1, 128>}, {pipeline_mode = #tpu.pipeline_mode<synchronous>, transform_indices = @transform_7, window_bounds = array<i64: 128, 128>}, {pipeline_mode = #tpu.pipeline_mode<synchronous>, transform_indices = @transform_8, window_bounds = array<i64: 1, 128>}, {pipeline_mode = #tpu.pipeline_mode<synchronous>, transform_indices = @transform_9, window_bounds = array<i64: 128, 128>}, {pipeline_mode = #tpu.pipeline_mode<synchronous>, transform_indices = @transform_10, window_bounds = array<i64: 1, 128>}, {transform_indices = @transform_11, window_bounds = array<i64: 1, 1, 128>}]} {
    %c0 = arith.constant 0 : index
    %c0_0 = arith.constant 0 : index
    %c0_1 = arith.constant 0 : index
    %c0_2 = arith.constant 0 : index
    %0 = vector.load %arg1[%c0, %c0_0, %c0_1, %c0_2] : memref<1x4x8x96xbf16, #tpu.memory_space<vmem>>, vector<1x1x7x96xbf16>
    %1 = vector.shape_cast %0 : vector<1x1x7x96xbf16> to vector<7x96xbf16>
    %c0_3 = arith.constant 0 : index
    %c0_4 = arith.constant 0 : index
    %c0_5 = arith.constant 0 : index
    %2 = vector.load %arg2[%c0_3, %c0_4, %c0_5] : memref<5x96x256xbf16, #tpu.memory_space<vmem>>, vector<1x96x256xbf16>
    %3 = vector.shape_cast %2 : vector<1x96x256xbf16> to vector<96x256xbf16>
    %cst = arith.constant dense<0.000000e+00> : vector<7x256xf32>
    %4 = tpu.matmul %1, %3, %cst {dimension_numbers = #tpu.dot_dimension_numbers<[1], [0], [0], [1], [0, 0, 1, 1], [], []>} : vector<7x96xbf16>, vector<96x256xbf16>, vector<7x256xf32> -> vector<7x256xf32>
    %c0_6 = arith.constant 0 : index
    %c1 = arith.constant 1 : index
    %c0_7 = arith.constant 0 : index
    %c0_8 = arith.constant 0 : index
    %5 = vector.load %arg1[%c0_6, %c1, %c0_7, %c0_8] : memref<1x4x8x96xbf16, #tpu.memory_space<vmem>>, vector<1x1x7x96xbf16>
    %6 = vector.shape_cast %5 : vector<1x1x7x96xbf16> to vector<7x96xbf16>
    %c1_9 = arith.constant 1 : index
    %c0_10 = arith.constant 0 : index
    %c0_11 = arith.constant 0 : index
    %7 = vector.load %arg2[%c1_9, %c0_10, %c0_11] : memref<5x96x256xbf16, #tpu.memory_space<vmem>>, vector<1x96x256xbf16>
    %8 = vector.shape_cast %7 : vector<1x96x256xbf16> to vector<96x256xbf16>
    %cst_12 = arith.constant dense<0.000000e+00> : vector<7x256xf32>
    %9 = tpu.matmul %6, %8, %cst_12 {dimension_numbers = #tpu.dot_dimension_numbers<[1], [0], [0], [1], [0, 0, 1, 1], [], []>} : vector<7x96xbf16>, vector<96x256xbf16>, vector<7x256xf32> -> vector<7x256xf32>
    %10 = arith.addf %4, %9 : vector<7x256xf32>
    %c0_13 = arith.constant 0 : index
    %c2 = arith.constant 2 : index
    %c0_14 = arith.constant 0 : index
    %c0_15 = arith.constant 0 : index
    %11 = vector.load %arg1[%c0_13, %c2, %c0_14, %c0_15] : memref<1x4x8x96xbf16, #tpu.memory_space<vmem>>, vector<1x1x7x96xbf16>
    %12 = vector.shape_cast %11 : vector<1x1x7x96xbf16> to vector<7x96xbf16>
    %c2_16 = arith.constant 2 : index
    %c0_17 = arith.constant 0 : index
    %c0_18 = arith.constant 0 : index
    %13 = vector.load %arg2[%c2_16, %c0_17, %c0_18] : memref<5x96x256xbf16, #tpu.memory_space<vmem>>, vector<1x96x256xbf16>
    %14 = vector.shape_cast %13 : vector<1x96x256xbf16> to vector<96x256xbf16>
    %cst_19 = arith.constant dense<0.000000e+00> : vector<7x256xf32>
    %15 = tpu.matmul %12, %14, %cst_19 {dimension_numbers = #tpu.dot_dimension_numbers<[1], [0], [0], [1], [0, 0, 1, 1], [], []>} : vector<7x96xbf16>, vector<96x256xbf16>, vector<7x256xf32> -> vector<7x256xf32>
    %16 = arith.addf %10, %15 : vector<7x256xf32>
    %c0_20 = arith.constant 0 : index
    %c3 = arith.constant 3 : index
    %c0_21 = arith.constant 0 : index
    %c0_22 = arith.constant 0 : index
    %17 = vector.load %arg1[%c0_20, %c3, %c0_21, %c0_22] : memref<1x4x8x96xbf16, #tpu.memory_space<vmem>>, vector<1x1x7x96xbf16>
    %18 = vector.shape_cast %17 : vector<1x1x7x96xbf16> to vector<7x96xbf16>
    %c3_23 = arith.constant 3 : index
    %c0_24 = arith.constant 0 : index
    %c0_25 = arith.constant 0 : index
    %19 = vector.load %arg2[%c3_23, %c0_24, %c0_25] : memref<5x96x256xbf16, #tpu.memory_space<vmem>>, vector<1x96x256xbf16>
    %20 = vector.shape_cast %19 : vector<1x96x256xbf16> to vector<96x256xbf16>
    %cst_26 = arith.constant dense<0.000000e+00> : vector<7x256xf32>
    %21 = tpu.matmul %18, %20, %cst_26 {dimension_numbers = #tpu.dot_dimension_numbers<[1], [0], [0], [1], [0, 0, 1, 1], [], []>} : vector<7x96xbf16>, vector<96x256xbf16>, vector<7x256xf32> -> vector<7x256xf32>
    %22 = arith.addf %16, %21 : vector<7x256xf32>
    %c0_27 = arith.constant 0 : index
    %c0_28 = arith.constant 0 : index
    %c1_29 = arith.constant 1 : index
    %c0_30 = arith.constant 0 : index
    %23 = vector.load %arg1[%c0_27, %c0_28, %c1_29, %c0_30] : memref<1x4x8x96xbf16, #tpu.memory_space<vmem>>, vector<1x1x7x96xbf16>
    %24 = vector.shape_cast %23 : vector<1x1x7x96xbf16> to vector<7x96xbf16>
    %c4 = arith.constant 4 : index
    %c0_31 = arith.constant 0 : index
    %c0_32 = arith.constant 0 : index
    %25 = vector.load %arg2[%c4, %c0_31, %c0_32] : memref<5x96x256xbf16, #tpu.memory_space<vmem>>, vector<1x96x256xbf16>
    %26 = vector.shape_cast %25 : vector<1x96x256xbf16> to vector<96x256xbf16>
    %cst_33 = arith.constant dense<0.000000e+00> : vector<7x256xf32>
    %27 = tpu.matmul %24, %26, %cst_33 {dimension_numbers = #tpu.dot_dimension_numbers<[1], [0], [0], [1], [0, 0, 1, 1], [], []>} : vector<7x96xbf16>, vector<96x256xbf16>, vector<7x256xf32> -> vector<7x256xf32>
    %28 = arith.addf %22, %27 : vector<7x256xf32>
    %c0_34 = arith.constant 0 : index
    %c1_35 = arith.constant 1 : index
    %c0_36 = arith.constant 0 : index
    %c0_37 = arith.constant 0 : index
    %29 = vector.load %arg1[%c0_34, %c1_35, %c0_36, %c0_37] : memref<1x4x8x96xbf16, #tpu.memory_space<vmem>>, vector<1x1x7x96xbf16>
    %30 = vector.shape_cast %29 : vector<1x1x7x96xbf16> to vector<7x96xbf16>
    %c0_38 = arith.constant 0 : index
    %c0_39 = arith.constant 0 : index
    %c0_40 = arith.constant 0 : index
    %31 = vector.load %arg2[%c0_38, %c0_39, %c0_40] : memref<5x96x256xbf16, #tpu.memory_space<vmem>>, vector<1x96x256xbf16>
    %32 = vector.shape_cast %31 : vector<1x96x256xbf16> to vector<96x256xbf16>
    %cst_41 = arith.constant dense<0.000000e+00> : vector<7x256xf32>
    %33 = tpu.matmul %30, %32, %cst_41 {dimension_numbers = #tpu.dot_dimension_numbers<[1], [0], [0], [1], [0, 0, 1, 1], [], []>} : vector<7x96xbf16>, vector<96x256xbf16>, vector<7x256xf32> -> vector<7x256xf32>
    %c0_42 = arith.constant 0 : index
    %c2_43 = arith.constant 2 : index
    %c0_44 = arith.constant 0 : index
    %c0_45 = arith.constant 0 : index
    %34 = vector.load %arg1[%c0_42, %c2_43, %c0_44, %c0_45] : memref<1x4x8x96xbf16, #tpu.memory_space<vmem>>, vector<1x1x7x96xbf16>
    %35 = vector.shape_cast %34 : vector<1x1x7x96xbf16> to vector<7x96xbf16>
    %c1_46 = arith.constant 1 : index
    %c0_47 = arith.constant 0 : index
    %c0_48 = arith.constant 0 : index
    %36 = vector.load %arg2[%c1_46, %c0_47, %c0_48] : memref<5x96x256xbf16, #tpu.memory_space<vmem>>, vector<1x96x256xbf16>
    %37 = vector.shape_cast %36 : vector<1x96x256xbf16> to vector<96x256xbf16>
    %cst_49 = arith.constant dense<0.000000e+00> : vector<7x256xf32>
    %38 = tpu.matmul %35, %37, %cst_49 {dimension_numbers = #tpu.dot_dimension_numbers<[1], [0], [0], [1], [0, 0, 1, 1], [], []>} : vector<7x96xbf16>, vector<96x256xbf16>, vector<7x256xf32> -> vector<7x256xf32>
    %39 = arith.addf %33, %38 : vector<7x256xf32>
    %c0_50 = arith.constant 0 : index
    %c3_51 = arith.constant 3 : index
    %c0_52 = arith.constant 0 : index
    %c0_53 = arith.constant 0 : index
    %40 = vector.load %arg1[%c0_50, %c3_51, %c0_52, %c0_53] : memref<1x4x8x96xbf16, #tpu.memory_space<vmem>>, vector<1x1x7x96xbf16>
    %41 = vector.shape_cast %40 : vector<1x1x7x96xbf16> to vector<7x96xbf16>
    %c2_54 = arith.constant 2 : index
    %c0_55 = arith.constant 0 : index
    %c0_56 = arith.constant 0 : index
    %42 = vector.load %arg2[%c2_54, %c0_55, %c0_56] : memref<5x96x256xbf16, #tpu.memory_space<vmem>>, vector<1x96x256xbf16>
    %43 = vector.shape_cast %42 : vector<1x96x256xbf16> to vector<96x256xbf16>
    %cst_57 = arith.constant dense<0.000000e+00> : vector<7x256xf32>
    %44 = tpu.matmul %41, %43, %cst_57 {dimension_numbers = #tpu.dot_dimension_numbers<[1], [0], [0], [1], [0, 0, 1, 1], [], []>} : vector<7x96xbf16>, vector<96x256xbf16>, vector<7x256xf32> -> vector<7x256xf32>
    %45 = arith.addf %39, %44 : vector<7x256xf32>
    %c0_58 = arith.constant 0 : index
    %c0_59 = arith.constant 0 : index
    %c1_60 = arith.constant 1 : index
    %c0_61 = arith.constant 0 : index
    %46 = vector.load %arg1[%c0_58, %c0_59, %c1_60, %c0_61] : memref<1x4x8x96xbf16, #tpu.memory_space<vmem>>, vector<1x1x7x96xbf16>
    %47 = vector.shape_cast %46 : vector<1x1x7x96xbf16> to vector<7x96xbf16>
    %c3_62 = arith.constant 3 : index
    %c0_63 = arith.constant 0 : index
    %c0_64 = arith.constant 0 : index
    %48 = vector.load %arg2[%c3_62, %c0_63, %c0_64] : memref<5x96x256xbf16, #tpu.memory_space<vmem>>, vector<1x96x256xbf16>
    %49 = vector.shape_cast %48 : vector<1x96x256xbf16> to vector<96x256xbf16>
    %cst_65 = arith.constant dense<0.000000e+00> : vector<7x256xf32>
    %50 = tpu.matmul %47, %49, %cst_65 {dimension_numbers = #tpu.dot_dimension_numbers<[1], [0], [0], [1], [0, 0, 1, 1], [], []>} : vector<7x96xbf16>, vector<96x256xbf16>, vector<7x256xf32> -> vector<7x256xf32>
    %51 = arith.addf %45, %50 : vector<7x256xf32>
    %c0_66 = arith.constant 0 : index
    %c1_67 = arith.constant 1 : index
    %c1_68 = arith.constant 1 : index
    %c0_69 = arith.constant 0 : index
    %52 = vector.load %arg1[%c0_66, %c1_67, %c1_68, %c0_69] : memref<1x4x8x96xbf16, #tpu.memory_space<vmem>>, vector<1x1x7x96xbf16>
    %53 = vector.shape_cast %52 : vector<1x1x7x96xbf16> to vector<7x96xbf16>
    %c4_70 = arith.constant 4 : index
    %c0_71 = arith.constant 0 : index
    %c0_72 = arith.constant 0 : index
    %54 = vector.load %arg2[%c4_70, %c0_71, %c0_72] : memref<5x96x256xbf16, #tpu.memory_space<vmem>>, vector<1x96x256xbf16>
    %55 = vector.shape_cast %54 : vector<1x96x256xbf16> to vector<96x256xbf16>
    %cst_73 = arith.constant dense<0.000000e+00> : vector<7x256xf32>
    %56 = tpu.matmul %53, %55, %cst_73 {dimension_numbers = #tpu.dot_dimension_numbers<[1], [0], [0], [1], [0, 0, 1, 1], [], []>} : vector<7x96xbf16>, vector<96x256xbf16>, vector<7x256xf32> -> vector<7x256xf32>
    %57 = arith.addf %51, %56 : vector<7x256xf32>
    %c0_74 = arith.constant 0 : index
    %c2_75 = arith.constant 2 : index
    %c0_76 = arith.constant 0 : index
    %c0_77 = arith.constant 0 : index
    %58 = vector.load %arg1[%c0_74, %c2_75, %c0_76, %c0_77] : memref<1x4x8x96xbf16, #tpu.memory_space<vmem>>, vector<1x1x7x96xbf16>
    %59 = vector.shape_cast %58 : vector<1x1x7x96xbf16> to vector<7x96xbf16>
    %c0_78 = arith.constant 0 : index
    %c0_79 = arith.constant 0 : index
    %c0_80 = arith.constant 0 : index
    %60 = vector.load %arg2[%c0_78, %c0_79, %c0_80] : memref<5x96x256xbf16, #tpu.memory_space<vmem>>, vector<1x96x256xbf16>
    %61 = vector.shape_cast %60 : vector<1x96x256xbf16> to vector<96x256xbf16>
    %cst_81 = arith.constant dense<0.000000e+00> : vector<7x256xf32>
    %62 = tpu.matmul %59, %61, %cst_81 {dimension_numbers = #tpu.dot_dimension_numbers<[1], [0], [0], [1], [0, 0, 1, 1], [], []>} : vector<7x96xbf16>, vector<96x256xbf16>, vector<7x256xf32> -> vector<7x256xf32>
    %c0_82 = arith.constant 0 : index
    %c3_83 = arith.constant 3 : index
    %c0_84 = arith.constant 0 : index
    %c0_85 = arith.constant 0 : index
    %63 = vector.load %arg1[%c0_82, %c3_83, %c0_84, %c0_85] : memref<1x4x8x96xbf16, #tpu.memory_space<vmem>>, vector<1x1x7x96xbf16>
    %64 = vector.shape_cast %63 : vector<1x1x7x96xbf16> to vector<7x96xbf16>
    %c1_86 = arith.constant 1 : index
    %c0_87 = arith.constant 0 : index
    %c0_88 = arith.constant 0 : index
    %65 = vector.load %arg2[%c1_86, %c0_87, %c0_88] : memref<5x96x256xbf16, #tpu.memory_space<vmem>>, vector<1x96x256xbf16>
    %66 = vector.shape_cast %65 : vector<1x96x256xbf16> to vector<96x256xbf16>
    %cst_89 = arith.constant dense<0.000000e+00> : vector<7x256xf32>
    %67 = tpu.matmul %64, %66, %cst_89 {dimension_numbers = #tpu.dot_dimension_numbers<[1], [0], [0], [1], [0, 0, 1, 1], [], []>} : vector<7x96xbf16>, vector<96x256xbf16>, vector<7x256xf32> -> vector<7x256xf32>
    %68 = arith.addf %62, %67 : vector<7x256xf32>
    %c0_90 = arith.constant 0 : index
    %c0_91 = arith.constant 0 : index
    %c1_92 = arith.constant 1 : index
    %c0_93 = arith.constant 0 : index
    %69 = vector.load %arg1[%c0_90, %c0_91, %c1_92, %c0_93] : memref<1x4x8x96xbf16, #tpu.memory_space<vmem>>, vector<1x1x7x96xbf16>
    %70 = vector.shape_cast %69 : vector<1x1x7x96xbf16> to vector<7x96xbf16>
    %c2_94 = arith.constant 2 : index
    %c0_95 = arith.constant 0 : index
    %c0_96 = arith.constant 0 : index
    %71 = vector.load %arg2[%c2_94, %c0_95, %c0_96] : memref<5x96x256xbf16, #tpu.memory_space<vmem>>, vector<1x96x256xbf16>
    %72 = vector.shape_cast %71 : vector<1x96x256xbf16> to vector<96x256xbf16>
    %cst_97 = arith.constant dense<0.000000e+00> : vector<7x256xf32>
    %73 = tpu.matmul %70, %72, %cst_97 {dimension_numbers = #tpu.dot_dimension_numbers<[1], [0], [0], [1], [0, 0, 1, 1], [], []>} : vector<7x96xbf16>, vector<96x256xbf16>, vector<7x256xf32> -> vector<7x256xf32>
    %74 = arith.addf %68, %73 : vector<7x256xf32>
    %c0_98 = arith.constant 0 : index
    %c1_99 = arith.constant 1 : index
    %c1_100 = arith.constant 1 : index
    %c0_101 = arith.constant 0 : index
    %75 = vector.load %arg1[%c0_98, %c1_99, %c1_100, %c0_101] : memref<1x4x8x96xbf16, #tpu.memory_space<vmem>>, vector<1x1x7x96xbf16>
    %76 = vector.shape_cast %75 : vector<1x1x7x96xbf16> to vector<7x96xbf16>
    %c3_102 = arith.constant 3 : index
    %c0_103 = arith.constant 0 : index
    %c0_104 = arith.constant 0 : index
    %77 = vector.load %arg2[%c3_102, %c0_103, %c0_104] : memref<5x96x256xbf16, #tpu.memory_space<vmem>>, vector<1x96x256xbf16>
    %78 = vector.shape_cast %77 : vector<1x96x256xbf16> to vector<96x256xbf16>
    %cst_105 = arith.constant dense<0.000000e+00> : vector<7x256xf32>
    %79 = tpu.matmul %76, %78, %cst_105 {dimension_numbers = #tpu.dot_dimension_numbers<[1], [0], [0], [1], [0, 0, 1, 1], [], []>} : vector<7x96xbf16>, vector<96x256xbf16>, vector<7x256xf32> -> vector<7x256xf32>
    %80 = arith.addf %74, %79 : vector<7x256xf32>
    %c0_106 = arith.constant 0 : index
    %c2_107 = arith.constant 2 : index
    %c1_108 = arith.constant 1 : index
    %c0_109 = arith.constant 0 : index
    %81 = vector.load %arg1[%c0_106, %c2_107, %c1_108, %c0_109] : memref<1x4x8x96xbf16, #tpu.memory_space<vmem>>, vector<1x1x7x96xbf16>
    %82 = vector.shape_cast %81 : vector<1x1x7x96xbf16> to vector<7x96xbf16>
    %c4_110 = arith.constant 4 : index
    %c0_111 = arith.constant 0 : index
    %c0_112 = arith.constant 0 : index
    %83 = vector.load %arg2[%c4_110, %c0_111, %c0_112] : memref<5x96x256xbf16, #tpu.memory_space<vmem>>, vector<1x96x256xbf16>
    %84 = vector.shape_cast %83 : vector<1x96x256xbf16> to vector<96x256xbf16>
    %cst_113 = arith.constant dense<0.000000e+00> : vector<7x256xf32>
    %85 = tpu.matmul %82, %84, %cst_113 {dimension_numbers = #tpu.dot_dimension_numbers<[1], [0], [0], [1], [0, 0, 1, 1], [], []>} : vector<7x96xbf16>, vector<96x256xbf16>, vector<7x256xf32> -> vector<7x256xf32>
    %86 = arith.addf %80, %85 : vector<7x256xf32>
    %c0_114 = arith.constant 0 : index
    %c3_115 = arith.constant 3 : index
    %c0_116 = arith.constant 0 : index
    %c0_117 = arith.constant 0 : index
    %87 = vector.load %arg1[%c0_114, %c3_115, %c0_116, %c0_117] : memref<1x4x8x96xbf16, #tpu.memory_space<vmem>>, vector<1x1x7x96xbf16>
    %88 = vector.shape_cast %87 : vector<1x1x7x96xbf16> to vector<7x96xbf16>
    %c0_118 = arith.constant 0 : index
    %c0_119 = arith.constant 0 : index
    %c0_120 = arith.constant 0 : index
    %89 = vector.load %arg2[%c0_118, %c0_119, %c0_120] : memref<5x96x256xbf16, #tpu.memory_space<vmem>>, vector<1x96x256xbf16>
    %90 = vector.shape_cast %89 : vector<1x96x256xbf16> to vector<96x256xbf16>
    %cst_121 = arith.constant dense<0.000000e+00> : vector<7x256xf32>
    %91 = tpu.matmul %88, %90, %cst_121 {dimension_numbers = #tpu.dot_dimension_numbers<[1], [0], [0], [1], [0, 0, 1, 1], [], []>} : vector<7x96xbf16>, vector<96x256xbf16>, vector<7x256xf32> -> vector<7x256xf32>
    %c0_122 = arith.constant 0 : index
    %c0_123 = arith.constant 0 : index
    %c1_124 = arith.constant 1 : index
    %c0_125 = arith.constant 0 : index
    %92 = vector.load %arg1[%c0_122, %c0_123, %c1_124, %c0_125] : memref<1x4x8x96xbf16, #tpu.memory_space<vmem>>, vector<1x1x7x96xbf16>
    %93 = vector.shape_cast %92 : vector<1x1x7x96xbf16> to vector<7x96xbf16>
    %c1_126 = arith.constant 1 : index
    %c0_127 = arith.constant 0 : index
    %c0_128 = arith.constant 0 : index
    %94 = vector.load %arg2[%c1_126, %c0_127, %c0_128] : memref<5x96x256xbf16, #tpu.memory_space<vmem>>, vector<1x96x256xbf16>
    %95 = vector.shape_cast %94 : vector<1x96x256xbf16> to vector<96x256xbf16>
    %cst_129 = arith.constant dense<0.000000e+00> : vector<7x256xf32>
    %96 = tpu.matmul %93, %95, %cst_129 {dimension_numbers = #tpu.dot_dimension_numbers<[1], [0], [0], [1], [0, 0, 1, 1], [], []>} : vector<7x96xbf16>, vector<96x256xbf16>, vector<7x256xf32> -> vector<7x256xf32>
    %97 = arith.addf %91, %96 : vector<7x256xf32>
    %c0_130 = arith.constant 0 : index
    %c1_131 = arith.constant 1 : index
    %c1_132 = arith.constant 1 : index
    %c0_133 = arith.constant 0 : index
    %98 = vector.load %arg1[%c0_130, %c1_131, %c1_132, %c0_133] : memref<1x4x8x96xbf16, #tpu.memory_space<vmem>>, vector<1x1x7x96xbf16>
    %99 = vector.shape_cast %98 : vector<1x1x7x96xbf16> to vector<7x96xbf16>
    %c2_134 = arith.constant 2 : index
    %c0_135 = arith.constant 0 : index
    %c0_136 = arith.constant 0 : index
    %100 = vector.load %arg2[%c2_134, %c0_135, %c0_136] : memref<5x96x256xbf16, #tpu.memory_space<vmem>>, vector<1x96x256xbf16>
    %101 = vector.shape_cast %100 : vector<1x96x256xbf16> to vector<96x256xbf16>
    %cst_137 = arith.constant dense<0.000000e+00> : vector<7x256xf32>
    %102 = tpu.matmul %99, %101, %cst_137 {dimension_numbers = #tpu.dot_dimension_numbers<[1], [0], [0], [1], [0, 0, 1, 1], [], []>} : vector<7x96xbf16>, vector<96x256xbf16>, vector<7x256xf32> -> vector<7x256xf32>
    %103 = arith.addf %97, %102 : vector<7x256xf32>
    %c0_138 = arith.constant 0 : index
    %c2_139 = arith.constant 2 : index
    %c1_140 = arith.constant 1 : index
    %c0_141 = arith.constant 0 : index
    %104 = vector.load %arg1[%c0_138, %c2_139, %c1_140, %c0_141] : memref<1x4x8x96xbf16, #tpu.memory_space<vmem>>, vector<1x1x7x96xbf16>
    %105 = vector.shape_cast %104 : vector<1x1x7x96xbf16> to vector<7x96xbf16>
    %c3_142 = arith.constant 3 : index
    %c0_143 = arith.constant 0 : index
    %c0_144 = arith.constant 0 : index
    %106 = vector.load %arg2[%c3_142, %c0_143, %c0_144] : memref<5x96x256xbf16, #tpu.memory_space<vmem>>, vector<1x96x256xbf16>
    %107 = vector.shape_cast %106 : vector<1x96x256xbf16> to vector<96x256xbf16>
    %cst_145 = arith.constant dense<0.000000e+00> : vector<7x256xf32>
    %108 = tpu.matmul %105, %107, %cst_145 {dimension_numbers = #tpu.dot_dimension_numbers<[1], [0], [0], [1], [0, 0, 1, 1], [], []>} : vector<7x96xbf16>, vector<96x256xbf16>, vector<7x256xf32> -> vector<7x256xf32>
    %109 = arith.addf %103, %108 : vector<7x256xf32>
    %c0_146 = arith.constant 0 : index
    %c3_147 = arith.constant 3 : index
    %c1_148 = arith.constant 1 : index
    %c0_149 = arith.constant 0 : index
    %110 = vector.load %arg1[%c0_146, %c3_147, %c1_148, %c0_149] : memref<1x4x8x96xbf16, #tpu.memory_space<vmem>>, vector<1x1x7x96xbf16>
    %111 = vector.shape_cast %110 : vector<1x1x7x96xbf16> to vector<7x96xbf16>
    %c4_150 = arith.constant 4 : index
    %c0_151 = arith.constant 0 : index
    %c0_152 = arith.constant 0 : index
    %112 = vector.load %arg2[%c4_150, %c0_151, %c0_152] : memref<5x96x256xbf16, #tpu.memory_space<vmem>>, vector<1x96x256xbf16>
    %113 = vector.shape_cast %112 : vector<1x96x256xbf16> to vector<96x256xbf16>
    %cst_153 = arith.constant dense<0.000000e+00> : vector<7x256xf32>
    %114 = tpu.matmul %111, %113, %cst_153 {dimension_numbers = #tpu.dot_dimension_numbers<[1], [0], [0], [1], [0, 0, 1, 1], [], []>} : vector<7x96xbf16>, vector<96x256xbf16>, vector<7x256xf32> -> vector<7x256xf32>
    %115 = arith.addf %109, %114 : vector<7x256xf32>
    %c0_154 = arith.constant 0 : index
    %c0_155 = arith.constant 0 : index
    %116 = vector.load %arg3[%c0_154, %c0_155] : memref<1x128xf32, #tpu.memory_space<vmem>>, vector<1x128xf32>
    %117 = vector.extract_strided_slice %28 {offsets = [0, 0], sizes = [7, 128], strides = [1, 1]} : vector<7x256xf32> to vector<7x128xf32>
    %118 = vector.extract_strided_slice %28 {offsets = [0, 128], sizes = [7, 128], strides = [1, 1]} : vector<7x256xf32> to vector<7x128xf32>
    %119 = arith.maximumf %117, %118 : vector<7x128xf32>
    %120 = vector.extract_strided_slice %57 {offsets = [0, 0], sizes = [7, 128], strides = [1, 1]} : vector<7x256xf32> to vector<7x128xf32>
    %121 = vector.extract_strided_slice %57 {offsets = [0, 128], sizes = [7, 128], strides = [1, 1]} : vector<7x256xf32> to vector<7x128xf32>
    %122 = arith.maximumf %120, %121 : vector<7x128xf32>
    %123 = arith.maximumf %119, %122 : vector<7x128xf32>
    %124 = vector.broadcast %116 : vector<1x128xf32> to vector<7x128xf32>
    %125 = arith.addf %123, %124 : vector<7x128xf32>
    %cst_156 = arith.constant 0.000000e+00 : f32
    %126 = vector.broadcast %cst_156 : f32 to vector<7x128xf32>
    %127 = arith.maximumf %125, %126 : vector<7x128xf32>
    %128 = vector.extract_strided_slice %86 {offsets = [0, 0], sizes = [7, 128], strides = [1, 1]} : vector<7x256xf32> to vector<7x128xf32>
    %129 = vector.extract_strided_slice %86 {offsets = [0, 128], sizes = [7, 128], strides = [1, 1]} : vector<7x256xf32> to vector<7x128xf32>
    %130 = arith.maximumf %128, %129 : vector<7x128xf32>
    %131 = vector.extract_strided_slice %115 {offsets = [0, 0], sizes = [7, 128], strides = [1, 1]} : vector<7x256xf32> to vector<7x128xf32>
    %132 = vector.extract_strided_slice %115 {offsets = [0, 128], sizes = [7, 128], strides = [1, 1]} : vector<7x256xf32> to vector<7x128xf32>
    %133 = arith.maximumf %131, %132 : vector<7x128xf32>
    %134 = arith.maximumf %130, %133 : vector<7x128xf32>
    %135 = vector.broadcast %116 : vector<1x128xf32> to vector<7x128xf32>
    %136 = arith.addf %134, %135 : vector<7x128xf32>
    %cst_157 = arith.constant 0.000000e+00 : f32
    %137 = vector.broadcast %cst_157 : f32 to vector<7x128xf32>
    %138 = arith.maximumf %136, %137 : vector<7x128xf32>
    %139 = vector.extract_strided_slice %127 {offsets = [0, 0], sizes = [5, 128], strides = [1, 1]} : vector<7x128xf32> to vector<5x128xf32>
    %140 = arith.truncf %139 : vector<5x128xf32> to vector<5x128xbf16>
    %c0_158 = arith.constant 0 : index
    %c0_159 = arith.constant 0 : index
    %c0_160 = arith.constant 0 : index
    %141 = vector.load %arg4[%c0_158, %c0_159, %c0_160] : memref<5x128x256xbf16, #tpu.memory_space<vmem>>, vector<1x128x256xbf16>
    %142 = vector.shape_cast %141 : vector<1x128x256xbf16> to vector<128x256xbf16>
    %cst_161 = arith.constant dense<0.000000e+00> : vector<5x256xf32>
    %143 = tpu.matmul %140, %142, %cst_161 {dimension_numbers = #tpu.dot_dimension_numbers<[1], [0], [0], [1], [0, 0, 1, 1], [], []>} : vector<5x128xbf16>, vector<128x256xbf16>, vector<5x256xf32> -> vector<5x256xf32>
    %144 = vector.extract_strided_slice %138 {offsets = [0, 0], sizes = [5, 128], strides = [1, 1]} : vector<7x128xf32> to vector<5x128xf32>
    %145 = arith.truncf %144 : vector<5x128xf32> to vector<5x128xbf16>
    %c1_162 = arith.constant 1 : index
    %c0_163 = arith.constant 0 : index
    %c0_164 = arith.constant 0 : index
    %146 = vector.load %arg4[%c1_162, %c0_163, %c0_164] : memref<5x128x256xbf16, #tpu.memory_space<vmem>>, vector<1x128x256xbf16>
    %147 = vector.shape_cast %146 : vector<1x128x256xbf16> to vector<128x256xbf16>
    %cst_165 = arith.constant dense<0.000000e+00> : vector<5x256xf32>
    %148 = tpu.matmul %145, %147, %cst_165 {dimension_numbers = #tpu.dot_dimension_numbers<[1], [0], [0], [1], [0, 0, 1, 1], [], []>} : vector<5x128xbf16>, vector<128x256xbf16>, vector<5x256xf32> -> vector<5x256xf32>
    %149 = arith.addf %143, %148 : vector<5x256xf32>
    %150 = vector.extract_strided_slice %127 {offsets = [1, 0], sizes = [5, 128], strides = [1, 1]} : vector<7x128xf32> to vector<5x128xf32>
    %151 = arith.truncf %150 : vector<5x128xf32> to vector<5x128xbf16>
    %c2_166 = arith.constant 2 : index
    %c0_167 = arith.constant 0 : index
    %c0_168 = arith.constant 0 : index
    %152 = vector.load %arg4[%c2_166, %c0_167, %c0_168] : memref<5x128x256xbf16, #tpu.memory_space<vmem>>, vector<1x128x256xbf16>
    %153 = vector.shape_cast %152 : vector<1x128x256xbf16> to vector<128x256xbf16>
    %cst_169 = arith.constant dense<0.000000e+00> : vector<5x256xf32>
    %154 = tpu.matmul %151, %153, %cst_169 {dimension_numbers = #tpu.dot_dimension_numbers<[1], [0], [0], [1], [0, 0, 1, 1], [], []>} : vector<5x128xbf16>, vector<128x256xbf16>, vector<5x256xf32> -> vector<5x256xf32>
    %155 = arith.addf %149, %154 : vector<5x256xf32>
    %156 = vector.extract_strided_slice %138 {offsets = [1, 0], sizes = [5, 128], strides = [1, 1]} : vector<7x128xf32> to vector<5x128xf32>
    %157 = arith.truncf %156 : vector<5x128xf32> to vector<5x128xbf16>
    %c3_170 = arith.constant 3 : index
    %c0_171 = arith.constant 0 : index
    %c0_172 = arith.constant 0 : index
    %158 = vector.load %arg4[%c3_170, %c0_171, %c0_172] : memref<5x128x256xbf16, #tpu.memory_space<vmem>>, vector<1x128x256xbf16>
    %159 = vector.shape_cast %158 : vector<1x128x256xbf16> to vector<128x256xbf16>
    %cst_173 = arith.constant dense<0.000000e+00> : vector<5x256xf32>
    %160 = tpu.matmul %157, %159, %cst_173 {dimension_numbers = #tpu.dot_dimension_numbers<[1], [0], [0], [1], [0, 0, 1, 1], [], []>} : vector<5x128xbf16>, vector<128x256xbf16>, vector<5x256xf32> -> vector<5x256xf32>
    %161 = arith.addf %155, %160 : vector<5x256xf32>
    %162 = vector.extract_strided_slice %127 {offsets = [2, 0], sizes = [5, 128], strides = [1, 1]} : vector<7x128xf32> to vector<5x128xf32>
    %163 = arith.truncf %162 : vector<5x128xf32> to vector<5x128xbf16>
    %c4_174 = arith.constant 4 : index
    %c0_175 = arith.constant 0 : index
    %c0_176 = arith.constant 0 : index
    %164 = vector.load %arg4[%c4_174, %c0_175, %c0_176] : memref<5x128x256xbf16, #tpu.memory_space<vmem>>, vector<1x128x256xbf16>
    %165 = vector.shape_cast %164 : vector<1x128x256xbf16> to vector<128x256xbf16>
    %cst_177 = arith.constant dense<0.000000e+00> : vector<5x256xf32>
    %166 = tpu.matmul %163, %165, %cst_177 {dimension_numbers = #tpu.dot_dimension_numbers<[1], [0], [0], [1], [0, 0, 1, 1], [], []>} : vector<5x128xbf16>, vector<128x256xbf16>, vector<5x256xf32> -> vector<5x256xf32>
    %167 = arith.addf %161, %166 : vector<5x256xf32>
    %168 = vector.extract_strided_slice %138 {offsets = [0, 0], sizes = [5, 128], strides = [1, 1]} : vector<7x128xf32> to vector<5x128xf32>
    %169 = arith.truncf %168 : vector<5x128xf32> to vector<5x128xbf16>
    %c0_178 = arith.constant 0 : index
    %c0_179 = arith.constant 0 : index
    %c0_180 = arith.constant 0 : index
    %170 = vector.load %arg4[%c0_178, %c0_179, %c0_180] : memref<5x128x256xbf16, #tpu.memory_space<vmem>>, vector<1x128x256xbf16>
    %171 = vector.shape_cast %170 : vector<1x128x256xbf16> to vector<128x256xbf16>
    %cst_181 = arith.constant dense<0.000000e+00> : vector<5x256xf32>
    %172 = tpu.matmul %169, %171, %cst_181 {dimension_numbers = #tpu.dot_dimension_numbers<[1], [0], [0], [1], [0, 0, 1, 1], [], []>} : vector<5x128xbf16>, vector<128x256xbf16>, vector<5x256xf32> -> vector<5x256xf32>
    %173 = vector.extract_strided_slice %127 {offsets = [1, 0], sizes = [5, 128], strides = [1, 1]} : vector<7x128xf32> to vector<5x128xf32>
    %174 = arith.truncf %173 : vector<5x128xf32> to vector<5x128xbf16>
    %c1_182 = arith.constant 1 : index
    %c0_183 = arith.constant 0 : index
    %c0_184 = arith.constant 0 : index
    %175 = vector.load %arg4[%c1_182, %c0_183, %c0_184] : memref<5x128x256xbf16, #tpu.memory_space<vmem>>, vector<1x128x256xbf16>
    %176 = vector.shape_cast %175 : vector<1x128x256xbf16> to vector<128x256xbf16>
    %cst_185 = arith.constant dense<0.000000e+00> : vector<5x256xf32>
    %177 = tpu.matmul %174, %176, %cst_185 {dimension_numbers = #tpu.dot_dimension_numbers<[1], [0], [0], [1], [0, 0, 1, 1], [], []>} : vector<5x128xbf16>, vector<128x256xbf16>, vector<5x256xf32> -> vector<5x256xf32>
    %178 = arith.addf %172, %177 : vector<5x256xf32>
    %179 = vector.extract_strided_slice %138 {offsets = [1, 0], sizes = [5, 128], strides = [1, 1]} : vector<7x128xf32> to vector<5x128xf32>
    %180 = arith.truncf %179 : vector<5x128xf32> to vector<5x128xbf16>
    %c2_186 = arith.constant 2 : index
    %c0_187 = arith.constant 0 : index
    %c0_188 = arith.constant 0 : index
    %181 = vector.load %arg4[%c2_186, %c0_187, %c0_188] : memref<5x128x256xbf16, #tpu.memory_space<vmem>>, vector<1x128x256xbf16>
    %182 = vector.shape_cast %181 : vector<1x128x256xbf16> to vector<128x256xbf16>
    %cst_189 = arith.constant dense<0.000000e+00> : vector<5x256xf32>
    %183 = tpu.matmul %180, %182, %cst_189 {dimension_numbers = #tpu.dot_dimension_numbers<[1], [0], [0], [1], [0, 0, 1, 1], [], []>} : vector<5x128xbf16>, vector<128x256xbf16>, vector<5x256xf32> -> vector<5x256xf32>
    %184 = arith.addf %178, %183 : vector<5x256xf32>
    %185 = vector.extract_strided_slice %127 {offsets = [2, 0], sizes = [5, 128], strides = [1, 1]} : vector<7x128xf32> to vector<5x128xf32>
    %186 = arith.truncf %185 : vector<5x128xf32> to vector<5x128xbf16>
    %c3_190 = arith.constant 3 : index
    %c0_191 = arith.constant 0 : index
    %c0_192 = arith.constant 0 : index
    %187 = vector.load %arg4[%c3_190, %c0_191, %c0_192] : memref<5x128x256xbf16, #tpu.memory_space<vmem>>, vector<1x128x256xbf16>
    %188 = vector.shape_cast %187 : vector<1x128x256xbf16> to vector<128x256xbf16>
    %cst_193 = arith.constant dense<0.000000e+00> : vector<5x256xf32>
    %189 = tpu.matmul %186, %188, %cst_193 {dimension_numbers = #tpu.dot_dimension_numbers<[1], [0], [0], [1], [0, 0, 1, 1], [], []>} : vector<5x128xbf16>, vector<128x256xbf16>, vector<5x256xf32> -> vector<5x256xf32>
    %190 = arith.addf %184, %189 : vector<5x256xf32>
    %191 = vector.extract_strided_slice %138 {offsets = [2, 0], sizes = [5, 128], strides = [1, 1]} : vector<7x128xf32> to vector<5x128xf32>
    %192 = arith.truncf %191 : vector<5x128xf32> to vector<5x128xbf16>
    %c4_194 = arith.constant 4 : index
    %c0_195 = arith.constant 0 : index
    %c0_196 = arith.constant 0 : index
    %193 = vector.load %arg4[%c4_194, %c0_195, %c0_196] : memref<5x128x256xbf16, #tpu.memory_space<vmem>>, vector<1x128x256xbf16>
    %194 = vector.shape_cast %193 : vector<1x128x256xbf16> to vector<128x256xbf16>
    %cst_197 = arith.constant dense<0.000000e+00> : vector<5x256xf32>
    %195 = tpu.matmul %192, %194, %cst_197 {dimension_numbers = #tpu.dot_dimension_numbers<[1], [0], [0], [1], [0, 0, 1, 1], [], []>} : vector<5x128xbf16>, vector<128x256xbf16>, vector<5x256xf32> -> vector<5x256xf32>
    %196 = arith.addf %190, %195 : vector<5x256xf32>
    %197 = vector.extract_strided_slice %167 {offsets = [0, 0], sizes = [5, 128], strides = [1, 1]} : vector<5x256xf32> to vector<5x128xf32>
    %198 = vector.extract_strided_slice %167 {offsets = [0, 128], sizes = [5, 128], strides = [1, 1]} : vector<5x256xf32> to vector<5x128xf32>
    %199 = arith.maximumf %197, %198 : vector<5x128xf32>
    %200 = vector.extract_strided_slice %196 {offsets = [0, 0], sizes = [5, 128], strides = [1, 1]} : vector<5x256xf32> to vector<5x128xf32>
    %201 = vector.extract_strided_slice %196 {offsets = [0, 128], sizes = [5, 128], strides = [1, 1]} : vector<5x256xf32> to vector<5x128xf32>
    %202 = arith.maximumf %200, %201 : vector<5x128xf32>
    %203 = arith.maximumf %199, %202 : vector<5x128xf32>
    %c0_198 = arith.constant 0 : index
    %c0_199 = arith.constant 0 : index
    %204 = vector.load %arg5[%c0_198, %c0_199] : memref<1x128xf32, #tpu.memory_space<vmem>>, vector<1x128xf32>
    %205 = vector.broadcast %204 : vector<1x128xf32> to vector<5x128xf32>
    %206 = arith.addf %203, %205 : vector<5x128xf32>
    %cst_200 = arith.constant 0.000000e+00 : f32
    %207 = vector.broadcast %cst_200 : f32 to vector<5x128xf32>
    %208 = arith.maximumf %206, %207 : vector<5x128xf32>
    %209 = vector.extract_strided_slice %208 {offsets = [0, 0], sizes = [1, 128], strides = [1, 1]} : vector<5x128xf32> to vector<1x128xf32>
    %210 = arith.truncf %209 : vector<1x128xf32> to vector<1x128xbf16>
    %c0_201 = arith.constant 0 : index
    %c0_202 = arith.constant 0 : index
    %c0_203 = arith.constant 0 : index
    %211 = vector.load %arg6[%c0_201, %c0_202, %c0_203] : memref<5x128x128xbf16, #tpu.memory_space<vmem>>, vector<1x128x128xbf16>
    %212 = vector.shape_cast %211 : vector<1x128x128xbf16> to vector<128x128xbf16>
    %cst_204 = arith.constant dense<0.000000e+00> : vector<1x128xf32>
    %213 = tpu.matmul %210, %212, %cst_204 {dimension_numbers = #tpu.dot_dimension_numbers<[1], [0], [0], [1], [0, 0, 1, 1], [], []>} : vector<1x128xbf16>, vector<128x128xbf16>, vector<1x128xf32> -> vector<1x128xf32>
    %214 = vector.extract_strided_slice %208 {offsets = [1, 0], sizes = [1, 128], strides = [1, 1]} : vector<5x128xf32> to vector<1x128xf32>
    %215 = arith.truncf %214 : vector<1x128xf32> to vector<1x128xbf16>
    %c1_205 = arith.constant 1 : index
    %c0_206 = arith.constant 0 : index
    %c0_207 = arith.constant 0 : index
    %216 = vector.load %arg6[%c1_205, %c0_206, %c0_207] : memref<5x128x128xbf16, #tpu.memory_space<vmem>>, vector<1x128x128xbf16>
    %217 = vector.shape_cast %216 : vector<1x128x128xbf16> to vector<128x128xbf16>
    %cst_208 = arith.constant dense<0.000000e+00> : vector<1x128xf32>
    %218 = tpu.matmul %215, %217, %cst_208 {dimension_numbers = #tpu.dot_dimension_numbers<[1], [0], [0], [1], [0, 0, 1, 1], [], []>} : vector<1x128xbf16>, vector<128x128xbf16>, vector<1x128xf32> -> vector<1x128xf32>
    %219 = arith.addf %213, %218 : vector<1x128xf32>
    %220 = vector.extract_strided_slice %208 {offsets = [2, 0], sizes = [1, 128], strides = [1, 1]} : vector<5x128xf32> to vector<1x128xf32>
    %221 = arith.truncf %220 : vector<1x128xf32> to vector<1x128xbf16>
    %c2_209 = arith.constant 2 : index
    %c0_210 = arith.constant 0 : index
    %c0_211 = arith.constant 0 : index
    %222 = vector.load %arg6[%c2_209, %c0_210, %c0_211] : memref<5x128x128xbf16, #tpu.memory_space<vmem>>, vector<1x128x128xbf16>
    %223 = vector.shape_cast %222 : vector<1x128x128xbf16> to vector<128x128xbf16>
    %cst_212 = arith.constant dense<0.000000e+00> : vector<1x128xf32>
    %224 = tpu.matmul %221, %223, %cst_212 {dimension_numbers = #tpu.dot_dimension_numbers<[1], [0], [0], [1], [0, 0, 1, 1], [], []>} : vector<1x128xbf16>, vector<128x128xbf16>, vector<1x128xf32> -> vector<1x128xf32>
    %225 = arith.addf %219, %224 : vector<1x128xf32>
    %226 = vector.extract_strided_slice %208 {offsets = [3, 0], sizes = [1, 128], strides = [1, 1]} : vector<5x128xf32> to vector<1x128xf32>
    %227 = arith.truncf %226 : vector<1x128xf32> to vector<1x128xbf16>
    %c3_213 = arith.constant 3 : index
    %c0_214 = arith.constant 0 : index
    %c0_215 = arith.constant 0 : index
    %228 = vector.load %arg6[%c3_213, %c0_214, %c0_215] : memref<5x128x128xbf16, #tpu.memory_space<vmem>>, vector<1x128x128xbf16>
    %229 = vector.shape_cast %228 : vector<1x128x128xbf16> to vector<128x128xbf16>
    %cst_216 = arith.constant dense<0.000000e+00> : vector<1x128xf32>
    %230 = tpu.matmul %227, %229, %cst_216 {dimension_numbers = #tpu.dot_dimension_numbers<[1], [0], [0], [1], [0, 0, 1, 1], [], []>} : vector<1x128xbf16>, vector<128x128xbf16>, vector<1x128xf32> -> vector<1x128xf32>
    %231 = arith.addf %225, %230 : vector<1x128xf32>
    %232 = vector.extract_strided_slice %208 {offsets = [4, 0], sizes = [1, 128], strides = [1, 1]} : vector<5x128xf32> to vector<1x128xf32>
    %233 = arith.truncf %232 : vector<1x128xf32> to vector<1x128xbf16>
    %c4_217 = arith.constant 4 : index
    %c0_218 = arith.constant 0 : index
    %c0_219 = arith.constant 0 : index
    %234 = vector.load %arg6[%c4_217, %c0_218, %c0_219] : memref<5x128x128xbf16, #tpu.memory_space<vmem>>, vector<1x128x128xbf16>
    %235 = vector.shape_cast %234 : vector<1x128x128xbf16> to vector<128x128xbf16>
    %cst_220 = arith.constant dense<0.000000e+00> : vector<1x128xf32>
    %236 = tpu.matmul %233, %235, %cst_220 {dimension_numbers = #tpu.dot_dimension_numbers<[1], [0], [0], [1], [0, 0, 1, 1], [], []>} : vector<1x128xbf16>, vector<128x128xbf16>, vector<1x128xf32> -> vector<1x128xf32>
    %237 = arith.addf %231, %236 : vector<1x128xf32>
    %c0_221 = arith.constant 0 : index
    %c0_222 = arith.constant 0 : index
    %238 = vector.load %arg7[%c0_221, %c0_222] : memref<1x128xf32, #tpu.memory_space<vmem>>, vector<1x128xf32>
    %239 = arith.addf %237, %238 : vector<1x128xf32>
    %cst_223 = arith.constant 0.000000e+00 : f32
    %240 = vector.broadcast %cst_223 : f32 to vector<1x128xf32>
    %241 = arith.maximumf %239, %240 : vector<1x128xf32>
    %242 = arith.truncf %241 : vector<1x128xf32> to vector<1x128xbf16>
    %c0_224 = arith.constant 0 : index
    %c0_225 = arith.constant 0 : index
    %243 = vector.load %arg8[%c0_224, %c0_225] : memref<128x128xbf16, #tpu.memory_space<vmem>>, vector<128x128xbf16>
    %cst_226 = arith.constant dense<0.000000e+00> : vector<1x128xf32>
    %244 = tpu.matmul %242, %243, %cst_226 {dimension_numbers = #tpu.dot_dimension_numbers<[1], [0], [0], [1], [0, 0, 1, 1], [], []>} : vector<1x128xbf16>, vector<128x128xbf16>, vector<1x128xf32> -> vector<1x128xf32>
    %c0_227 = arith.constant 0 : index
    %c0_228 = arith.constant 0 : index
    %245 = vector.load %arg9[%c0_227, %c0_228] : memref<1x128xf32, #tpu.memory_space<vmem>>, vector<1x128xf32>
    %246 = arith.addf %244, %245 : vector<1x128xf32>
    %cst_229 = arith.constant 0.000000e+00 : f32
    %247 = vector.broadcast %cst_229 : f32 to vector<1x128xf32>
    %248 = arith.maximumf %246, %247 : vector<1x128xf32>
    %249 = arith.truncf %248 : vector<1x128xf32> to vector<1x128xbf16>
    %c0_230 = arith.constant 0 : index
    %c0_231 = arith.constant 0 : index
    %250 = vector.load %arg10[%c0_230, %c0_231] : memref<128x128xbf16, #tpu.memory_space<vmem>>, vector<128x128xbf16>
    %cst_232 = arith.constant dense<0.000000e+00> : vector<1x128xf32>
    %251 = tpu.matmul %249, %250, %cst_232 {dimension_numbers = #tpu.dot_dimension_numbers<[1], [0], [0], [1], [0, 0, 1, 1], [], []>} : vector<1x128xbf16>, vector<128x128xbf16>, vector<1x128xf32> -> vector<1x128xf32>
    %c0_233 = arith.constant 0 : index
    %c0_234 = arith.constant 0 : index
    %252 = vector.load %arg11[%c0_233, %c0_234] : memref<1x128xf32, #tpu.memory_space<vmem>>, vector<1x128xf32>
    %253 = arith.addf %251, %252 : vector<1x128xf32>
    %cst_235 = arith.constant dense<0xFF800000> : vector<1xf32>
    %254 = vector.multi_reduction <maximumf>, %253, %cst_235 [1] : vector<1x128xf32> to vector<1xf32>
    %255 = vector.shape_cast %254 : vector<1xf32> to vector<1x1xf32>
    %256 = vector.broadcast %255 : vector<1x1xf32> to vector<1x128xf32>
    %257 = arith.subf %253, %256 : vector<1x128xf32>
    %258 = math.exp %257 : vector<1x128xf32>
    %cst_236 = arith.constant dense<0.000000e+00> : vector<1xf32>
    %259 = vector.multi_reduction <add>, %258, %cst_236 [1] : vector<1x128xf32> to vector<1xf32>
    %260 = vector.shape_cast %259 : vector<1xf32> to vector<1x1xf32>
    %261 = math.log %260 : vector<1x1xf32>
    %262 = vector.broadcast %261 : vector<1x1xf32> to vector<1x128xf32>
    %263 = arith.subf %257, %262 : vector<1x128xf32>
    %c0_237 = arith.constant 0 : index
    %c0_238 = arith.constant 0 : index
    %c0_239 = arith.constant 0 : index
    %264 = vector.load %arg12[%c0_237, %c0_238, %c0_239] : memref<1x1x128xf32, #tpu.memory_space<vmem>>, vector<1x1x128xf32>
    %265 = vector.shape_cast %264 : vector<1x1x128xf32> to vector<1x128xf32>
    %266 = vector.shape_cast %263 : vector<1x128xf32> to vector<1x1x128xf32>
    tpu.vector_store %arg12[%c0_237, %c0_238, %c0_239], %266 {strides = array<i32>} : memref<1x1x128xf32, #tpu.memory_space<vmem>>, vector<1x1x128xf32>,
    return
  }
  func.func @transform_0(%arg0: i32) -> (i32, i32, i32, i32) {
    %c0_i32 = arith.constant 0 : i32
    %c0_i32_0 = arith.constant 0 : i32
    %c0_i32_1 = arith.constant 0 : i32
    %c0_i32_2 = arith.constant 0 : i32
    return %arg0, %c0_i32, %c0_i32_0, %c0_i32_1 : i32, i32, i32, i32
  }
  func.func @transform_1(%arg0: i32) -> (i32, i32, i32) {
    %c0_i32 = arith.constant 0 : i32
    %c0_i32_0 = arith.constant 0 : i32
    %c0_i32_1 = arith.constant 0 : i32
    %c0_i32_2 = arith.constant 0 : i32
    return %c0_i32, %c0_i32_0, %c0_i32_1 : i32, i32, i32
  }
  func.func @transform_2(%arg0: i32) -> (i32, i32) {
    %c0_i32 = arith.constant 0 : i32
    %c0_i32_0 = arith.constant 0 : i32
    %c0_i32_1 = arith.constant 0 : i32
    return %c0_i32, %c0_i32_0 : i32, i32
  }
  func.func @transform_3(%arg0: i32) -> (i32, i32, i32) {
    %c0_i32 = arith.constant 0 : i32
    %c0_i32_0 = arith.constant 0 : i32
    %c0_i32_1 = arith.constant 0 : i32
    %c0_i32_2 = arith.constant 0 : i32
    return %c0_i32, %c0_i32_0, %c0_i32_1 : i32, i32, i32
  }
  func.func @transform_4(%arg0: i32) -> (i32, i32) {
    %c0_i32 = arith.constant 0 : i32
    %c0_i32_0 = arith.constant 0 : i32
    %c0_i32_1 = arith.constant 0 : i32
    return %c0_i32, %c0_i32_0 : i32, i32
  }
  func.func @transform_5(%arg0: i32) -> (i32, i32, i32) {
    %c0_i32 = arith.constant 0 : i32
    %c0_i32_0 = arith.constant 0 : i32
    %c0_i32_1 = arith.constant 0 : i32
    %c0_i32_2 = arith.constant 0 : i32
    return %c0_i32, %c0_i32_0, %c0_i32_1 : i32, i32, i32
  }
  func.func @transform_6(%arg0: i32) -> (i32, i32) {
    %c0_i32 = arith.constant 0 : i32
    %c0_i32_0 = arith.constant 0 : i32
    %c0_i32_1 = arith.constant 0 : i32
    return %c0_i32, %c0_i32_0 : i32, i32
  }
  func.func @transform_7(%arg0: i32) -> (i32, i32) {
    %c0_i32 = arith.constant 0 : i32
    %c0_i32_0 = arith.constant 0 : i32
    %c0_i32_1 = arith.constant 0 : i32
    return %c0_i32, %c0_i32_0 : i32, i32
  }
  func.func @transform_8(%arg0: i32) -> (i32, i32) {
    %c0_i32 = arith.constant 0 : i32
    %c0_i32_0 = arith.constant 0 : i32
    %c0_i32_1 = arith.constant 0 : i32
    return %c0_i32, %c0_i32_0 : i32, i32
  }
  func.func @transform_9(%arg0: i32) -> (i32, i32) {
    %c0_i32 = arith.constant 0 : i32
    %c0_i32_0 = arith.constant 0 : i32
    %c0_i32_1 = arith.constant 0 : i32
    return %c0_i32, %c0_i32_0 : i32, i32
  }
  func.func @transform_10(%arg0: i32) -> (i32, i32) {
    %c0_i32 = arith.constant 0 : i32
    %c0_i32_0 = arith.constant 0 : i32
    %c0_i32_1 = arith.constant 0 : i32
    return %c0_i32, %c0_i32_0 : i32, i32
  }
  func.func @transform_11(%arg0: i32) -> (i32, i32, i32) {
    %c0_i32 = arith.constant 0 : i32
    %c0_i32_0 = arith.constant 0 : i32
    %c0_i32_1 = arith.constant 0 : i32
    return %arg0, %c0_i32, %c0_i32_0 : i32, i32, i32
  }
}

</mosaic_0001>

<llo_original>
// kernel: forward.1
$region0: #{forward.1}
  #allocation0 [shape = 'u32[]', space=smem, size = 0x4, offset = 0x4, fixed_abs, tag = 'smem constant byte address 0x4 - core index']
  #allocation1 [shape = 'u32[144,128]{1,0:T(1,128)}', space=vmem, size = 0x12000, scoped, tag = 'internal scratch']
  %s0 = inlined_call_operand.vmem [shape: bf16[2,4,8,96], index: 0, kind: input, shape index: {}]
  %s1 = inlined_call_operand.vmem [shape: bf16[5,96,256], index: 1, kind: input, shape index: {}]
  %s2 = inlined_call_operand.vmem [shape: f32[1,128], index: 2, kind: input, shape index: {}]
  %s3 = inlined_call_operand.vmem [shape: bf16[5,128,256], index: 3, kind: input, shape index: {}]
  %s4 = inlined_call_operand.vmem [shape: f32[1,128], index: 4, kind: input, shape index: {}]
  %s5 = inlined_call_operand.vmem [shape: bf16[5,128,128], index: 5, kind: input, shape index: {}]
  %s6 = inlined_call_operand.vmem [shape: f32[1,128], index: 6, kind: input, shape index: {}]
  %s7 = inlined_call_operand.vmem [shape: bf16[128,128], index: 7, kind: input, shape index: {}]
  %s8 = inlined_call_operand.vmem [shape: f32[1,128], index: 8, kind: input, shape index: {}]
  %s9 = inlined_call_operand.vmem [shape: bf16[128,128], index: 9, kind: input, shape index: {}]
  %s10 = inlined_call_operand.vmem [shape: f32[1,128], index: 10, kind: input, shape index: {}]
  %s11 = inlined_call_operand.hbm [shape: f32[2,1,128], index: 11, kind: output, shape index: {}]
  %s12 = sld [smem:[#allocation0]]
  $region77: #{forward.1} parent=0
    _
  %s14 = ssub.s32 1, %s12
  %s15 = scalar_select 0, %s14, %s12
  $region1: #{forward.1} parent=0
    #allocation2 [shape = 'u8[1024]{0}', space=vmem, size = 0x400, scoped, tag = 'output window, operand 0']
    #allocation3 [shape = 's32[2]{0}', space=sflag, size = 0x8, scoped, tag = 'scoped memory for forward.1']
    %16 = vsyncpa [#allocation3], 0
    %s17 = scalar_lea.sflag [#allocation3], 1
    %18 = vsyncpa %s17, 0
    loop: start=0, step=1, limit=4
    $region2: #{forward.1} parent=1 // loop_pre_header
      _
    $region3: #{forward.1} parent=1 // loop_header
      %s20 = sphi 0, %s24
      %p21 = scmp.ge.s32.totalorder %s20, 4
      %s30 = sphi 0, %s32
      %s33 = sphi 0, %s30
      %s34 = sphi 0, %s33
      %s50 = sphi 0, %s34
      %s54 = sphi 0, %s54
      %s56 = sphi 0, %s54
      %s57 = sphi 0, %s56
      %s71 = sphi 0, %s57
      %s75 = sphi 0, %s75
      %s77 = sphi 0, %s75
      %s78 = sphi 0, %s77
      %s92 = sphi 0, %s78
      %s96 = sphi 0, %s96
      %s98 = sphi 0, %s96
      %s99 = sphi 0, %s98
      %s113 = sphi 0, %s99
      %s117 = sphi 0, %s117
      %s119 = sphi 0, %s117
      %s120 = sphi 0, %s119
      %s134 = sphi 0, %s120
      %s138 = sphi 0, %s138
      %s140 = sphi 0, %s138
      %s141 = sphi 0, %s140
      %s155 = sphi 0, %s141
      %s159 = sphi 0, %s159
      %s161 = sphi 0, %s159
      %s162 = sphi 0, %s161
      %s176 = sphi 0, %s162
      %s180 = sphi 0, %s180
      %s182 = sphi 0, %s180
      %s183 = sphi 0, %s182
      %s197 = sphi 0, %s183
      %s201 = sphi 0, %s201
      %s203 = sphi 0, %s201
      %s204 = sphi 0, %s203
      %s218 = sphi 0, %s204
      %s222 = sphi 0, %s222
      %s224 = sphi 0, %s222
      %s225 = sphi 0, %s224
      %s239 = sphi 0, %s225
      %s243 = sphi 0, %s243
      %s245 = sphi 0, %s243
      %s246 = sphi 0, %s245
      %s260 = sphi 0, %s246
      %s266 = sphi 0, %s268
      %s269 = sphi 0, %s266
      %s270 = sphi 0, %s269
      %s286 = sphi 0, %s270
    $region4: #{forward.1} parent=1 // loop_header_branch
      %23 = sbr.rel (%p21) target = $region8
    $region5: #{forward.1} parent=1 // loop_body
      %s25 = ssub.s32 %s20, 1
      %s26 = ssub.s32 %s20, 2
      %s27 = sadd.s32 %s20, 1
      %s28 = ssub.s32 %s20, %s27
      %p29 = scmp.eq.s32.totalorder %s28, 0
      %s31 = sadd.s32 %s30, 1
      %s32 = scalar_select %p29, %s30, %s31
      %p35 = pneg %p29
      %p36 = scmp.eq.s32.totalorder %s20, 1
      %p37 = por %p35, %p36
      %p38 = scmp.ne.s32.totalorder %s30, %s33
      %p39 = scmp.eq.s32.totalorder %s20, 0
      %p40 = por %p38, %p39
      %p41 = scmp.ne.s32.totalorder %s30, %s33
      %p42 = scmp.eq.s32.totalorder %s25, 1
      %p43 = por %p41, %p42
      %p44 = scmp.ne.s32.totalorder %s33, %s34
      %p45 = scmp.eq.s32.totalorder %s25, 0
      %p46 = por %p44, %p45
      %p47 = scmp.ne.s32.totalorder %s33, %s34
      %p48 = scmp.eq.s32.totalorder %s26, 1
      %p49 = por %p47, %p48
      %p51 = scmp.ne.s32.totalorder %s34, %s50
      %p52 = scmp.eq.s32.totalorder %s26, 0
      %p53 = por %p51, %p52
      %s55 = sadd.s32 %s54, 1
      %p58 = scmp.eq.s32.totalorder %s20, 1
      %p59 = scmp.ne.s32.totalorder %s54, %s56
      %p60 = scmp.eq.s32.totalorder %s20, 0
      %p61 = por %p59, %p60
      %p62 = scmp.ne.s32.totalorder %s54, %s56
      %p63 = scmp.eq.s32.totalorder %s25, 1
      %p64 = por %p62, %p63
      %p65 = scmp.ne.s32.totalorder %s56, %s57
      %p66 = scmp.eq.s32.totalorder %s25, 0
      %p67 = por %p65, %p66
      %p68 = scmp.ne.s32.totalorder %s56, %s57
      %p69 = scmp.eq.s32.totalorder %s26, 1
      %p70 = por %p68, %p69
      %p72 = scmp.ne.s32.totalorder %s57, %s71
      %p73 = scmp.eq.s32.totalorder %s26, 0
      %p74 = por %p72, %p73
      %s76 = sadd.s32 %s75, 1
      %p79 = scmp.eq.s32.totalorder %s20, 1
      %p80 = scmp.ne.s32.totalorder %s75, %s77
      %p81 = scmp.eq.s32.totalorder %s20, 0
      %p82 = por %p80, %p81
      %p83 = scmp.ne.s32.totalorder %s75, %s77
      %p84 = scmp.eq.s32.totalorder %s25, 1
      %p85 = por %p83, %p84
      %p86 = scmp.ne.s32.totalorder %s77, %s78
      %p87 = scmp.eq.s32.totalorder %s25, 0
      %p88 = por %p86, %p87
      %p89 = scmp.ne.s32.totalorder %s77, %s78
      %p90 = scmp.eq.s32.totalorder %s26, 1
      %p91 = por %p89, %p90
      %p93 = scmp.ne.s32.totalorder %s78, %s92
      %p94 = scmp.eq.s32.totalorder %s26, 0
      %p95 = por %p93, %p94
      %s97 = sadd.s32 %s96, 1
      %p100 = scmp.eq.s32.totalorder %s20, 1
      %p101 = scmp.ne.s32.totalorder %s96, %s98
      %p102 = scmp.eq.s32.totalorder %s20, 0
      %p103 = por %p101, %p102
      %p104 = scmp.ne.s32.totalorder %s96, %s98
      %p105 = scmp.eq.s32.totalorder %s25, 1
      %p106 = por %p104, %p105
      %p107 = scmp.ne.s32.totalorder %s98, %s99
      %p108 = scmp.eq.s32.totalorder %s25, 0
      %p109 = por %p107, %p108
      %p110 = scmp.ne.s32.totalorder %s98, %s99
      %p111 = scmp.eq.s32.totalorder %s26, 1
      %p112 = por %p110, %p111
      %p114 = scmp.ne.s32.totalorder %s99, %s113
      %p115 = scmp.eq.s32.totalorder %s26, 0
      %p116 = por %p114, %p115
      %s118 = sadd.s32 %s117, 1
      %p121 = scmp.eq.s32.totalorder %s20, 1
      %p122 = scmp.ne.s32.totalorder %s117, %s119
      %p123 = scmp.eq.s32.totalorder %s20, 0
      %p124 = por %p122, %p123
      %p125 = scmp.ne.s32.totalorder %s117, %s119
      %p126 = scmp.eq.s32.totalorder %s25, 1
      %p127 = por %p125, %p126
      %p128 = scmp.ne.s32.totalorder %s119, %s120
      %p129 = scmp.eq.s32.totalorder %s25, 0
      %p130 = por %p128, %p129
      %p131 = scmp.ne.s32.totalorder %s119, %s120
      %p132 = scmp.eq.s32.totalorder %s26, 1
      %p133 = por %p131, %p132
      %p135 = scmp.ne.s32.totalorder %s120, %s134
      %p136 = scmp.eq.s32.totalorder %s26, 0
      %p137 = por %p135, %p136
      %s139 = sadd.s32 %s138, 1
      %p142 = scmp.eq.s32.totalorder %s20, 1
      %p143 = scmp.ne.s32.totalorder %s138, %s140
      %p144 = scmp.eq.s32.totalorder %s20, 0
      %p145 = por %p143, %p144
      %p146 = scmp.ne.s32.totalorder %s138, %s140
      %p147 = scmp.eq.s32.totalorder %s25, 1
      %p148 = por %p146, %p147
      %p149 = scmp.ne.s32.totalorder %s140, %s141
      %p150 = scmp.eq.s32.totalorder %s25, 0
      %p151 = por %p149, %p150
      %p152 = scmp.ne.s32.totalorder %s140, %s141
      %p153 = scmp.eq.s32.totalorder %s26, 1
      %p154 = por %p152, %p153
      %p156 = scmp.ne.s32.totalorder %s141, %s155
      %p157 = scmp.eq.s32.totalorder %s26, 0
      %p158 = por %p156, %p157
      %s160 = sadd.s32 %s159, 1
      %p163 = scmp.eq.s32.totalorder %s20, 1
      %p164 = scmp.ne.s32.totalorder %s159, %s161
      %p165 = scmp.eq.s32.totalorder %s20, 0
      %p166 = por %p164, %p165
      %p167 = scmp.ne.s32.totalorder %s159, %s161
      %p168 = scmp.eq.s32.totalorder %s25, 1
      %p169 = por %p167, %p168
      %p170 = scmp.ne.s32.totalorder %s161, %s162
      %p171 = scmp.eq.s32.totalorder %s25, 0
      %p172 = por %p170, %p171
      %p173 = scmp.ne.s32.totalorder %s161, %s162
      %p174 = scmp.eq.s32.totalorder %s26, 1
      %p175 = por %p173, %p174
      %p177 = scmp.ne.s32.totalorder %s162, %s176
      %p178 = scmp.eq.s32.totalorder %s26, 0
      %p179 = por %p177, %p178
      %s181 = sadd.s32 %s180, 1
      %p184 = scmp.eq.s32.totalorder %s20, 1
      %p185 = scmp.ne.s32.totalorder %s180, %s182
      %p186 = scmp.eq.s32.totalorder %s20, 0
      %p187 = por %p185, %p186
      %p188 = scmp.ne.s32.totalorder %s180, %s182
      %p189 = scmp.eq.s32.totalorder %s25, 1
      %p190 = por %p188, %p189
      %p191 = scmp.ne.s32.totalorder %s182, %s183
      %p192 = scmp.eq.s32.totalorder %s25, 0
      %p193 = por %p191, %p192
      %p194 = scmp.ne.s32.totalorder %s182, %s183
      %p195 = scmp.eq.s32.totalorder %s26, 1
      %p196 = por %p194, %p195
      %p198 = scmp.ne.s32.totalorder %s183, %s197
      %p199 = scmp.eq.s32.totalorder %s26, 0
      %p200 = por %p198, %p199
      %s202 = sadd.s32 %s201, 1
      %p205 = scmp.eq.s32.totalorder %s20, 1
      %p206 = scmp.ne.s32.totalorder %s201, %s203
      %p207 = scmp.eq.s32.totalorder %s20, 0
      %p208 = por %p206, %p207
      %p209 = scmp.ne.s32.totalorder %s201, %s203
      %p210 = scmp.eq.s32.totalorder %s25, 1
      %p211 = por %p209, %p210
      %p212 = scmp.ne.s32.totalorder %s203, %s204
      %p213 = scmp.eq.s32.totalorder %s25, 0
      %p214 = por %p212, %p213
      %p215 = scmp.ne.s32.totalorder %s203, %s204
      %p216 = scmp.eq.s32.totalorder %s26, 1
      %p217 = por %p215, %p216
      %p219 = scmp.ne.s32.totalorder %s204, %s218
      %p220 = scmp.eq.s32.totalorder %s26, 0
      %p221 = por %p219, %p220
      %s223 = sadd.s32 %s222, 1
      %p226 = scmp.eq.s32.totalorder %s20, 1
      %p227 = scmp.ne.s32.totalorder %s222, %s224
      %p228 = scmp.eq.s32.totalorder %s20, 0
      %p229 = por %p227, %p228
      %p230 = scmp.ne.s32.totalorder %s222, %s224
      %p231 = scmp.eq.s32.totalorder %s25, 1
      %p232 = por %p230, %p231
      %p233 = scmp.ne.s32.totalorder %s224, %s225
      %p234 = scmp.eq.s32.totalorder %s25, 0
      %p235 = por %p233, %p234
      %p236 = scmp.ne.s32.totalorder %s224, %s225
      %p237 = scmp.eq.s32.totalorder %s26, 1
      %p238 = por %p236, %p237
      %p240 = scmp.ne.s32.totalorder %s225, %s239
      %p241 = scmp.eq.s32.totalorder %s26, 0
      %p242 = por %p240, %p241
      %s244 = sadd.s32 %s243, 1
      %p247 = scmp.eq.s32.totalorder %s20, 1
      %p248 = scmp.ne.s32.totalorder %s243, %s245
      %p249 = scmp.eq.s32.totalorder %s20, 0
      %p250 = por %p248, %p249
      %p251 = scmp.ne.s32.totalorder %s243, %s245
      %p252 = scmp.eq.s32.totalorder %s25, 1
      %p253 = por %p251, %p252
      %p254 = scmp.ne.s32.totalorder %s245, %s246
      %p255 = scmp.eq.s32.totalorder %s25, 0
      %p256 = por %p254, %p255
      %p257 = scmp.ne.s32.totalorder %s245, %s246
      %p258 = scmp.eq.s32.totalorder %s26, 1
      %p259 = por %p257, %p258
      %p261 = scmp.ne.s32.totalorder %s246, %s260
      %p262 = scmp.eq.s32.totalorder %s26, 0
      %p263 = por %p261, %p262
      %s264 = ssub.s32 %s20, %s27
      %p265 = scmp.eq.s32.totalorder %s264, 0
      %s267 = sadd.s32 %s266, 1
      %s268 = scalar_select %p265, %s266, %s267
      %p271 = pneg %p265
      %p272 = scmp.eq.s32.totalorder %s20, 1
      %p273 = por %p271, %p272
      %p274 = scmp.ne.s32.totalorder %s266, %s269
      %p275 = scmp.eq.s32.totalorder %s20, 0
      %p276 = por %p274, %p275
      %p277 = scmp.ne.s32.totalorder %s266, %s269
      %p278 = scmp.eq.s32.totalorder %s25, 1
      %p279 = por %p277, %p278
      %p280 = scmp.ne.s32.totalorder %s269, %s270
      %p281 = scmp.eq.s32.totalorder %s25, 0
      %p282 = por %p280, %p281
      %p283 = scmp.ne.s32.totalorder %s269, %s270
      %p284 = scmp.eq.s32.totalorder %s26, 1
      %p285 = por %p283, %p284
      %p287 = scmp.ne.s32.totalorder %s270, %s286
      %p288 = scmp.eq.s32.totalorder %s26, 0
      %p289 = por %p287, %p288
      %p290 = scmp.le.s32.totalorder 1, %s20
      %p291 = scmp.lt.s32.totalorder %s20, 3
      %p292 = pnand %p290, %p291
      %p293 = pneg %p292
      // Predicated region
      $region9: #{forward.1} parent=5 // pred_check
        _
      $region10: #{forward.1} parent=5 // pred_check_branch
        %295 = sbr.rel (%p292) target = $region12
      $region11: #{forward.1} parent=5 // pred_region
        %s296 = ssub.s32 %s20, 1
        // Predicated region
        $region13: #{forward.1} parent=11 // pred_check
          %p297 = pneg %p67
        $region14: #{forward.1} parent=11 // pred_check_branch
          %299 = sbr.rel (%p297) target = $region16
        $region15: #{forward.1} parent=11 // pred_region
          _
        $region16: #{forward.1} parent=11 // pred_fallthru
          _
        // Predicated region
        $region17: #{forward.1} parent=11 // pred_check
          %p300 = pneg %p88
        $region18: #{forward.1} parent=11 // pred_check_branch
          %302 = sbr.rel (%p300) target = $region20
        $region19: #{forward.1} parent=11 // pred_region
          _
        $region20: #{forward.1} parent=11 // pred_fallthru
          _
        // Predicated region
        $region21: #{forward.1} parent=11 // pred_check
          %p303 = pneg %p109
        $region22: #{forward.1} parent=11 // pred_check_branch
          %305 = sbr.rel (%p303) target = $region24
        $region23: #{forward.1} parent=11 // pred_region
          _
        $region24: #{forward.1} parent=11 // pred_fallthru
          _
        // Predicated region
        $region25: #{forward.1} parent=11 // pred_check
          %p306 = pneg %p130
        $region26: #{forward.1} parent=11 // pred_check_branch
          %308 = sbr.rel (%p306) target = $region28
        $region27: #{forward.1} parent=11 // pred_region
          _
        $region28: #{forward.1} parent=11 // pred_fallthru
          _
        // Predicated region
        $region29: #{forward.1} parent=11 // pred_check
          %p309 = pneg %p151
        $region30: #{forward.1} parent=11 // pred_check_branch
          %311 = sbr.rel (%p309) target = $region32
        $region31: #{forward.1} parent=11 // pred_region
          _
        $region32: #{forward.1} parent=11 // pred_fallthru
          _
        // Predicated region
        $region33: #{forward.1} parent=11 // pred_check
          %p312 = pneg %p172
        $region34: #{forward.1} parent=11 // pred_check_branch
          %314 = sbr.rel (%p312) target = $region36
        $region35: #{forward.1} parent=11 // pred_region
          _
        $region36: #{forward.1} parent=11 // pred_fallthru
          _
        // Predicated region
        $region37: #{forward.1} parent=11 // pred_check
          %p315 = pneg %p193
        $region38: #{forward.1} parent=11 // pred_check_branch
          %317 = sbr.rel (%p315) target = $region40
        $region39: #{forward.1} parent=11 // pred_region
          _
        $region40: #{forward.1} parent=11 // pred_fallthru
          _
        // Predicated region
        $region41: #{forward.1} parent=11 // pred_check
          %p318 = pneg %p214
        $region42: #{forward.1} parent=11 // pred_check_branch
          %320 = sbr.rel (%p318) target = $region44
        $region43: #{forward.1} parent=11 // pred_region
          _
        $region44: #{forward.1} parent=11 // pred_fallthru
          _
        // Predicated region
        $region45: #{forward.1} parent=11 // pred_check
          %p321 = pneg %p235
        $region46: #{forward.1} parent=11 // pred_check_branch
          %323 = sbr.rel (%p321) target = $region48
        $region47: #{forward.1} parent=11 // pred_region
          _
        $region48: #{forward.1} parent=11 // pred_fallthru
          _
        // Predicated region
        $region49: #{forward.1} parent=11 // pred_check
          %p324 = pneg %p256
        $region50: #{forward.1} parent=11 // pred_check_branch
          %326 = sbr.rel (%p324) target = $region52
        $region51: #{forward.1} parent=11 // pred_region
          _
        $region52: #{forward.1} parent=11 // pred_fallthru
          _
      $region12: #{forward.1} parent=5 // pred_fallthru
        _
      %p327 = scmp.lt.s32.totalorder %s20, 2
      // Predicated region
      $region53: #{forward.1} parent=5 // pred_check
        %p328 = pneg %p327
      $region54: #{forward.1} parent=5 // pred_check_branch
        %330 = sbr.rel (%p328) target = $region56
      $region55: #{forward.1} parent=5 // pred_region
        // Predicated region
        $region57: #{forward.1} parent=55 // pred_check
          %p331 = pneg %p40
        $region58: #{forward.1} parent=55 // pred_check_branch
          %333 = sbr.rel (%p331) target = $region60
        $region59: #{forward.1} parent=55 // pred_region
          %p334 = scmp.lt.s32.totalorder %s20, 1
          %s335 = scalar_select %p334, %s20, 1
          %s336 = smul.addr %s335, 4
          %s337 = smul.addr %s336, 4
          %s338 = scalar_lea.vmem %s0, %s337
        $region60: #{forward.1} parent=55 // pred_fallthru
          _
      $region56: #{forward.1} parent=5 // pred_fallthru
        _
      %p339 = scmp.le.s32.totalorder 1, %s20
      %p340 = scmp.lt.s32.totalorder %s20, 3
      %p341 = pnand %p339, %p340
      %p342 = pneg %p341
      // Predicated region
      $region61: #{forward.1} parent=5 // pred_check
        _
      $region62: #{forward.1} parent=5 // pred_check_branch
        %344 = sbr.rel (%p341) target = $region64
      $region63: #{forward.1} parent=5 // pred_region
        %s345 = ssub.s32 %s20, 1
        %p346 = scmp.lt.s32.totalorder %s25, 1
        %s347 = scalar_select %p346, %s25, 1
        %s348 = smul.addr %s347, 4
        %s349 = smul.addr %s348, 4
        %s350 = scalar_lea.vmem %s0, %s349
        %p351 = pneg %p46
        %p352 = pneg %p43
        %p353 = pneg %p67
        %p354 = pneg %p64
        %p355 = pneg %p88
        %p356 = pneg %p85
        %p357 = pneg %p109
        %p358 = pneg %p106
        %p359 = pneg %p130
        %p360 = pneg %p127
        %p361 = pneg %p151
        %p362 = pneg %p148
        %p363 = pneg %p172
        %p364 = pneg %p169
        %p365 = pneg %p193
        %p366 = pneg %p190
        %p367 = pneg %p214
        %p368 = pneg %p211
        %p369 = pneg %p235
        %p370 = pneg %p232
        %p371 = pneg %p256
        %p372 = pneg %p253
        %p373 = pneg %p282
        %p374 = pneg %p279
        %s375 = sand.u32 %s269, 1
        %s376 = scalar_lea.sflag [#allocation3], %s375
        %s377 = sand.u32 %s269, 1
        %s378 = scalar_lea.vmem [#allocation2], %s377
        %p379 = scmp.lt.s32.totalorder %s25, 1
        %s380 = scalar_select %p379, %s25, 1
        %s381 = smul.addr %s380, 4
        %s382 = smul.addr %s381, 4
        %s383 = scalar_lea.vmem %s0, %s382
        %v385 = vld [vmem:[%s383] sm:$0xf]
        %v386 = vld [vmem:[%s1] sm:$0xff]
        %v387 = vld [vmem:[%s1 + $0x8] sm:$0xff]
        %v388 = vld [vmem:[%s1 + $0x10] sm:$0xff]
        %v389 = vld [vmem:[%s1 + $0x18] sm:$0xff]
        %v390 = vld [vmem:[%s1 + $0x20] sm:$0xff]
        %v391 = vld [vmem:[%s1 + $0x28] sm:$0xff]
        %v392 = vld [vmem:[%s1 + $0x30] sm:$0xff]
        %v393 = vld [vmem:[%s1 + $0x38] sm:$0xff]
        %v394 = vld [vmem:[%s1 + $0x40] sm:$0xff]
        %v395 = vld [vmem:[%s1 + $0x48] sm:$0xff]
        %v396 = vld [vmem:[%s1 + $0x50] sm:$0xff]
        %v397 = vld [vmem:[%s1 + $0x58] sm:$0xff]
        %s398 = scalar_lea.vmem %s383, 4
        %v399 = vld [vmem:[%s398] sm:$0xf]
        %s400 = scalar_lea.vmem %s1, 96
        %v401 = vld [vmem:[%s400] sm:$0xff]
        %v402 = vld [vmem:[%s400 + $0x8] sm:$0xff]
        %v403 = vld [vmem:[%s400 + $0x10] sm:$0xff]
        %v404 = vld [vmem:[%s400 + $0x18] sm:$0xff]
        %v405 = vld [vmem:[%s400 + $0x20] sm:$0xff]
        %v406 = vld [vmem:[%s400 + $0x28] sm:$0xff]
        %v407 = vld [vmem:[%s400 + $0x30] sm:$0xff]
        %v408 = vld [vmem:[%s400 + $0x38] sm:$0xff]
        %v409 = vld [vmem:[%s400 + $0x40] sm:$0xff]
        %v410 = vld [vmem:[%s400 + $0x48] sm:$0xff]
        %v411 = vld [vmem:[%s400 + $0x50] sm:$0xff]
        %v412 = vld [vmem:[%s400 + $0x58] sm:$0xff]
        %v425 = vunpack.c.l.b16 %v401
        %v426 = vunpack.c.h.b16 %v401
        %v427 = vunpack.c.l.b16 %v402
        %v428 = vunpack.c.h.b16 %v402
        %v429 = vunpack.c.l.b16 %v403
        %v430 = vunpack.c.h.b16 %v403
        %v431 = vunpack.c.l.b16 %v404
        %v432 = vunpack.c.h.b16 %v404
        %v433 = vunpack.c.l.b16 %v405
        %v434 = vunpack.c.h.b16 %v405
        %v435 = vunpack.c.l.b16 %v406
        %v436 = vunpack.c.h.b16 %v406
        %v437 = vunpack.c.l.b16 %v407
        %v438 = vunpack.c.h.b16 %v407
        %v439 = vunpack.c.l.b16 %v408
        %v440 = vunpack.c.h.b16 %v408
        %v441 = vunpack.c.l.b16 %v409
        %v442 = vunpack.c.h.b16 %v409
        %v443 = vunpack.c.l.b16 %v410
        %v444 = vunpack.c.h.b16 %v410
        %v445 = vunpack.c.l.b16 %v411
        %v446 = vunpack.c.h.b16 %v411
        %v447 = vunpack.c.l.b16 %v412
        %v448 = vunpack.c.h.b16 %v412
        %v449 = vpack.c.b16 %v427, %v425
        %v450 = vpack.c.b16 %v428, %v426
        %v451 = vpack.c.b16 %v431, %v429
        %v452 = vpack.c.b16 %v432, %v430
        %v453 = vpack.c.b16 %v435, %v433
        %v454 = vpack.c.b16 %v436, %v434
        %v455 = vpack.c.b16 %v439, %v437
        %v456 = vpack.c.b16 %v440, %v438
        %v457 = vpack.c.b16 %v443, %v441
        %v458 = vpack.c.b16 %v444, %v442
        %v459 = vpack.c.b16 %v447, %v445
        %v460 = vpack.c.b16 %v448, %v446
        %vm473 = vcmask 785408
        %v475 = vsel %vm473, %v399, 0
        %477 = vmatprep.subr.bf16.mxu0 0
        %478 = vmatpush1.bf16.msra.mxu0 0
        %479 = vmatprep.subr.bf16.mxu0 0
        %480 = vmatpush1.bf16.msra.mxu0 0
        %481 = vmatprep.subr.bf16.mxu0 %v460
        %482 = vmatpush1.bf16.msra.mxu0 %v459
        %483 = vmatprep.subr.bf16.mxu0 %v458
        %484 = vmatpush1.bf16.msra.mxu0 %v457
        %485 = vmatprep.subr.bf16.mxu0 %v456
        %486 = vmatpush1.bf16.msra.mxu0 %v455
        %487 = vmatprep.subr.bf16.mxu0 %v454
        %488 = vmatpush1.bf16.msra.mxu0 %v453
        %489 = vmatprep.subr.bf16.mxu0 %v452
        %490 = vmatpush1.bf16.msra.mxu0 %v451
        %491 = vmatprep.subr.bf16.mxu0 %v450
        %492 = vmatpush1.bf16.msra.mxu0 %v449
        %493 = vmatprep.subr.bf16.mxu0 0
        %494 = vmatpush2.bf16.msra.mxu0 0
        %495 = vmatprep.subr.bf16.mxu0 0
        %496 = vmatpush2.bf16.msra.mxu0 0
        %497 = vmatprep.subr.bf16.mxu0 0
        %498 = vmatpush2.bf16.msra.mxu0 0
        %499 = vmatprep.subr.bf16.mxu0 0
        %500 = vmatpush2.bf16.msra.mxu0 0
        %501 = vmatprep.subr.bf16.mxu0 0
        %502 = vmatpush2.bf16.msra.mxu0 0
        %503 = vmatprep.subr.bf16.mxu0 0
        %504 = vmatpush2.bf16.msra.mxu0 0
        %505 = vmatprep.subr.bf16.mxu0 0
        %506 = vmatpush2.bf16.msra.mxu0 0
        %507 = vmatprep.subr.bf16.mxu0 0
        %508 = vmatpush2.bf16.msra.mxu0 0
        %509 = vmatprep.mubr.bf16.mxu0 0
        %510 = vmatmul.mubr.bf16.gmra.mxu0 %v475
        %v511 = vpop.f32.mrf.mxu0
        %v512 = vadd.f32 0.0, %v511
        %v513 = vpop.f32.mrf.mxu0
        %v514 = vadd.f32 0.0, %v513
        %v515 = vpop.f32.mrf.mxu0
        %v516 = vpop.f32.mrf.mxu0
        %517 = vdwg.mxu0
        %v530 = vunpack.c.l.b16 %v386
        %v531 = vunpack.c.h.b16 %v386
        %v532 = vunpack.c.l.b16 %v387
        %v533 = vunpack.c.h.b16 %v387
        %v534 = vunpack.c.l.b16 %v388
        %v535 = vunpack.c.h.b16 %v388
        %v536 = vunpack.c.l.b16 %v389
        %v537 = vunpack.c.h.b16 %v389
        %v538 = vunpack.c.l.b16 %v390
        %v539 = vunpack.c.h.b16 %v390
        %v540 = vunpack.c.l.b16 %v391
        %v541 = vunpack.c.h.b16 %v391
        %v542 = vunpack.c.l.b16 %v392
        %v543 = vunpack.c.h.b16 %v392
        %v544 = vunpack.c.l.b16 %v393
        %v545 = vunpack.c.h.b16 %v393
        %v546 = vunpack.c.l.b16 %v394
        %v547 = vunpack.c.h.b16 %v394
        %v548 = vunpack.c.l.b16 %v395
        %v549 = vunpack.c.h.b16 %v395
        %v550 = vunpack.c.l.b16 %v396
        %v551 = vunpack.c.h.b16 %v396
        %v552 = vunpack.c.l.b16 %v397
        %v553 = vunpack.c.h.b16 %v397
        %v554 = vpack.c.b16 %v532, %v530
        %v555 = vpack.c.b16 %v533, %v531
        %v556 = vpack.c.b16 %v536, %v534
        %v557 = vpack.c.b16 %v537, %v535
        %v558 = vpack.c.b16 %v540, %v538
        %v559 = vpack.c.b16 %v541, %v539
        %v560 = vpack.c.b16 %v544, %v542
        %v561 = vpack.c.b16 %v545, %v543
        %v562 = vpack.c.b16 %v548, %v546
        %v563 = vpack.c.b16 %v549, %v547
        %v564 = vpack.c.b16 %v552, %v550
        %v565 = vpack.c.b16 %v553, %v551
        %v579 = vsel %vm473, %v385, 0
        %581 = vmatprep.subr.bf16.mxu0 0
        %582 = vmatpush1.bf16.msra.mxu0 0
        %583 = vmatprep.subr.bf16.mxu0 0
        %584 = vmatpush1.bf16.msra.mxu0 0
        %585 = vmatprep.subr.bf16.mxu0 %v565
        %586 = vmatpush1.bf16.msra.mxu0 %v564
        %587 = vmatprep.subr.bf16.mxu0 %v563
        %588 = vmatpush1.bf16.msra.mxu0 %v562
        %589 = vmatprep.subr.bf16.mxu0 %v561
        %590 = vmatpush1.bf16.msra.mxu0 %v560
        %591 = vmatprep.subr.bf16.mxu0 %v559
        %592 = vmatpush1.bf16.msra.mxu0 %v558
        %593 = vmatprep.subr.bf16.mxu0 %v557
        %594 = vmatpush1.bf16.msra.mxu0 %v556
        %595 = vmatprep.subr.bf16.mxu0 %v555
        %596 = vmatpush1.bf16.msra.mxu0 %v554
        %597 = vmatprep.subr.bf16.mxu0 0
        %598 = vmatpush2.bf16.msra.mxu0 0
        %599 = vmatprep.subr.bf16.mxu0 0
        %600 = vmatpush2.bf16.msra.mxu0 0
        %601 = vmatprep.subr.bf16.mxu0 0
        %602 = vmatpush2.bf16.msra.mxu0 0
        %603 = vmatprep.subr.bf16.mxu0 0
        %604 = vmatpush2.bf16.msra.mxu0 0
        %605 = vmatprep.subr.bf16.mxu0 0
        %606 = vmatpush2.bf16.msra.mxu0 0
        %607 = vmatprep.subr.bf16.mxu0 0
        %608 = vmatpush2.bf16.msra.mxu0 0
        %609 = vmatprep.subr.bf16.mxu0 0
        %610 = vmatpush2.bf16.msra.mxu0 0
        %611 = vmatprep.subr.bf16.mxu0 0
        %612 = vmatpush2.bf16.msra.mxu0 0
        %613 = vmatprep.mubr.bf16.mxu0 0
        %614 = vmatmul.mubr.bf16.gmra.mxu0 %v579
        %v615 = vpop.f32.mrf.mxu0
        %v616 = vadd.f32 %v512, %v615
        %v617 = vpop.f32.mrf.mxu0
        %v618 = vadd.f32 %v514, %v617
        %v619 = vpop.f32.mrf.mxu0
        %v620 = vpop.f32.mrf.mxu0
        %621 = vdwg.mxu0
        %s622 = scalar_lea.vmem %s383, 8
        %v623 = vld [vmem:[%s622] sm:$0xf]
        %s624 = scalar_lea.vmem %s1, 192
        %v625 = vld [vmem:[%s624] sm:$0xff]
        %v626 = vld [vmem:[%s624 + $0x8] sm:$0xff]
        %v627 = vld [vmem:[%s624 + $0x10] sm:$0xff]
        %v628 = vld [vmem:[%s624 + $0x18] sm:$0xff]
        %v629 = vld [vmem:[%s624 + $0x20] sm:$0xff]
        %v630 = vld [vmem:[%s624 + $0x28] sm:$0xff]
        %v631 = vld [vmem:[%s624 + $0x30] sm:$0xff]
        %v632 = vld [vmem:[%s624 + $0x38] sm:$0xff]
        %v633 = vld [vmem:[%s624 + $0x40] sm:$0xff]
        %v634 = vld [vmem:[%s624 + $0x48] sm:$0xff]
        %v635 = vld [vmem:[%s624 + $0x50] sm:$0xff]
        %v636 = vld [vmem:[%s624 + $0x58] sm:$0xff]
        %v649 = vunpack.c.l.b16 %v625
        %v650 = vunpack.c.h.b16 %v625
        %v651 = vunpack.c.l.b16 %v626
        %v652 = vunpack.c.h.b16 %v626
        %v653 = vunpack.c.l.b16 %v627
        %v654 = vunpack.c.h.b16 %v627
        %v655 = vunpack.c.l.b16 %v628
        %v656 = vunpack.c.h.b16 %v628
        %v657 = vunpack.c.l.b16 %v629
        %v658 = vunpack.c.h.b16 %v629
        %v659 = vunpack.c.l.b16 %v630
        %v660 = vunpack.c.h.b16 %v630
        %v661 = vunpack.c.l.b16 %v631
        %v662 = vunpack.c.h.b16 %v631
        %v663 = vunpack.c.l.b16 %v632
        %v664 = vunpack.c.h.b16 %v632
        %v665 = vunpack.c.l.b16 %v633
        %v666 = vunpack.c.h.b16 %v633
        %v667 = vunpack.c.l.b16 %v634
        %v668 = vunpack.c.h.b16 %v634
        %v669 = vunpack.c.l.b16 %v635
        %v670 = vunpack.c.h.b16 %v635
        %v671 = vunpack.c.l.b16 %v636
        %v672 = vunpack.c.h.b16 %v636
        %v673 = vpack.c.b16 %v651, %v649
        %v674 = vpack.c.b16 %v652, %v650
        %v675 = vpack.c.b16 %v655, %v653
        %v676 = vpack.c.b16 %v656, %v654
        %v677 = vpack.c.b16 %v659, %v657
        %v678 = vpack.c.b16 %v660, %v658
        %v679 = vpack.c.b16 %v663, %v661
        %v680 = vpack.c.b16 %v664, %v662
        %v681 = vpack.c.b16 %v667, %v665
        %v682 = vpack.c.b16 %v668, %v666
        %v683 = vpack.c.b16 %v671, %v669
        %v684 = vpack.c.b16 %v672, %v670
        %v698 = vsel %vm473, %v623, 0
        %700 = vmatprep.subr.bf16.mxu0 0
        %701 = vmatpush1.bf16.msra.mxu0 0
        %702 = vmatprep.subr.bf16.mxu0 0
        %703 = vmatpush1.bf16.msra.mxu0 0
        %704 = vmatprep.subr.bf16.mxu0 %v684
        %705 = vmatpush1.bf16.msra.mxu0 %v683
        %706 = vmatprep.subr.bf16.mxu0 %v682
        %707 = vmatpush1.bf16.msra.mxu0 %v681
        %708 = vmatprep.subr.bf16.mxu0 %v680
        %709 = vmatpush1.bf16.msra.mxu0 %v679
        %710 = vmatprep.subr.bf16.mxu0 %v678
        %711 = vmatpush1.bf16.msra.mxu0 %v677
        %712 = vmatprep.subr.bf16.mxu0 %v676
        %713 = vmatpush1.bf16.msra.mxu0 %v675
        %714 = vmatprep.subr.bf16.mxu0 %v674
        %715 = vmatpush1.bf16.msra.mxu0 %v673
        %716 = vmatprep.subr.bf16.mxu0 0
        %717 = vmatpush2.bf16.msra.mxu0 0
        %718 = vmatprep.subr.bf16.mxu0 0
        %719 = vmatpush2.bf16.msra.mxu0 0
        %720 = vmatprep.subr.bf16.mxu0 0
        %721 = vmatpush2.bf16.msra.mxu0 0
        %722 = vmatprep.subr.bf16.mxu0 0
        %723 = vmatpush2.bf16.msra.mxu0 0
        %724 = vmatprep.subr.bf16.mxu0 0
        %725 = vmatpush2.bf16.msra.mxu0 0
        %726 = vmatprep.subr.bf16.mxu0 0
        %727 = vmatpush2.bf16.msra.mxu0 0
        %728 = vmatprep.subr.bf16.mxu0 0
        %729 = vmatpush2.bf16.msra.mxu0 0
        %730 = vmatprep.subr.bf16.mxu0 0
        %731 = vmatpush2.bf16.msra.mxu0 0
        %732 = vmatprep.mubr.bf16.mxu0 0
        %733 = vmatmul.mubr.bf16.gmra.mxu0 %v698
        %v734 = vpop.f32.mrf.mxu0
        %v735 = vadd.f32 0.0, %v734
        %v736 = vpop.f32.mrf.mxu0
        %v737 = vadd.f32 0.0, %v736
        %v738 = vpop.f32.mrf.mxu0
        %v739 = vpop.f32.mrf.mxu0
        %740 = vdwg.mxu0
        %v741 = vadd.f32 %v616, %v735
        %v742 = vadd.f32 %v618, %v737
        %s743 = scalar_lea.vmem %s383, 12
        %v744 = vld [vmem:[%s743] sm:$0xf]
        %s745 = scalar_lea.vmem %s1, 288
        %v746 = vld [vmem:[%s745] sm:$0xff]
        %v747 = vld [vmem:[%s745 + $0x8] sm:$0xff]
        %v748 = vld [vmem:[%s745 + $0x10] sm:$0xff]
        %v749 = vld [vmem:[%s745 + $0x18] sm:$0xff]
        %v750 = vld [vmem:[%s745 + $0x20] sm:$0xff]
        %v751 = vld [vmem:[%s745 + $0x28] sm:$0xff]
        %v752 = vld [vmem:[%s745 + $0x30] sm:$0xff]
        %v753 = vld [vmem:[%s745 + $0x38] sm:$0xff]
        %v754 = vld [vmem:[%s745 + $0x40] sm:$0xff]
        %v755 = vld [vmem:[%s745 + $0x48] sm:$0xff]
        %v756 = vld [vmem:[%s745 + $0x50] sm:$0xff]
        %v757 = vld [vmem:[%s745 + $0x58] sm:$0xff]
        %v770 = vunpack.c.l.b16 %v746
        %v771 = vunpack.c.h.b16 %v746
        %v772 = vunpack.c.l.b16 %v747
        %v773 = vunpack.c.h.b16 %v747
        %v774 = vunpack.c.l.b16 %v748
        %v775 = vunpack.c.h.b16 %v748
        %v776 = vunpack.c.l.b16 %v749
        %v777 = vunpack.c.h.b16 %v749
        %v778 = vunpack.c.l.b16 %v750
        %v779 = vunpack.c.h.b16 %v750
        %v780 = vunpack.c.l.b16 %v751
        %v781 = vunpack.c.h.b16 %v751
        %v782 = vunpack.c.l.b16 %v752
        %v783 = vunpack.c.h.b16 %v752
        %v784 = vunpack.c.l.b16 %v753
        %v785 = vunpack.c.h.b16 %v753
        %v786 = vunpack.c.l.b16 %v754
        %v787 = vunpack.c.h.b16 %v754
        %v788 = vunpack.c.l.b16 %v755
        %v789 = vunpack.c.h.b16 %v755
        %v790 = vunpack.c.l.b16 %v756
        %v791 = vunpack.c.h.b16 %v756
        %v792 = vunpack.c.l.b16 %v757
        %v793 = vunpack.c.h.b16 %v757
        %v794 = vpack.c.b16 %v772, %v770
        %v795 = vpack.c.b16 %v773, %v771
        %v796 = vpack.c.b16 %v776, %v774
        %v797 = vpack.c.b16 %v777, %v775
        %v798 = vpack.c.b16 %v780, %v778
        %v799 = vpack.c.b16 %v781, %v779
        %v800 = vpack.c.b16 %v784, %v782
        %v801 = vpack.c.b16 %v785, %v783
        %v802 = vpack.c.b16 %v788, %v786
        %v803 = vpack.c.b16 %v789, %v787
        %v804 = vpack.c.b16 %v792, %v790
        %v805 = vpack.c.b16 %v793, %v791
        %v819 = vsel %vm473, %v744, 0
        %821 = vmatprep.subr.bf16.mxu0 0
        %822 = vmatpush1.bf16.msra.mxu0 0
        %823 = vmatprep.subr.bf16.mxu0 0
        %824 = vmatpush1.bf16.msra.mxu0 0
        %825 = vmatprep.subr.bf16.mxu0 %v805
        %826 = vmatpush1.bf16.msra.mxu0 %v804
        %827 = vmatprep.subr.bf16.mxu0 %v803
        %828 = vmatpush1.bf16.msra.mxu0 %v802
        %829 = vmatprep.subr.bf16.mxu0 %v801
        %830 = vmatpush1.bf16.msra.mxu0 %v800
        %831 = vmatprep.subr.bf16.mxu0 %v799
        %832 = vmatpush1.bf16.msra.mxu0 %v798
        %833 = vmatprep.subr.bf16.mxu0 %v797
        %834 = vmatpush1.bf16.msra.mxu0 %v796
        %835 = vmatprep.subr.bf16.mxu0 %v795
        %836 = vmatpush1.bf16.msra.mxu0 %v794
        %837 = vmatprep.subr.bf16.mxu0 0
        %838 = vmatpush2.bf16.msra.mxu0 0
        %839 = vmatprep.subr.bf16.mxu0 0
        %840 = vmatpush2.bf16.msra.mxu0 0
        %841 = vmatprep.subr.bf16.mxu0 0
        %842 = vmatpush2.bf16.msra.mxu0 0
        %843 = vmatprep.subr.bf16.mxu0 0
        %844 = vmatpush2.bf16.msra.mxu0 0
        %845 = vmatprep.subr.bf16.mxu0 0
        %846 = vmatpush2.bf16.msra.mxu0 0
        %847 = vmatprep.subr.bf16.mxu0 0
        %848 = vmatpush2.bf16.msra.mxu0 0
        %849 = vmatprep.subr.bf16.mxu0 0
        %850 = vmatpush2.bf16.msra.mxu0 0
        %851 = vmatprep.subr.bf16.mxu0 0
        %852 = vmatpush2.bf16.msra.mxu0 0
        %853 = vmatprep.mubr.bf16.mxu0 0
        %854 = vmatmul.mubr.bf16.gmra.mxu0 %v819
        %v855 = vpop.f32.mrf.mxu0
        %v856 = vadd.f32 0.0, %v855
        %v857 = vpop.f32.mrf.mxu0
        %v858 = vadd.f32 0.0, %v857
        %v859 = vpop.f32.mrf.mxu0
        %v860 = vpop.f32.mrf.mxu0
        %861 = vdwg.mxu0
        %v862 = vadd.f32 %v741, %v856
        %v863 = vadd.f32 %v742, %v858
        %s864 = scalar_lea.vmem %s1, 384
        %v865 = vld [vmem:[%s864] sm:$0xff]
        %v866 = vld [vmem:[%s864 + $0x8] sm:$0xff]
        %v867 = vld [vmem:[%s864 + $0x10] sm:$0xff]
        %v868 = vld [vmem:[%s864 + $0x18] sm:$0xff]
        %v869 = vld [vmem:[%s864 + $0x20] sm:$0xff]
        %v870 = vld [vmem:[%s864 + $0x28] sm:$0xff]
        %v871 = vld [vmem:[%s864 + $0x30] sm:$0xff]
        %v872 = vld [vmem:[%s864 + $0x38] sm:$0xff]
        %v873 = vld [vmem:[%s864 + $0x40] sm:$0xff]
        %v874 = vld [vmem:[%s864 + $0x48] sm:$0xff]
        %v875 = vld [vmem:[%s864 + $0x50] sm:$0xff]
        %v876 = vld [vmem:[%s864 + $0x58] sm:$0xff]
        %v878 = vunpack.c.l.b16 %v385
        %v879 = vpack.c.b16 %v878, %v878
        %v881 = vshrl.u32 %v879, 16
        %v883 = vshll.u32 %v879, 16
        %v885 = vrot.slane %v883, 1
        %v886 = vor.u32 %v881, %v885
        %v899 = vunpack.c.l.b16 %v865
        %v900 = vunpack.c.h.b16 %v865
        %v901 = vunpack.c.l.b16 %v866
        %v902 = vunpack.c.h.b16 %v866
        %v903 = vunpack.c.l.b16 %v867
        %v904 = vunpack.c.h.b16 %v867
        %v905 = vunpack.c.l.b16 %v868
        %v906 = vunpack.c.h.b16 %v868
        %v907 = vunpack.c.l.b16 %v869
        %v908 = vunpack.c.h.b16 %v869
        %v909 = vunpack.c.l.b16 %v870
        %v910 = vunpack.c.h.b16 %v870
        %v911 = vunpack.c.l.b16 %v871
        %v912 = vunpack.c.h.b16 %v871
        %v913 = vunpack.c.l.b16 %v872
        %v914 = vunpack.c.h.b16 %v872
        %v915 = vunpack.c.l.b16 %v873
        %v916 = vunpack.c.h.b16 %v873
        %v917 = vunpack.c.l.b16 %v874
        %v918 = vunpack.c.h.b16 %v874
        %v919 = vunpack.c.l.b16 %v875
        %v920 = vunpack.c.h.b16 %v875
        %v921 = vunpack.c.l.b16 %v876
        %v922 = vunpack.c.h.b16 %v876
        %v923 = vpack.c.b16 %v901, %v899
        %v924 = vpack.c.b16 %v902, %v900
        %v925 = vpack.c.b16 %v905, %v903
        %v926 = vpack.c.b16 %v906, %v904
        %v927 = vpack.c.b16 %v909, %v907
        %v928 = vpack.c.b16 %v910, %v908
        %v929 = vpack.c.b16 %v913, %v911
        %v930 = vpack.c.b16 %v914, %v912
        %v931 = vpack.c.b16 %v917, %v915
        %v932 = vpack.c.b16 %v918, %v916
        %v933 = vpack.c.b16 %v921, %v919
        %v934 = vpack.c.b16 %v922, %v920
        %v948 = vsel %vm473, %v886, 0
        %950 = vmatprep.subr.bf16.mxu0 0
        %951 = vmatpush1.bf16.msra.mxu0 0
        %952 = vmatprep.subr.bf16.mxu0 0
        %953 = vmatpush1.bf16.msra.mxu0 0
        %954 = vmatprep.subr.bf16.mxu0 %v934
        %955 = vmatpush1.bf16.msra.mxu0 %v933
        %956 = vmatprep.subr.bf16.mxu0 %v932
        %957 = vmatpush1.bf16.msra.mxu0 %v931
        %958 = vmatprep.subr.bf16.mxu0 %v930
        %959 = vmatpush1.bf16.msra.mxu0 %v929
        %960 = vmatprep.subr.bf16.mxu0 %v928
        %961 = vmatpush1.bf16.msra.mxu0 %v927
        %962 = vmatprep.subr.bf16.mxu0 %v926
        %963 = vmatpush1.bf16.msra.mxu0 %v925
        %964 = vmatprep.subr.bf16.mxu0 %v924
        %965 = vmatpush1.bf16.msra.mxu0 %v923
        %966 = vmatprep.subr.bf16.mxu0 0
        %967 = vmatpush2.bf16.msra.mxu0 0
        %968 = vmatprep.subr.bf16.mxu0 0
        %969 = vmatpush2.bf16.msra.mxu0 0
        %970 = vmatprep.subr.bf16.mxu0 0
        %971 = vmatpush2.bf16.msra.mxu0 0
        %972 = vmatprep.subr.bf16.mxu0 0
        %973 = vmatpush2.bf16.msra.mxu0 0
        %974 = vmatprep.subr.bf16.mxu0 0
        %975 = vmatpush2.bf16.msra.mxu0 0
        %976 = vmatprep.subr.bf16.mxu0 0
        %977 = vmatpush2.bf16.msra.mxu0 0
        %978 = vmatprep.subr.bf16.mxu0 0
        %979 = vmatpush2.bf16.msra.mxu0 0
        %980 = vmatprep.subr.bf16.mxu0 0
        %981 = vmatpush2.bf16.msra.mxu0 0
        %982 = vmatprep.mubr.bf16.mxu0 0
        %983 = vmatmul.mubr.bf16.gmra.mxu0 %v948
        %v984 = vpop.f32.mrf.mxu0
        %v985 = vadd.f32 0.0, %v984
        %v986 = vpop.f32.mrf.mxu0
        %v987 = vadd.f32 0.0, %v986
        %v988 = vpop.f32.mrf.mxu0
        %v989 = vpop.f32.mrf.mxu0
        %990 = vdwg.mxu0
        %v991 = vadd.f32 %v862, %v985
        %v992 = vadd.f32 %v863, %v987
        %993 = vmatprep.subr.bf16.mxu0 0
        %994 = vmatpush1.bf16.msra.mxu0 0
        %995 = vmatprep.subr.bf16.mxu0 0
        %996 = vmatpush1.bf16.msra.mxu0 0
        %997 = vmatprep.subr.bf16.mxu0 %v460
        %998 = vmatpush1.bf16.msra.mxu0 %v459
        %999 = vmatprep.subr.bf16.mxu0 %v458
        %1000 = vmatpush1.bf16.msra.mxu0 %v457
        %1001 = vmatprep.subr.bf16.mxu0 %v456
        %1002 = vmatpush1.bf16.msra.mxu0 %v455
        %1003 = vmatprep.subr.bf16.mxu0 %v454
        %1004 = vmatpush1.bf16.msra.mxu0 %v453
        %1005 = vmatprep.subr.bf16.mxu0 %v452
        %1006 = vmatpush1.bf16.msra.mxu0 %v451
        %1007 = vmatprep.subr.bf16.mxu0 %v450
        %1008 = vmatpush1.bf16.msra.mxu0 %v449
        %1009 = vmatprep.subr.bf16.mxu0 0
        %1010 = vmatpush2.bf16.msra.mxu0 0
        %1011 = vmatprep.subr.bf16.mxu0 0
        %1012 = vmatpush2.bf16.msra.mxu0 0
        %1013 = vmatprep.subr.bf16.mxu0 0
        %1014 = vmatpush2.bf16.msra.mxu0 0
        %1015 = vmatprep.subr.bf16.mxu0 0
        %1016 = vmatpush2.bf16.msra.mxu0 0
        %1017 = vmatprep.subr.bf16.mxu0 0
        %1018 = vmatpush2.bf16.msra.mxu0 0
        %1019 = vmatprep.subr.bf16.mxu0 0
        %1020 = vmatpush2.bf16.msra.mxu0 0
        %1021 = vmatprep.subr.bf16.mxu0 0
        %1022 = vmatpush2.bf16.msra.mxu0 0
        %1023 = vmatprep.subr.bf16.mxu0 0
        %1024 = vmatpush2.bf16.msra.mxu0 0
        %1025 = vmatprep.mubr.bf16.mxu0 0
        %1026 = vmatmul.mubr.bf16.gmra.mxu0 %v698
        %v1027 = vpop.f32.mrf.mxu0
        %v1028 = vadd.f32 0.0, %v1027
        %v1029 = vpop.f32.mrf.mxu0
        %v1030 = vadd.f32 0.0, %v1029
        %v1031 = vpop.f32.mrf.mxu0
        %v1032 = vpop.f32.mrf.mxu0
        %1033 = vdwg.mxu0
        %1034 = vmatprep.subr.bf16.mxu0 0
        %1035 = vmatpush1.bf16.msra.mxu0 0
        %1036 = vmatprep.subr.bf16.mxu0 0
        %1037 = vmatpush1.bf16.msra.mxu0 0
        %1038 = vmatprep.subr.bf16.mxu0 %v565
        %1039 = vmatpush1.bf16.msra.mxu0 %v564
        %1040 = vmatprep.subr.bf16.mxu0 %v563
        %1041 = vmatpush1.bf16.msra.mxu0 %v562
        %1042 = vmatprep.subr.bf16.mxu0 %v561
        %1043 = vmatpush1.bf16.msra.mxu0 %v560
        %1044 = vmatprep.subr.bf16.mxu0 %v559
        %1045 = vmatpush1.bf16.msra.mxu0 %v558
        %1046 = vmatprep.subr.bf16.mxu0 %v557
        %1047 = vmatpush1.bf16.msra.mxu0 %v556
        %1048 = vmatprep.subr.bf16.mxu0 %v555
        %1049 = vmatpush1.bf16.msra.mxu0 %v554
        %1050 = vmatprep.subr.bf16.mxu0 0
        %1051 = vmatpush2.bf16.msra.mxu0 0
        %1052 = vmatprep.subr.bf16.mxu0 0
        %1053 = vmatpush2.bf16.msra.mxu0 0
        %1054 = vmatprep.subr.bf16.mxu0 0
        %1055 = vmatpush2.bf16.msra.mxu0 0
        %1056 = vmatprep.subr.bf16.mxu0 0
        %1057 = vmatpush2.bf16.msra.mxu0 0
        %1058 = vmatprep.subr.bf16.mxu0 0
        %1059 = vmatpush2.bf16.msra.mxu0 0
        %1060 = vmatprep.subr.bf16.mxu0 0
        %1061 = vmatpush2.bf16.msra.mxu0 0
        %1062 = vmatprep.subr.bf16.mxu0 0
        %1063 = vmatpush2.bf16.msra.mxu0 0
        %1064 = vmatprep.subr.bf16.mxu0 0
        %1065 = vmatpush2.bf16.msra.mxu0 0
        %1066 = vmatprep.mubr.bf16.mxu0 0
        %1067 = vmatmul.mubr.bf16.gmra.mxu0 %v475
        %v1068 = vpop.f32.mrf.mxu0
        %v1069 = vadd.f32 %v1028, %v1068
        %v1070 = vpop.f32.mrf.mxu0
        %v1071 = vadd.f32 %v1030, %v1070
        %v1072 = vpop.f32.mrf.mxu0
        %v1073 = vpop.f32.mrf.mxu0
        %1074 = vdwg.mxu0
        %1075 = vmatprep.subr.bf16.mxu0 0
        %1076 = vmatpush1.bf16.msra.mxu0 0
        %1077 = vmatprep.subr.bf16.mxu0 0
        %1078 = vmatpush1.bf16.msra.mxu0 0
        %1079 = vmatprep.subr.bf16.mxu0 %v684
        %1080 = vmatpush1.bf16.msra.mxu0 %v683
        %1081 = vmatprep.subr.bf16.mxu0 %v682
        %1082 = vmatpush1.bf16.msra.mxu0 %v681
        %1083 = vmatprep.subr.bf16.mxu0 %v680
        %1084 = vmatpush1.bf16.msra.mxu0 %v679
        %1085 = vmatprep.subr.bf16.mxu0 %v678
        %1086 = vmatpush1.bf16.msra.mxu0 %v677
        %1087 = vmatprep.subr.bf16.mxu0 %v676
        %1088 = vmatpush1.bf16.msra.mxu0 %v675
        %1089 = vmatprep.subr.bf16.mxu0 %v674
        %1090 = vmatpush1.bf16.msra.mxu0 %v673
        %1091 = vmatprep.subr.bf16.mxu0 0
        %1092 = vmatpush2.bf16.msra.mxu0 0
        %1093 = vmatprep.subr.bf16.mxu0 0
        %1094 = vmatpush2.bf16.msra.mxu0 0
        %1095 = vmatprep.subr.bf16.mxu0 0
        %1096 = vmatpush2.bf16.msra.mxu0 0
        %1097 = vmatprep.subr.bf16.mxu0 0
        %1098 = vmatpush2.bf16.msra.mxu0 0
        %1099 = vmatprep.subr.bf16.mxu0 0
        %1100 = vmatpush2.bf16.msra.mxu0 0
        %1101 = vmatprep.subr.bf16.mxu0 0
        %1102 = vmatpush2.bf16.msra.mxu0 0
        %1103 = vmatprep.subr.bf16.mxu0 0
        %1104 = vmatpush2.bf16.msra.mxu0 0
        %1105 = vmatprep.subr.bf16.mxu0 0
        %1106 = vmatpush2.bf16.msra.mxu0 0
        %1107 = vmatprep.mubr.bf16.mxu0 0
        %1108 = vmatmul.mubr.bf16.gmra.mxu0 %v819
        %v1109 = vpop.f32.mrf.mxu0
        %v1110 = vadd.f32 0.0, %v1109
        %v1111 = vpop.f32.mrf.mxu0
        %v1112 = vadd.f32 0.0, %v1111
        %v1113 = vpop.f32.mrf.mxu0
        %v1114 = vpop.f32.mrf.mxu0
        %1115 = vdwg.mxu0
        %v1116 = vadd.f32 %v1069, %v1110
        %v1117 = vadd.f32 %v1071, %v1112
        %1118 = vmatprep.subr.bf16.mxu0 0
        %1119 = vmatpush1.bf16.msra.mxu0 0
        %1120 = vmatprep.subr.bf16.mxu0 0
        %1121 = vmatpush1.bf16.msra.mxu0 0
        %1122 = vmatprep.subr.bf16.mxu0 %v805
        %1123 = vmatpush1.bf16.msra.mxu0 %v804
        %1124 = vmatprep.subr.bf16.mxu0 %v803
        %1125 = vmatpush1.bf16.msra.mxu0 %v802
        %1126 = vmatprep.subr.bf16.mxu0 %v801
        %1127 = vmatpush1.bf16.msra.mxu0 %v800
        %1128 = vmatprep.subr.bf16.mxu0 %v799
        %1129 = vmatpush1.bf16.msra.mxu0 %v798
        %1130 = vmatprep.subr.bf16.mxu0 %v797
        %1131 = vmatpush1.bf16.msra.mxu0 %v796
        %1132 = vmatprep.subr.bf16.mxu0 %v795
        %1133 = vmatpush1.bf16.msra.mxu0 %v794
        %1134 = vmatprep.subr.bf16.mxu0 0
        %1135 = vmatpush2.bf16.msra.mxu0 0
        %1136 = vmatprep.subr.bf16.mxu0 0
        %1137 = vmatpush2.bf16.msra.mxu0 0
        %1138 = vmatprep.subr.bf16.mxu0 0
        %1139 = vmatpush2.bf16.msra.mxu0 0
        %1140 = vmatprep.subr.bf16.mxu0 0
        %1141 = vmatpush2.bf16.msra.mxu0 0
        %1142 = vmatprep.subr.bf16.mxu0 0
        %1143 = vmatpush2.bf16.msra.mxu0 0
        %1144 = vmatprep.subr.bf16.mxu0 0
        %1145 = vmatpush2.bf16.msra.mxu0 0
        %1146 = vmatprep.subr.bf16.mxu0 0
        %1147 = vmatpush2.bf16.msra.mxu0 0
        %1148 = vmatprep.subr.bf16.mxu0 0
        %1149 = vmatpush2.bf16.msra.mxu0 0
        %1150 = vmatprep.mubr.bf16.mxu0 0
        %1151 = vmatmul.mubr.bf16.gmra.mxu0 %v948
        %v1152 = vpop.f32.mrf.mxu0
        %v1153 = vadd.f32 0.0, %v1152
        %v1154 = vpop.f32.mrf.mxu0
        %v1155 = vadd.f32 0.0, %v1154
        %v1156 = vpop.f32.mrf.mxu0
        %v1157 = vpop.f32.mrf.mxu0
        %1158 = vdwg.mxu0
        %v1159 = vadd.f32 %v1116, %v1153
        %v1160 = vadd.f32 %v1117, %v1155
        %v1162 = vunpack.c.l.b16 %v399
        %v1163 = vpack.c.b16 %v1162, %v1162
        %v1165 = vshrl.u32 %v1163, 16
        %v1167 = vshll.u32 %v1163, 16
        %v1169 = vrot.slane %v1167, 1
        %v1170 = vor.u32 %v1165, %v1169
        %v1172 = vsel %vm473, %v1170, 0
        %1174 = vmatprep.subr.bf16.mxu0 0
        %1175 = vmatpush1.bf16.msra.mxu0 0
        %1176 = vmatprep.subr.bf16.mxu0 0
        %1177 = vmatpush1.bf16.msra.mxu0 0
        %1178 = vmatprep.subr.bf16.mxu0 %v934
        %1179 = vmatpush1.bf16.msra.mxu0 %v933
        %1180 = vmatprep.subr.bf16.mxu0 %v932
        %1181 = vmatpush1.bf16.msra.mxu0 %v931
        %1182 = vmatprep.subr.bf16.mxu0 %v930
        %1183 = vmatpush1.bf16.msra.mxu0 %v929
        %1184 = vmatprep.subr.bf16.mxu0 %v928
        %1185 = vmatpush1.bf16.msra.mxu0 %v927
        %1186 = vmatprep.subr.bf16.mxu0 %v926
        %1187 = vmatpush1.bf16.msra.mxu0 %v925
        %1188 = vmatprep.subr.bf16.mxu0 %v924
        %1189 = vmatpush1.bf16.msra.mxu0 %v923
        %1190 = vmatprep.subr.bf16.mxu0 0
        %1191 = vmatpush2.bf16.msra.mxu0 0
        %1192 = vmatprep.subr.bf16.mxu0 0
        %1193 = vmatpush2.bf16.msra.mxu0 0
        %1194 = vmatprep.subr.bf16.mxu0 0
        %1195 = vmatpush2.bf16.msra.mxu0 0
        %1196 = vmatprep.subr.bf16.mxu0 0
        %1197 = vmatpush2.bf16.msra.mxu0 0
        %1198 = vmatprep.subr.bf16.mxu0 0
        %1199 = vmatpush2.bf16.msra.mxu0 0
        %1200 = vmatprep.subr.bf16.mxu0 0
        %1201 = vmatpush2.bf16.msra.mxu0 0
        %1202 = vmatprep.subr.bf16.mxu0 0
        %1203 = vmatpush2.bf16.msra.mxu0 0
        %1204 = vmatprep.subr.bf16.mxu0 0
        %1205 = vmatpush2.bf16.msra.mxu0 0
        %1206 = vmatprep.mubr.bf16.mxu0 0
        %1207 = vmatmul.mubr.bf16.gmra.mxu0 %v1172
        %v1208 = vpop.f32.mrf.mxu0
        %v1209 = vadd.f32 0.0, %v1208
        %v1210 = vpop.f32.mrf.mxu0
        %v1211 = vadd.f32 0.0, %v1210
        %v1212 = vpop.f32.mrf.mxu0
        %v1213 = vpop.f32.mrf.mxu0
        %1214 = vdwg.mxu0
        %v1215 = vadd.f32 %v1159, %v1209
        %v1216 = vadd.f32 %v1160, %v1211
        %1217 = vmatprep.subr.bf16.mxu0 0
        %1218 = vmatpush1.bf16.msra.mxu0 0
        %1219 = vmatprep.subr.bf16.mxu0 0
        %1220 = vmatpush1.bf16.msra.mxu0 0
        %1221 = vmatprep.subr.bf16.mxu0 %v460
        %1222 = vmatpush1.bf16.msra.mxu0 %v459
        %1223 = vmatprep.subr.bf16.mxu0 %v458
        %1224 = vmatpush1.bf16.msra.mxu0 %v457
        %1225 = vmatprep.subr.bf16.mxu0 %v456
        %1226 = vmatpush1.bf16.msra.mxu0 %v455
        %1227 = vmatprep.subr.bf16.mxu0 %v454
        %1228 = vmatpush1.bf16.msra.mxu0 %v453
        %1229 = vmatprep.subr.bf16.mxu0 %v452
        %1230 = vmatpush1.bf16.msra.mxu0 %v451
        %1231 = vmatprep.subr.bf16.mxu0 %v450
        %1232 = vmatpush1.bf16.msra.mxu0 %v449
        %1233 = vmatprep.subr.bf16.mxu0 0
        %1234 = vmatpush2.bf16.msra.mxu0 0
        %1235 = vmatprep.subr.bf16.mxu0 0
        %1236 = vmatpush2.bf16.msra.mxu0 0
        %1237 = vmatprep.subr.bf16.mxu0 0
        %1238 = vmatpush2.bf16.msra.mxu0 0
        %1239 = vmatprep.subr.bf16.mxu0 0
        %1240 = vmatpush2.bf16.msra.mxu0 0
        %1241 = vmatprep.subr.bf16.mxu0 0
        %1242 = vmatpush2.bf16.msra.mxu0 0
        %1243 = vmatprep.subr.bf16.mxu0 0
        %1244 = vmatpush2.bf16.msra.mxu0 0
        %1245 = vmatprep.subr.bf16.mxu0 0
        %1246 = vmatpush2.bf16.msra.mxu0 0
        %1247 = vmatprep.subr.bf16.mxu0 0
        %1248 = vmatpush2.bf16.msra.mxu0 0
        %1249 = vmatprep.mubr.bf16.mxu0 0
        %1250 = vmatmul.mubr.bf16.gmra.mxu0 %v819
        %v1251 = vpop.f32.mrf.mxu0
        %v1252 = vadd.f32 0.0, %v1251
        %v1253 = vpop.f32.mrf.mxu0
        %v1254 = vadd.f32 0.0, %v1253
        %v1255 = vpop.f32.mrf.mxu0
        %v1256 = vpop.f32.mrf.mxu0
        %1257 = vdwg.mxu0
        %1258 = vmatprep.subr.bf16.mxu0 0
        %1259 = vmatpush1.bf16.msra.mxu0 0
        %1260 = vmatprep.subr.bf16.mxu0 0
        %1261 = vmatpush1.bf16.msra.mxu0 0
        %1262 = vmatprep.subr.bf16.mxu0 %v565
        %1263 = vmatpush1.bf16.msra.mxu0 %v564
        %1264 = vmatprep.subr.bf16.mxu0 %v563
        %1265 = vmatpush1.bf16.msra.mxu0 %v562
        %1266 = vmatprep.subr.bf16.mxu0 %v561
        %1267 = vmatpush1.bf16.msra.mxu0 %v560
        %1268 = vmatprep.subr.bf16.mxu0 %v559
        %1269 = vmatpush1.bf16.msra.mxu0 %v558
        %1270 = vmatprep.subr.bf16.mxu0 %v557
        %1271 = vmatpush1.bf16.msra.mxu0 %v556
        %1272 = vmatprep.subr.bf16.mxu0 %v555
        %1273 = vmatpush1.bf16.msra.mxu0 %v554
        %1274 = vmatprep.subr.bf16.mxu0 0
        %1275 = vmatpush2.bf16.msra.mxu0 0
        %1276 = vmatprep.subr.bf16.mxu0 0
        %1277 = vmatpush2.bf16.msra.mxu0 0
        %1278 = vmatprep.subr.bf16.mxu0 0
        %1279 = vmatpush2.bf16.msra.mxu0 0
        %1280 = vmatprep.subr.bf16.mxu0 0
        %1281 = vmatpush2.bf16.msra.mxu0 0
        %1282 = vmatprep.subr.bf16.mxu0 0
        %1283 = vmatpush2.bf16.msra.mxu0 0
        %1284 = vmatprep.subr.bf16.mxu0 0
        %1285 = vmatpush2.bf16.msra.mxu0 0
        %1286 = vmatprep.subr.bf16.mxu0 0
        %1287 = vmatpush2.bf16.msra.mxu0 0
        %1288 = vmatprep.subr.bf16.mxu0 0
        %1289 = vmatpush2.bf16.msra.mxu0 0
        %1290 = vmatprep.mubr.bf16.mxu0 0
        %1291 = vmatmul.mubr.bf16.gmra.mxu0 %v698
        %v1292 = vpop.f32.mrf.mxu0
        %v1293 = vadd.f32 %v1252, %v1292
        %v1294 = vpop.f32.mrf.mxu0
        %v1295 = vadd.f32 %v1254, %v1294
        %v1296 = vpop.f32.mrf.mxu0
        %v1297 = vpop.f32.mrf.mxu0
        %1298 = vdwg.mxu0
        %1299 = vmatprep.subr.bf16.mxu0 0
        %1300 = vmatpush1.bf16.msra.mxu0 0
        %1301 = vmatprep.subr.bf16.mxu0 0
        %1302 = vmatpush1.bf16.msra.mxu0 0
        %1303 = vmatprep.subr.bf16.mxu0 %v684
        %1304 = vmatpush1.bf16.msra.mxu0 %v683
        %1305 = vmatprep.subr.bf16.mxu0 %v682
        %1306 = vmatpush1.bf16.msra.mxu0 %v681
        %1307 = vmatprep.subr.bf16.mxu0 %v680
        %1308 = vmatpush1.bf16.msra.mxu0 %v679
        %1309 = vmatprep.subr.bf16.mxu0 %v678
        %1310 = vmatpush1.bf16.msra.mxu0 %v677
        %1311 = vmatprep.subr.bf16.mxu0 %v676
        %1312 = vmatpush1.bf16.msra.mxu0 %v675
        %1313 = vmatprep.subr.bf16.mxu0 %v674
        %1314 = vmatpush1.bf16.msra.mxu0 %v673
        %1315 = vmatprep.subr.bf16.mxu0 0
        %1316 = vmatpush2.bf16.msra.mxu0 0
        %1317 = vmatprep.subr.bf16.mxu0 0
        %1318 = vmatpush2.bf16.msra.mxu0 0
        %1319 = vmatprep.subr.bf16.mxu0 0
        %1320 = vmatpush2.bf16.msra.mxu0 0
        %1321 = vmatprep.subr.bf16.mxu0 0
        %1322 = vmatpush2.bf16.msra.mxu0 0
        %1323 = vmatprep.subr.bf16.mxu0 0
        %1324 = vmatpush2.bf16.msra.mxu0 0
        %1325 = vmatprep.subr.bf16.mxu0 0
        %1326 = vmatpush2.bf16.msra.mxu0 0
        %1327 = vmatprep.subr.bf16.mxu0 0
        %1328 = vmatpush2.bf16.msra.mxu0 0
        %1329 = vmatprep.subr.bf16.mxu0 0
        %1330 = vmatpush2.bf16.msra.mxu0 0
        %1331 = vmatprep.mubr.bf16.mxu0 0
        %1332 = vmatmul.mubr.bf16.gmra.mxu0 %v948
        %v1333 = vpop.f32.mrf.mxu0
        %v1334 = vadd.f32 0.0, %v1333
        %v1335 = vpop.f32.mrf.mxu0
        %v1336 = vadd.f32 0.0, %v1335
        %v1337 = vpop.f32.mrf.mxu0
        %v1338 = vpop.f32.mrf.mxu0
        %1339 = vdwg.mxu0
        %v1340 = vadd.f32 %v1293, %v1334
        %v1341 = vadd.f32 %v1295, %v1336
        %1342 = vmatprep.subr.bf16.mxu0 0
        %1343 = vmatpush1.bf16.msra.mxu0 0
        %1344 = vmatprep.subr.bf16.mxu0 0
        %1345 = vmatpush1.bf16.msra.mxu0 0
        %1346 = vmatprep.subr.bf16.mxu0 %v805
        %1347 = vmatpush1.bf16.msra.mxu0 %v804
        %1348 = vmatprep.subr.bf16.mxu0 %v803
        %1349 = vmatpush1.bf16.msra.mxu0 %v802
        %1350 = vmatprep.subr.bf16.mxu0 %v801
        %1351 = vmatpush1.bf16.msra.mxu0 %v800
        %1352 = vmatprep.subr.bf16.mxu0 %v799
        %1353 = vmatpush1.bf16.msra.mxu0 %v798
        %1354 = vmatprep.subr.bf16.mxu0 %v797
        %1355 = vmatpush1.bf16.msra.mxu0 %v796
        %1356 = vmatprep.subr.bf16.mxu0 %v795
        %1357 = vmatpush1.bf16.msra.mxu0 %v794
        %1358 = vmatprep.subr.bf16.mxu0 0
        %1359 = vmatpush2.bf16.msra.mxu0 0
        %1360 = vmatprep.subr.bf16.mxu0 0
        %1361 = vmatpush2.bf16.msra.mxu0 0
        %1362 = vmatprep.subr.bf16.mxu0 0
        %1363 = vmatpush2.bf16.msra.mxu0 0
        %1364 = vmatprep.subr.bf16.mxu0 0
        %1365 = vmatpush2.bf16.msra.mxu0 0
        %1366 = vmatprep.subr.bf16.mxu0 0
        %1367 = vmatpush2.bf16.msra.mxu0 0
        %1368 = vmatprep.subr.bf16.mxu0 0
        %1369 = vmatpush2.bf16.msra.mxu0 0
        %1370 = vmatprep.subr.bf16.mxu0 0
        %1371 = vmatpush2.bf16.msra.mxu0 0
        %1372 = vmatprep.subr.bf16.mxu0 0
        %1373 = vmatpush2.bf16.msra.mxu0 0
        %1374 = vmatprep.mubr.bf16.mxu0 0
        %1375 = vmatmul.mubr.bf16.gmra.mxu0 %v1172
        %v1376 = vpop.f32.mrf.mxu0
        %v1377 = vadd.f32 0.0, %v1376
        %v1378 = vpop.f32.mrf.mxu0
        %v1379 = vadd.f32 0.0, %v1378
        %v1380 = vpop.f32.mrf.mxu0
        %v1381 = vpop.f32.mrf.mxu0
        %1382 = vdwg.mxu0
        %v1383 = vadd.f32 %v1340, %v1377
        %v1384 = vadd.f32 %v1341, %v1379
        %v1386 = vunpack.c.l.b16 %v623
        %v1387 = vpack.c.b16 %v1386, %v1386
        %v1389 = vshrl.u32 %v1387, 16
        %v1391 = vshll.u32 %v1387, 16
        %v1393 = vrot.slane %v1391, 1
        %v1394 = vor.u32 %v1389, %v1393
        %v1396 = vsel %vm473, %v1394, 0
        %1398 = vmatprep.subr.bf16.mxu0 0
        %1399 = vmatpush1.bf16.msra.mxu0 0
        %1400 = vmatprep.subr.bf16.mxu0 0
        %1401 = vmatpush1.bf16.msra.mxu0 0
        %1402 = vmatprep.subr.bf16.mxu0 %v934
        %1403 = vmatpush1.bf16.msra.mxu0 %v933
        %1404 = vmatprep.subr.bf16.mxu0 %v932
        %1405 = vmatpush1.bf16.msra.mxu0 %v931
        %1406 = vmatprep.subr.bf16.mxu0 %v930
        %1407 = vmatpush1.bf16.msra.mxu0 %v929
        %1408 = vmatprep.subr.bf16.mxu0 %v928
        %1409 = vmatpush1.bf16.msra.mxu0 %v927
        %1410 = vmatprep.subr.bf16.mxu0 %v926
        %1411 = vmatpush1.bf16.msra.mxu0 %v925
        %1412 = vmatprep.subr.bf16.mxu0 %v924
        %1413 = vmatpush1.bf16.msra.mxu0 %v923
        %1414 = vmatprep.subr.bf16.mxu0 0
        %1415 = vmatpush2.bf16.msra.mxu0 0
        %1416 = vmatprep.subr.bf16.mxu0 0
        %1417 = vmatpush2.bf16.msra.mxu0 0
        %1418 = vmatprep.subr.bf16.mxu0 0
        %1419 = vmatpush2.bf16.msra.mxu0 0
        %1420 = vmatprep.subr.bf16.mxu0 0
        %1421 = vmatpush2.bf16.msra.mxu0 0
        %1422 = vmatprep.subr.bf16.mxu0 0
        %1423 = vmatpush2.bf16.msra.mxu0 0
        %1424 = vmatprep.subr.bf16.mxu0 0
        %1425 = vmatpush2.bf16.msra.mxu0 0
        %1426 = vmatprep.subr.bf16.mxu0 0
        %1427 = vmatpush2.bf16.msra.mxu0 0
        %1428 = vmatprep.subr.bf16.mxu0 0
        %1429 = vmatpush2.bf16.msra.mxu0 0
        %1430 = vmatprep.mubr.bf16.mxu0 0
        %1431 = vmatmul.mubr.bf16.gmra.mxu0 %v1396
        %v1432 = vpop.f32.mrf.mxu0
        %v1433 = vadd.f32 0.0, %v1432
        %v1434 = vpop.f32.mrf.mxu0
        %v1435 = vadd.f32 0.0, %v1434
        %v1436 = vpop.f32.mrf.mxu0
        %v1437 = vpop.f32.mrf.mxu0
        %1438 = vdwg.mxu0
        %v1439 = vadd.f32 %v1383, %v1433
        %v1440 = vadd.f32 %v1384, %v1435
        %1441 = vmatprep.subr.bf16.mxu0 0
        %1442 = vmatpush1.bf16.msra.mxu0 0
        %1443 = vmatprep.subr.bf16.mxu0 0
        %1444 = vmatpush1.bf16.msra.mxu0 0
        %1445 = vmatprep.subr.bf16.mxu0 %v460
        %1446 = vmatpush1.bf16.msra.mxu0 %v459
        %1447 = vmatprep.subr.bf16.mxu0 %v458
        %1448 = vmatpush1.bf16.msra.mxu0 %v457
        %1449 = vmatprep.subr.bf16.mxu0 %v456
        %1450 = vmatpush1.bf16.msra.mxu0 %v455
        %1451 = vmatprep.subr.bf16.mxu0 %v454
        %1452 = vmatpush1.bf16.msra.mxu0 %v453
        %1453 = vmatprep.subr.bf16.mxu0 %v452
        %1454 = vmatpush1.bf16.msra.mxu0 %v451
        %1455 = vmatprep.subr.bf16.mxu0 %v450
        %1456 = vmatpush1.bf16.msra.mxu0 %v449
        %1457 = vmatprep.subr.bf16.mxu0 0
        %1458 = vmatpush2.bf16.msra.mxu0 0
        %1459 = vmatprep.subr.bf16.mxu0 0
        %1460 = vmatpush2.bf16.msra.mxu0 0
        %1461 = vmatprep.subr.bf16.mxu0 0
        %1462 = vmatpush2.bf16.msra.mxu0 0
        %1463 = vmatprep.subr.bf16.mxu0 0
        %1464 = vmatpush2.bf16.msra.mxu0 0
        %1465 = vmatprep.subr.bf16.mxu0 0
        %1466 = vmatpush2.bf16.msra.mxu0 0
        %1467 = vmatprep.subr.bf16.mxu0 0
        %1468 = vmatpush2.bf16.msra.mxu0 0
        %1469 = vmatprep.subr.bf16.mxu0 0
        %1470 = vmatpush2.bf16.msra.mxu0 0
        %1471 = vmatprep.subr.bf16.mxu0 0
        %1472 = vmatpush2.bf16.msra.mxu0 0
        %1473 = vmatprep.mubr.bf16.mxu0 0
        %1474 = vmatmul.mubr.bf16.gmra.mxu0 %v948
        %v1475 = vpop.f32.mrf.mxu0
        %v1476 = vadd.f32 0.0, %v1475
        %v1477 = vpop.f32.mrf.mxu0
        %v1478 = vadd.f32 0.0, %v1477
        %v1479 = vpop.f32.mrf.mxu0
        %v1480 = vpop.f32.mrf.mxu0
        %1481 = vdwg.mxu0
        %1482 = vmatprep.subr.bf16.mxu0 0
        %1483 = vmatpush1.bf16.msra.mxu0 0
        %1484 = vmatprep.subr.bf16.mxu0 0
        %1485 = vmatpush1.bf16.msra.mxu0 0
        %1486 = vmatprep.subr.bf16.mxu0 %v565
        %1487 = vmatpush1.bf16.msra.mxu0 %v564
        %1488 = vmatprep.subr.bf16.mxu0 %v563
        %1489 = vmatpush1.bf16.msra.mxu0 %v562
        %1490 = vmatprep.subr.bf16.mxu0 %v561
        %1491 = vmatpush1.bf16.msra.mxu0 %v560
        %1492 = vmatprep.subr.bf16.mxu0 %v559
        %1493 = vmatpush1.bf16.msra.mxu0 %v558
        %1494 = vmatprep.subr.bf16.mxu0 %v557
        %1495 = vmatpush1.bf16.msra.mxu0 %v556
        %1496 = vmatprep.subr.bf16.mxu0 %v555
        %1497 = vmatpush1.bf16.msra.mxu0 %v554
        %1498 = vmatprep.subr.bf16.mxu0 0
        %1499 = vmatpush2.bf16.msra.mxu0 0
        %1500 = vmatprep.subr.bf16.mxu0 0
        %1501 = vmatpush2.bf16.msra.mxu0 0
        %1502 = vmatprep.subr.bf16.mxu0 0
        %1503 = vmatpush2.bf16.msra.mxu0 0
        %1504 = vmatprep.subr.bf16.mxu0 0
        %1505 = vmatpush2.bf16.msra.mxu0 0
        %1506 = vmatprep.subr.bf16.mxu0 0
        %1507 = vmatpush2.bf16.msra.mxu0 0
        %1508 = vmatprep.subr.bf16.mxu0 0
        %1509 = vmatpush2.bf16.msra.mxu0 0
        %1510 = vmatprep.subr.bf16.mxu0 0
        %1511 = vmatpush2.bf16.msra.mxu0 0
        %1512 = vmatprep.subr.bf16.mxu0 0
        %1513 = vmatpush2.bf16.msra.mxu0 0
        %1514 = vmatprep.mubr.bf16.mxu0 0
        %1515 = vmatmul.mubr.bf16.gmra.mxu0 %v819
        %v1516 = vpop.f32.mrf.mxu0
        %v1517 = vadd.f32 %v1476, %v1516
        %v1518 = vpop.f32.mrf.mxu0
        %v1519 = vadd.f32 %v1478, %v1518
        %v1520 = vpop.f32.mrf.mxu0
        %v1521 = vpop.f32.mrf.mxu0
        %1522 = vdwg.mxu0
        %1523 = vmatprep.subr.bf16.mxu0 0
        %1524 = vmatpush1.bf16.msra.mxu0 0
        %1525 = vmatprep.subr.bf16.mxu0 0
        %1526 = vmatpush1.bf16.msra.mxu0 0
        %1527 = vmatprep.subr.bf16.mxu0 %v684
        %1528 = vmatpush1.bf16.msra.mxu0 %v683
        %1529 = vmatprep.subr.bf16.mxu0 %v682
        %1530 = vmatpush1.bf16.msra.mxu0 %v681
        %1531 = vmatprep.subr.bf16.mxu0 %v680
        %1532 = vmatpush1.bf16.msra.mxu0 %v679
        %1533 = vmatprep.subr.bf16.mxu0 %v678
        %1534 = vmatpush1.bf16.msra.mxu0 %v677
        %1535 = vmatprep.subr.bf16.mxu0 %v676
        %1536 = vmatpush1.bf16.msra.mxu0 %v675
        %1537 = vmatprep.subr.bf16.mxu0 %v674
        %1538 = vmatpush1.bf16.msra.mxu0 %v673
        %1539 = vmatprep.subr.bf16.mxu0 0
        %1540 = vmatpush2.bf16.msra.mxu0 0
        %1541 = vmatprep.subr.bf16.mxu0 0
        %1542 = vmatpush2.bf16.msra.mxu0 0
        %1543 = vmatprep.subr.bf16.mxu0 0
        %1544 = vmatpush2.bf16.msra.mxu0 0
        %1545 = vmatprep.subr.bf16.mxu0 0
        %1546 = vmatpush2.bf16.msra.mxu0 0
        %1547 = vmatprep.subr.bf16.mxu0 0
        %1548 = vmatpush2.bf16.msra.mxu0 0
        %1549 = vmatprep.subr.bf16.mxu0 0
        %1550 = vmatpush2.bf16.msra.mxu0 0
        %1551 = vmatprep.subr.bf16.mxu0 0
        %1552 = vmatpush2.bf16.msra.mxu0 0
        %1553 = vmatprep.subr.bf16.mxu0 0
        %1554 = vmatpush2.bf16.msra.mxu0 0
        %1555 = vmatprep.mubr.bf16.mxu0 0
        %1556 = vmatmul.mubr.bf16.gmra.mxu0 %v1172
        %v1557 = vpop.f32.mrf.mxu0
        %v1558 = vadd.f32 0.0, %v1557
        %v1559 = vpop.f32.mrf.mxu0
        %v1560 = vadd.f32 0.0, %v1559
        %v1561 = vpop.f32.mrf.mxu0
        %v1562 = vpop.f32.mrf.mxu0
        %1563 = vdwg.mxu0
        %v1564 = vadd.f32 %v1517, %v1558
        %v1565 = vadd.f32 %v1519, %v1560
        %1566 = vmatprep.subr.bf16.mxu0 0
        %1567 = vmatpush1.bf16.msra.mxu0 0
        %1568 = vmatprep.subr.bf16.mxu0 0
        %1569 = vmatpush1.bf16.msra.mxu0 0
        %1570 = vmatprep.subr.bf16.mxu0 %v805
        %1571 = vmatpush1.bf16.msra.mxu0 %v804
        %1572 = vmatprep.subr.bf16.mxu0 %v803
        %1573 = vmatpush1.bf16.msra.mxu0 %v802
        %1574 = vmatprep.subr.bf16.mxu0 %v801
        %1575 = vmatpush1.bf16.msra.mxu0 %v800
        %1576 = vmatprep.subr.bf16.mxu0 %v799
        %1577 = vmatpush1.bf16.msra.mxu0 %v798
        %1578 = vmatprep.subr.bf16.mxu0 %v797
        %1579 = vmatpush1.bf16.msra.mxu0 %v796
        %1580 = vmatprep.subr.bf16.mxu0 %v795
        %1581 = vmatpush1.bf16.msra.mxu0 %v794
        %1582 = vmatprep.subr.bf16.mxu0 0
        %1583 = vmatpush2.bf16.msra.mxu0 0
        %1584 = vmatprep.subr.bf16.mxu0 0
        %1585 = vmatpush2.bf16.msra.mxu0 0
        %1586 = vmatprep.subr.bf16.mxu0 0
        %1587 = vmatpush2.bf16.msra.mxu0 0
        %1588 = vmatprep.subr.bf16.mxu0 0
        %1589 = vmatpush2.bf16.msra.mxu0 0
        %1590 = vmatprep.subr.bf16.mxu0 0
        %1591 = vmatpush2.bf16.msra.mxu0 0
        %1592 = vmatprep.subr.bf16.mxu0 0
        %1593 = vmatpush2.bf16.msra.mxu0 0
        %1594 = vmatprep.subr.bf16.mxu0 0
        %1595 = vmatpush2.bf16.msra.mxu0 0
        %1596 = vmatprep.subr.bf16.mxu0 0
        %1597 = vmatpush2.bf16.msra.mxu0 0
        %1598 = vmatprep.mubr.bf16.mxu0 0
        %1599 = vmatmul.mubr.bf16.gmra.mxu0 %v1396
        %v1600 = vpop.f32.mrf.mxu0
        %v1601 = vadd.f32 0.0, %v1600
        %v1602 = vpop.f32.mrf.mxu0
        %v1603 = vadd.f32 0.0, %v1602
        %v1604 = vpop.f32.mrf.mxu0
        %v1605 = vpop.f32.mrf.mxu0
        %1606 = vdwg.mxu0
        %v1607 = vadd.f32 %v1564, %v1601
        %v1608 = vadd.f32 %v1565, %v1603
        %v1610 = vunpack.c.l.b16 %v744
        %v1611 = vpack.c.b16 %v1610, %v1610
        %v1613 = vshrl.u32 %v1611, 16
        %v1615 = vshll.u32 %v1611, 16
        %v1617 = vrot.slane %v1615, 1
        %v1618 = vor.u32 %v1613, %v1617
        %v1620 = vsel %vm473, %v1618, 0
        %1622 = vmatprep.subr.bf16.mxu0 0
        %1623 = vmatpush1.bf16.msra.mxu0 0
        %1624 = vmatprep.subr.bf16.mxu0 0
        %1625 = vmatpush1.bf16.msra.mxu0 0
        %1626 = vmatprep.subr.bf16.mxu0 %v934
        %1627 = vmatpush1.bf16.msra.mxu0 %v933
        %1628 = vmatprep.subr.bf16.mxu0 %v932
        %1629 = vmatpush1.bf16.msra.mxu0 %v931
        %1630 = vmatprep.subr.bf16.mxu0 %v930
        %1631 = vmatpush1.bf16.msra.mxu0 %v929
        %1632 = vmatprep.subr.bf16.mxu0 %v928
        %1633 = vmatpush1.bf16.msra.mxu0 %v927
        %1634 = vmatprep.subr.bf16.mxu0 %v926
        %1635 = vmatpush1.bf16.msra.mxu0 %v925
        %1636 = vmatprep.subr.bf16.mxu0 %v924
        %1637 = vmatpush1.bf16.msra.mxu0 %v923
        %1638 = vmatprep.subr.bf16.mxu0 0
        %1639 = vmatpush2.bf16.msra.mxu0 0
        %1640 = vmatprep.subr.bf16.mxu0 0
        %1641 = vmatpush2.bf16.msra.mxu0 0
        %1642 = vmatprep.subr.bf16.mxu0 0
        %1643 = vmatpush2.bf16.msra.mxu0 0
        %1644 = vmatprep.subr.bf16.mxu0 0
        %1645 = vmatpush2.bf16.msra.mxu0 0
        %1646 = vmatprep.subr.bf16.mxu0 0
        %1647 = vmatpush2.bf16.msra.mxu0 0
        %1648 = vmatprep.subr.bf16.mxu0 0
        %1649 = vmatpush2.bf16.msra.mxu0 0
        %1650 = vmatprep.subr.bf16.mxu0 0
        %1651 = vmatpush2.bf16.msra.mxu0 0
        %1652 = vmatprep.subr.bf16.mxu0 0
        %1653 = vmatpush2.bf16.msra.mxu0 0
        %1654 = vmatprep.mubr.bf16.mxu0 0
        %1655 = vmatmul.mubr.bf16.gmra.mxu0 %v1620
        %v1656 = vpop.f32.mrf.mxu0
        %v1657 = vadd.f32 0.0, %v1656
        %v1658 = vpop.f32.mrf.mxu0
        %v1659 = vadd.f32 0.0, %v1658
        %v1660 = vpop.f32.mrf.mxu0
        %v1661 = vpop.f32.mrf.mxu0
        %1662 = vdwg.mxu0
        %v1663 = vadd.f32 %v1607, %v1657
        %v1664 = vadd.f32 %v1608, %v1659
        %v1665 = vld [vmem:[%s2] sm:$0x1]
        %v1666 = vmax.f32 %v991, %v992
        %v1667 = vmax.f32 %v1215, %v1216
        %v1668 = vmax.f32 %v1666, %v1667
        %v1670 = vlaneseq
        %v1671 = vshrl.u32 %v1670, 7
        %v1672 = vsub.s32 0, %v1671
        %v1673 = vrot.slane %v1665, %v1672
        %v1675 = vadd.f32 %v1668, %v1673
        %v1676 = vmax.f32 %v1675, 0.0
        %v1677 = vmax.f32 %v1439, %v1440
        %v1678 = vmax.f32 %v1663, %v1664
        %v1679 = vmax.f32 %v1677, %v1678
        %v1680 = vadd.f32 %v1679, %v1673
        %v1681 = vmax.f32 %v1680, 0.0
        %v1682 = vpack.c.bf16 %v1676, %v1676
        %v1683 = vld [vmem:[%s3] sm:$0xff]
        %v1684 = vld [vmem:[%s3 + $0x8] sm:$0xff]
        %v1685 = vld [vmem:[%s3 + $0x10] sm:$0xff]
        %v1686 = vld [vmem:[%s3 + $0x18] sm:$0xff]
        %v1687 = vld [vmem:[%s3 + $0x20] sm:$0xff]
        %v1688 = vld [vmem:[%s3 + $0x28] sm:$0xff]
        %v1689 = vld [vmem:[%s3 + $0x30] sm:$0xff]
        %v1690 = vld [vmem:[%s3 + $0x38] sm:$0xff]
        %v1691 = vld [vmem:[%s3 + $0x40] sm:$0xff]
        %v1692 = vld [vmem:[%s3 + $0x48] sm:$0xff]
        %v1693 = vld [vmem:[%s3 + $0x50] sm:$0xff]
        %v1694 = vld [vmem:[%s3 + $0x58] sm:$0xff]
        %v1695 = vld [vmem:[%s3 + $0x60] sm:$0xff]
        %v1696 = vld [vmem:[%s3 + $0x68] sm:$0xff]
        %v1697 = vld [vmem:[%s3 + $0x70] sm:$0xff]
        %v1698 = vld [vmem:[%s3 + $0x78] sm:$0xff]
        %v1699 = vpack.c.bf16 %v1681, %v1681
        %s1700 = scalar_lea.vmem %s3, 128
        %v1701 = vld [vmem:[%s1700] sm:$0xff]
        %v1702 = vld [vmem:[%s1700 + $0x8] sm:$0xff]
        %v1703 = vld [vmem:[%s1700 + $0x10] sm:$0xff]
        %v1704 = vld [vmem:[%s1700 + $0x18] sm:$0xff]
        %v1705 = vld [vmem:[%s1700 + $0x20] sm:$0xff]
        %v1706 = vld [vmem:[%s1700 + $0x28] sm:$0xff]
        %v1707 = vld [vmem:[%s1700 + $0x30] sm:$0xff]
        %v1708 = vld [vmem:[%s1700 + $0x38] sm:$0xff]
        %v1709 = vld [vmem:[%s1700 + $0x40] sm:$0xff]
        %v1710 = vld [vmem:[%s1700 + $0x48] sm:$0xff]
        %v1711 = vld [vmem:[%s1700 + $0x50] sm:$0xff]
        %v1712 = vld [vmem:[%s1700 + $0x58] sm:$0xff]
        %v1713 = vld [vmem:[%s1700 + $0x60] sm:$0xff]
        %v1714 = vld [vmem:[%s1700 + $0x68] sm:$0xff]
        %v1715 = vld [vmem:[%s1700 + $0x70] sm:$0xff]
        %v1716 = vld [vmem:[%s1700 + $0x78] sm:$0xff]
        %v1733 = vunpack.c.l.b16 %v1701
        %v1734 = vunpack.c.h.b16 %v1701
        %v1735 = vunpack.c.l.b16 %v1702
        %v1736 = vunpack.c.h.b16 %v1702
        %v1737 = vunpack.c.l.b16 %v1703
        %v1738 = vunpack.c.h.b16 %v1703
        %v1739 = vunpack.c.l.b16 %v1704
        %v1740 = vunpack.c.h.b16 %v1704
        %v1741 = vunpack.c.l.b16 %v1705
        %v1742 = vunpack.c.h.b16 %v1705
        %v1743 = vunpack.c.l.b16 %v1706
        %v1744 = vunpack.c.h.b16 %v1706
        %v1745 = vunpack.c.l.b16 %v1707
        %v1746 = vunpack.c.h.b16 %v1707
        %v1747 = vunpack.c.l.b16 %v1708
        %v1748 = vunpack.c.h.b16 %v1708
        %v1749 = vunpack.c.l.b16 %v1709
        %v1750 = vunpack.c.h.b16 %v1709
        %v1751 = vunpack.c.l.b16 %v1710
        %v1752 = vunpack.c.h.b16 %v1710
        %v1753 = vunpack.c.l.b16 %v1711
        %v1754 = vunpack.c.h.b16 %v1711
        %v1755 = vunpack.c.l.b16 %v1712
        %v1756 = vunpack.c.h.b16 %v1712
        %v1757 = vunpack.c.l.b16 %v1713
        %v1758 = vunpack.c.h.b16 %v1713
        %v1759 = vunpack.c.l.b16 %v1714
        %v1760 = vunpack.c.h.b16 %v1714
        %v1761 = vunpack.c.l.b16 %v1715
        %v1762 = vunpack.c.h.b16 %v1715
        %v1763 = vunpack.c.l.b16 %v1716
        %v1764 = vunpack.c.h.b16 %v1716
        %v1765 = vpack.c.b16 %v1735, %v1733
        %v1766 = vpack.c.b16 %v1736, %v1734
        %v1767 = vpack.c.b16 %v1739, %v1737
        %v1768 = vpack.c.b16 %v1740, %v1738
        %v1769 = vpack.c.b16 %v1743, %v1741
        %v1770 = vpack.c.b16 %v1744, %v1742
        %v1771 = vpack.c.b16 %v1747, %v1745
        %v1772 = vpack.c.b16 %v1748, %v1746
        %v1773 = vpack.c.b16 %v1751, %v1749
        %v1774 = vpack.c.b16 %v1752, %v1750
        %v1775 = vpack.c.b16 %v1755, %v1753
        %v1776 = vpack.c.b16 %v1756, %v1754
        %v1777 = vpack.c.b16 %v1759, %v1757
        %v1778 = vpack.c.b16 %v1760, %v1758
        %v1779 = vpack.c.b16 %v1763, %v1761
        %v1780 = vpack.c.b16 %v1764, %v1762
        %1797 = vmatprep.subr.bf16.mxu0 %v1780
        %1798 = vmatpush1.bf16.msra.mxu0 %v1779
        %1799 = vmatprep.subr.bf16.mxu0 %v1778
        %1800 = vmatpush1.bf16.msra.mxu0 %v1777
        %1801 = vmatprep.subr.bf16.mxu0 %v1776
        %1802 = vmatpush1.bf16.msra.mxu0 %v1775
        %1803 = vmatprep.subr.bf16.mxu0 %v1774
        %1804 = vmatpush1.bf16.msra.mxu0 %v1773
        %1805 = vmatprep.subr.bf16.mxu0 %v1772
        %1806 = vmatpush1.bf16.msra.mxu0 %v1771
        %1807 = vmatprep.subr.bf16.mxu0 %v1770
        %1808 = vmatpush1.bf16.msra.mxu0 %v1769
        %1809 = vmatprep.subr.bf16.mxu0 %v1768
        %1810 = vmatpush1.bf16.msra.mxu0 %v1767
        %1811 = vmatprep.subr.bf16.mxu0 %v1766
        %1812 = vmatpush1.bf16.msra.mxu0 %v1765
        %1813 = vmatprep.subr.bf16.mxu0 0
        %1814 = vmatpush2.bf16.msra.mxu0 0
        %1815 = vmatprep.subr.bf16.mxu0 0
        %1816 = vmatpush2.bf16.msra.mxu0 0
        %1817 = vmatprep.subr.bf16.mxu0 0
        %1818 = vmatpush2.bf16.msra.mxu0 0
        %1819 = vmatprep.subr.bf16.mxu0 0
        %1820 = vmatpush2.bf16.msra.mxu0 0
        %1821 = vmatprep.subr.bf16.mxu0 0
        %1822 = vmatpush2.bf16.msra.mxu0 0
        %1823 = vmatprep.subr.bf16.mxu0 0
        %1824 = vmatpush2.bf16.msra.mxu0 0
        %1825 = vmatprep.subr.bf16.mxu0 0
        %1826 = vmatpush2.bf16.msra.mxu0 0
        %1827 = vmatprep.subr.bf16.mxu0 0
        %1828 = vmatpush2.bf16.msra.mxu0 0
        %1829 = vmatprep.mubr.bf16.mxu0 0
        %1830 = vmatmul.mubr.bf16.gmra.mxu0 %v1699
        %v1831 = vpop.f32.mrf.mxu0
        %v1832 = vadd.f32 0.0, %v1831
        %v1833 = vpop.f32.mrf.mxu0
        %v1834 = vadd.f32 0.0, %v1833
        %v1835 = vpop.f32.mrf.mxu0
        %v1836 = vpop.f32.mrf.mxu0
        %1837 = vdwg.mxu0
        %v1854 = vunpack.c.l.b16 %v1683
        %v1855 = vunpack.c.h.b16 %v1683
        %v1856 = vunpack.c.l.b16 %v1684
        %v1857 = vunpack.c.h.b16 %v1684
        %v1858 = vunpack.c.l.b16 %v1685
        %v1859 = vunpack.c.h.b16 %v1685
        %v1860 = vunpack.c.l.b16 %v1686
        %v1861 = vunpack.c.h.b16 %v1686
        %v1862 = vunpack.c.l.b16 %v1687
        %v1863 = vunpack.c.h.b16 %v1687
        %v1864 = vunpack.c.l.b16 %v1688
        %v1865 = vunpack.c.h.b16 %v1688
        %v1866 = vunpack.c.l.b16 %v1689
        %v1867 = vunpack.c.h.b16 %v1689
        %v1868 = vunpack.c.l.b16 %v1690
        %v1869 = vunpack.c.h.b16 %v1690
        %v1870 = vunpack.c.l.b16 %v1691
        %v1871 = vunpack.c.h.b16 %v1691
        %v1872 = vunpack.c.l.b16 %v1692
        %v1873 = vunpack.c.h.b16 %v1692
        %v1874 = vunpack.c.l.b16 %v1693
        %v1875 = vunpack.c.h.b16 %v1693
        %v1876 = vunpack.c.l.b16 %v1694
        %v1877 = vunpack.c.h.b16 %v1694
        %v1878 = vunpack.c.l.b16 %v1695
        %v1879 = vunpack.c.h.b16 %v1695
        %v1880 = vunpack.c.l.b16 %v1696
        %v1881 = vunpack.c.h.b16 %v1696
        %v1882 = vunpack.c.l.b16 %v1697
        %v1883 = vunpack.c.h.b16 %v1697
        %v1884 = vunpack.c.l.b16 %v1698
        %v1885 = vunpack.c.h.b16 %v1698
        %v1886 = vpack.c.b16 %v1856, %v1854
        %v1887 = vpack.c.b16 %v1857, %v1855
        %v1888 = vpack.c.b16 %v1860, %v1858
        %v1889 = vpack.c.b16 %v1861, %v1859
        %v1890 = vpack.c.b16 %v1864, %v1862
        %v1891 = vpack.c.b16 %v1865, %v1863
        %v1892 = vpack.c.b16 %v1868, %v1866
        %v1893 = vpack.c.b16 %v1869, %v1867
        %v1894 = vpack.c.b16 %v1872, %v1870
        %v1895 = vpack.c.b16 %v1873, %v1871
        %v1896 = vpack.c.b16 %v1876, %v1874
        %v1897 = vpack.c.b16 %v1877, %v1875
        %v1898 = vpack.c.b16 %v1880, %v1878
        %v1899 = vpack.c.b16 %v1881, %v1879
        %v1900 = vpack.c.b16 %v1884, %v1882
        %v1901 = vpack.c.b16 %v1885, %v1883
        %1918 = vmatprep.subr.bf16.mxu0 %v1901
        %1919 = vmatpush1.bf16.msra.mxu0 %v1900
        %1920 = vmatprep.subr.bf16.mxu0 %v1899
        %1921 = vmatpush1.bf16.msra.mxu0 %v1898
        %1922 = vmatprep.subr.bf16.mxu0 %v1897
        %1923 = vmatpush1.bf16.msra.mxu0 %v1896
        %1924 = vmatprep.subr.bf16.mxu0 %v1895
        %1925 = vmatpush1.bf16.msra.mxu0 %v1894
        %1926 = vmatprep.subr.bf16.mxu0 %v1893
        %1927 = vmatpush1.bf16.msra.mxu0 %v1892
        %1928 = vmatprep.subr.bf16.mxu0 %v1891
        %1929 = vmatpush1.bf16.msra.mxu0 %v1890
        %1930 = vmatprep.subr.bf16.mxu0 %v1889
        %1931 = vmatpush1.bf16.msra.mxu0 %v1888
        %1932 = vmatprep.subr.bf16.mxu0 %v1887
        %1933 = vmatpush1.bf16.msra.mxu0 %v1886
        %1934 = vmatprep.subr.bf16.mxu0 0
        %1935 = vmatpush2.bf16.msra.mxu0 0
        %1936 = vmatprep.subr.bf16.mxu0 0
        %1937 = vmatpush2.bf16.msra.mxu0 0
        %1938 = vmatprep.subr.bf16.mxu0 0
        %1939 = vmatpush2.bf16.msra.mxu0 0
        %1940 = vmatprep.subr.bf16.mxu0 0
        %1941 = vmatpush2.bf16.msra.mxu0 0
        %1942 = vmatprep.subr.bf16.mxu0 0
        %1943 = vmatpush2.bf16.msra.mxu0 0
        %1944 = vmatprep.subr.bf16.mxu0 0
        %1945 = vmatpush2.bf16.msra.mxu0 0
        %1946 = vmatprep.subr.bf16.mxu0 0
        %1947 = vmatpush2.bf16.msra.mxu0 0
        %1948 = vmatprep.subr.bf16.mxu0 0
        %1949 = vmatpush2.bf16.msra.mxu0 0
        %1950 = vmatprep.mubr.bf16.mxu0 0
        %1951 = vmatmul.mubr.bf16.gmra.mxu0 %v1682
        %v1952 = vpop.f32.mrf.mxu0
        %v1953 = vadd.f32 %v1832, %v1952
        %v1954 = vpop.f32.mrf.mxu0
        %v1955 = vadd.f32 %v1834, %v1954
        %v1956 = vpop.f32.mrf.mxu0
        %v1957 = vpop.f32.mrf.mxu0
        %1958 = vdwg.mxu0
        %s1959 = scalar_lea.vmem %s3, 256
        %v1960 = vld [vmem:[%s1959] sm:$0xff]
        %v1961 = vld [vmem:[%s1959 + $0x8] sm:$0xff]
        %v1962 = vld [vmem:[%s1959 + $0x10] sm:$0xff]
        %v1963 = vld [vmem:[%s1959 + $0x18] sm:$0xff]
        %v1964 = vld [vmem:[%s1959 + $0x20] sm:$0xff]
        %v1965 = vld [vmem:[%s1959 + $0x28] sm:$0xff]
        %v1966 = vld [vmem:[%s1959 + $0x30] sm:$0xff]
        %v1967 = vld [vmem:[%s1959 + $0x38] sm:$0xff]
        %v1968 = vld [vmem:[%s1959 + $0x40] sm:$0xff]
        %v1969 = vld [vmem:[%s1959 + $0x48] sm:$0xff]
        %v1970 = vld [vmem:[%s1959 + $0x50] sm:$0xff]
        %v1971 = vld [vmem:[%s1959 + $0x58] sm:$0xff]
        %v1972 = vld [vmem:[%s1959 + $0x60] sm:$0xff]
        %v1973 = vld [vmem:[%s1959 + $0x68] sm:$0xff]
        %v1974 = vld [vmem:[%s1959 + $0x70] sm:$0xff]
        %v1975 = vld [vmem:[%s1959 + $0x78] sm:$0xff]
        %v1977 = vshrl.u32 %v1682, 16
        %v1979 = vshll.u32 %v1682, 16
        %v1981 = vrot.slane %v1979, 1
        %v1982 = vor.u32 %v1977, %v1981
        %v2000 = vunpack.c.l.b16 %v1960
        %v2001 = vunpack.c.h.b16 %v1960
        %v2002 = vunpack.c.l.b16 %v1961
        %v2003 = vunpack.c.h.b16 %v1961
        %v2004 = vunpack.c.l.b16 %v1962
        %v2005 = vunpack.c.h.b16 %v1962
        %v2006 = vunpack.c.l.b16 %v1963
        %v2007 = vunpack.c.h.b16 %v1963
        %v2008 = vunpack.c.l.b16 %v1964
        %v2009 = vunpack.c.h.b16 %v1964
        %v2010 = vunpack.c.l.b16 %v1965
        %v2011 = vunpack.c.h.b16 %v1965
        %v2012 = vunpack.c.l.b16 %v1966
        %v2013 = vunpack.c.h.b16 %v1966
        %v2014 = vunpack.c.l.b16 %v1967
        %v2015 = vunpack.c.h.b16 %v1967
        %v2016 = vunpack.c.l.b16 %v1968
        %v2017 = vunpack.c.h.b16 %v1968
        %v2018 = vunpack.c.l.b16 %v1969
        %v2019 = vunpack.c.h.b16 %v1969
        %v2020 = vunpack.c.l.b16 %v1970
        %v2021 = vunpack.c.h.b16 %v1970
        %v2022 = vunpack.c.l.b16 %v1971
        %v2023 = vunpack.c.h.b16 %v1971
        %v2024 = vunpack.c.l.b16 %v1972
        %v2025 = vunpack.c.h.b16 %v1972
        %v2026 = vunpack.c.l.b16 %v1973
        %v2027 = vunpack.c.h.b16 %v1973
        %v2028 = vunpack.c.l.b16 %v1974
        %v2029 = vunpack.c.h.b16 %v1974
        %v2030 = vunpack.c.l.b16 %v1975
        %v2031 = vunpack.c.h.b16 %v1975
        %v2032 = vpack.c.b16 %v2002, %v2000
        %v2033 = vpack.c.b16 %v2003, %v2001
        %v2034 = vpack.c.b16 %v2006, %v2004
        %v2035 = vpack.c.b16 %v2007, %v2005
        %v2036 = vpack.c.b16 %v2010, %v2008
        %v2037 = vpack.c.b16 %v2011, %v2009
        %v2038 = vpack.c.b16 %v2014, %v2012
        %v2039 = vpack.c.b16 %v2015, %v2013
        %v2040 = vpack.c.b16 %v2018, %v2016
        %v2041 = vpack.c.b16 %v2019, %v2017
        %v2042 = vpack.c.b16 %v2022, %v2020
        %v2043 = vpack.c.b16 %v2023, %v2021
        %v2044 = vpack.c.b16 %v2026, %v2024
        %v2045 = vpack.c.b16 %v2027, %v2025
        %v2046 = vpack.c.b16 %v2030, %v2028
        %v2047 = vpack.c.b16 %v2031, %v2029
        %2064 = vmatprep.subr.bf16.mxu0 %v2047
        %2065 = vmatpush1.bf16.msra.mxu0 %v2046
        %2066 = vmatprep.subr.bf16.mxu0 %v2045
        %2067 = vmatpush1.bf16.msra.mxu0 %v2044
        %2068 = vmatprep.subr.bf16.mxu0 %v2043
        %2069 = vmatpush1.bf16.msra.mxu0 %v2042
        %2070 = vmatprep.subr.bf16.mxu0 %v2041
        %2071 = vmatpush1.bf16.msra.mxu0 %v2040
        %2072 = vmatprep.subr.bf16.mxu0 %v2039
        %2073 = vmatpush1.bf16.msra.mxu0 %v2038
        %2074 = vmatprep.subr.bf16.mxu0 %v2037
        %2075 = vmatpush1.bf16.msra.mxu0 %v2036
        %2076 = vmatprep.subr.bf16.mxu0 %v2035
        %2077 = vmatpush1.bf16.msra.mxu0 %v2034
        %2078 = vmatprep.subr.bf16.mxu0 %v2033
        %2079 = vmatpush1.bf16.msra.mxu0 %v2032
        %2080 = vmatprep.subr.bf16.mxu0 0
        %2081 = vmatpush2.bf16.msra.mxu0 0
        %2082 = vmatprep.subr.bf16.mxu0 0
        %2083 = vmatpush2.bf16.msra.mxu0 0
        %2084 = vmatprep.subr.bf16.mxu0 0
        %2085 = vmatpush2.bf16.msra.mxu0 0
        %2086 = vmatprep.subr.bf16.mxu0 0
        %2087 = vmatpush2.bf16.msra.mxu0 0
        %2088 = vmatprep.subr.bf16.mxu0 0
        %2089 = vmatpush2.bf16.msra.mxu0 0
        %2090 = vmatprep.subr.bf16.mxu0 0
        %2091 = vmatpush2.bf16.msra.mxu0 0
        %2092 = vmatprep.subr.bf16.mxu0 0
        %2093 = vmatpush2.bf16.msra.mxu0 0
        %2094 = vmatprep.subr.bf16.mxu0 0
        %2095 = vmatpush2.bf16.msra.mxu0 0
        %2096 = vmatprep.mubr.bf16.mxu0 0
        %2097 = vmatmul.mubr.bf16.gmra.mxu0 %v1982
        %v2098 = vpop.f32.mrf.mxu0
        %v2099 = vadd.f32 0.0, %v2098
        %v2100 = vpop.f32.mrf.mxu0
        %v2101 = vadd.f32 0.0, %v2100
        %v2102 = vpop.f32.mrf.mxu0
        %v2103 = vpop.f32.mrf.mxu0
        %2104 = vdwg.mxu0
        %v2105 = vadd.f32 %v1953, %v2099
        %v2106 = vadd.f32 %v1955, %v2101
        %s2107 = scalar_lea.vmem %s3, 384
        %v2108 = vld [vmem:[%s2107] sm:$0xff]
        %v2109 = vld [vmem:[%s2107 + $0x8] sm:$0xff]
        %v2110 = vld [vmem:[%s2107 + $0x10] sm:$0xff]
        %v2111 = vld [vmem:[%s2107 + $0x18] sm:$0xff]
        %v2112 = vld [vmem:[%s2107 + $0x20] sm:$0xff]
        %v2113 = vld [vmem:[%s2107 + $0x28] sm:$0xff]
        %v2114 = vld [vmem:[%s2107 + $0x30] sm:$0xff]
        %v2115 = vld [vmem:[%s2107 + $0x38] sm:$0xff]
        %v2116 = vld [vmem:[%s2107 + $0x40] sm:$0xff]
        %v2117 = vld [vmem:[%s2107 + $0x48] sm:$0xff]
        %v2118 = vld [vmem:[%s2107 + $0x50] sm:$0xff]
        %v2119 = vld [vmem:[%s2107 + $0x58] sm:$0xff]
        %v2120 = vld [vmem:[%s2107 + $0x60] sm:$0xff]
        %v2121 = vld [vmem:[%s2107 + $0x68] sm:$0xff]
        %v2122 = vld [vmem:[%s2107 + $0x70] sm:$0xff]
        %v2123 = vld [vmem:[%s2107 + $0x78] sm:$0xff]
        %v2125 = vshrl.u32 %v1699, 16
        %v2127 = vshll.u32 %v1699, 16
        %v2129 = vrot.slane %v2127, 1
        %v2130 = vor.u32 %v2125, %v2129
        %v2148 = vunpack.c.l.b16 %v2108
        %v2149 = vunpack.c.h.b16 %v2108
        %v2150 = vunpack.c.l.b16 %v2109
        %v2151 = vunpack.c.h.b16 %v2109
        %v2152 = vunpack.c.l.b16 %v2110
        %v2153 = vunpack.c.h.b16 %v2110
        %v2154 = vunpack.c.l.b16 %v2111
        %v2155 = vunpack.c.h.b16 %v2111
        %v2156 = vunpack.c.l.b16 %v2112
        %v2157 = vunpack.c.h.b16 %v2112
        %v2158 = vunpack.c.l.b16 %v2113
        %v2159 = vunpack.c.h.b16 %v2113
        %v2160 = vunpack.c.l.b16 %v2114
        %v2161 = vunpack.c.h.b16 %v2114
        %v2162 = vunpack.c.l.b16 %v2115
        %v2163 = vunpack.c.h.b16 %v2115
        %v2164 = vunpack.c.l.b16 %v2116
        %v2165 = vunpack.c.h.b16 %v2116
        %v2166 = vunpack.c.l.b16 %v2117
        %v2167 = vunpack.c.h.b16 %v2117
        %v2168 = vunpack.c.l.b16 %v2118
        %v2169 = vunpack.c.h.b16 %v2118
        %v2170 = vunpack.c.l.b16 %v2119
        %v2171 = vunpack.c.h.b16 %v2119
        %v2172 = vunpack.c.l.b16 %v2120
        %v2173 = vunpack.c.h.b16 %v2120
        %v2174 = vunpack.c.l.b16 %v2121
        %v2175 = vunpack.c.h.b16 %v2121
        %v2176 = vunpack.c.l.b16 %v2122
        %v2177 = vunpack.c.h.b16 %v2122
        %v2178 = vunpack.c.l.b16 %v2123
        %v2179 = vunpack.c.h.b16 %v2123
        %v2180 = vpack.c.b16 %v2150, %v2148
        %v2181 = vpack.c.b16 %v2151, %v2149
        %v2182 = vpack.c.b16 %v2154, %v2152
        %v2183 = vpack.c.b16 %v2155, %v2153
        %v2184 = vpack.c.b16 %v2158, %v2156
        %v2185 = vpack.c.b16 %v2159, %v2157
        %v2186 = vpack.c.b16 %v2162, %v2160
        %v2187 = vpack.c.b16 %v2163, %v2161
        %v2188 = vpack.c.b16 %v2166, %v2164
        %v2189 = vpack.c.b16 %v2167, %v2165
        %v2190 = vpack.c.b16 %v2170, %v2168
        %v2191 = vpack.c.b16 %v2171, %v2169
        %v2192 = vpack.c.b16 %v2174, %v2172
        %v2193 = vpack.c.b16 %v2175, %v2173
        %v2194 = vpack.c.b16 %v2178, %v2176
        %v2195 = vpack.c.b16 %v2179, %v2177
        %2212 = vmatprep.subr.bf16.mxu0 %v2195
        %2213 = vmatpush1.bf16.msra.mxu0 %v2194
        %2214 = vmatprep.subr.bf16.mxu0 %v2193
        %2215 = vmatpush1.bf16.msra.mxu0 %v2192
        %2216 = vmatprep.subr.bf16.mxu0 %v2191
        %2217 = vmatpush1.bf16.msra.mxu0 %v2190
        %2218 = vmatprep.subr.bf16.mxu0 %v2189
        %2219 = vmatpush1.bf16.msra.mxu0 %v2188
        %2220 = vmatprep.subr.bf16.mxu0 %v2187
        %2221 = vmatpush1.bf16.msra.mxu0 %v2186
        %2222 = vmatprep.subr.bf16.mxu0 %v2185
        %2223 = vmatpush1.bf16.msra.mxu0 %v2184
        %2224 = vmatprep.subr.bf16.mxu0 %v2183
        %2225 = vmatpush1.bf16.msra.mxu0 %v2182
        %2226 = vmatprep.subr.bf16.mxu0 %v2181
        %2227 = vmatpush1.bf16.msra.mxu0 %v2180
        %2228 = vmatprep.subr.bf16.mxu0 0
        %2229 = vmatpush2.bf16.msra.mxu0 0
        %2230 = vmatprep.subr.bf16.mxu0 0
        %2231 = vmatpush2.bf16.msra.mxu0 0
        %2232 = vmatprep.subr.bf16.mxu0 0
        %2233 = vmatpush2.bf16.msra.mxu0 0
        %2234 = vmatprep.subr.bf16.mxu0 0
        %2235 = vmatpush2.bf16.msra.mxu0 0
        %2236 = vmatprep.subr.bf16.mxu0 0
        %2237 = vmatpush2.bf16.msra.mxu0 0
        %2238 = vmatprep.subr.bf16.mxu0 0
        %2239 = vmatpush2.bf16.msra.mxu0 0
        %2240 = vmatprep.subr.bf16.mxu0 0
        %2241 = vmatpush2.bf16.msra.mxu0 0
        %2242 = vmatprep.subr.bf16.mxu0 0
        %2243 = vmatpush2.bf16.msra.mxu0 0
        %2244 = vmatprep.mubr.bf16.mxu0 0
        %2245 = vmatmul.mubr.bf16.gmra.mxu0 %v2130
        %v2246 = vpop.f32.mrf.mxu0
        %v2247 = vadd.f32 0.0, %v2246
        %v2248 = vpop.f32.mrf.mxu0
        %v2249 = vadd.f32 0.0, %v2248
        %v2250 = vpop.f32.mrf.mxu0
        %v2251 = vpop.f32.mrf.mxu0
        %2252 = vdwg.mxu0
        %v2253 = vadd.f32 %v2105, %v2247
        %v2254 = vadd.f32 %v2106, %v2249
        %s2255 = scalar_lea.vmem %s3, 512
        %v2256 = vld [vmem:[%s2255] sm:$0xff]
        %v2257 = vld [vmem:[%s2255 + $0x8] sm:$0xff]
        %v2258 = vld [vmem:[%s2255 + $0x10] sm:$0xff]
        %v2259 = vld [vmem:[%s2255 + $0x18] sm:$0xff]
        %v2260 = vld [vmem:[%s2255 + $0x20] sm:$0xff]
        %v2261 = vld [vmem:[%s2255 + $0x28] sm:$0xff]
        %v2262 = vld [vmem:[%s2255 + $0x30] sm:$0xff]
        %v2263 = vld [vmem:[%s2255 + $0x38] sm:$0xff]
        %v2264 = vld [vmem:[%s2255 + $0x40] sm:$0xff]
        %v2265 = vld [vmem:[%s2255 + $0x48] sm:$0xff]
        %v2266 = vld [vmem:[%s2255 + $0x50] sm:$0xff]
        %v2267 = vld [vmem:[%s2255 + $0x58] sm:$0xff]
        %v2268 = vld [vmem:[%s2255 + $0x60] sm:$0xff]
        %v2269 = vld [vmem:[%s2255 + $0x68] sm:$0xff]
        %v2270 = vld [vmem:[%s2255 + $0x70] sm:$0xff]
        %v2271 = vld [vmem:[%s2255 + $0x78] sm:$0xff]
        %v2273 = vrot.slane %v1682, 1
        %v2291 = vunpack.c.l.b16 %v2256
        %v2292 = vunpack.c.h.b16 %v2256
        %v2293 = vunpack.c.l.b16 %v2257
        %v2294 = vunpack.c.h.b16 %v2257
        %v2295 = vunpack.c.l.b16 %v2258
        %v2296 = vunpack.c.h.b16 %v2258
        %v2297 = vunpack.c.l.b16 %v2259
        %v2298 = vunpack.c.h.b16 %v2259
        %v2299 = vunpack.c.l.b16 %v2260
        %v2300 = vunpack.c.h.b16 %v2260
        %v2301 = vunpack.c.l.b16 %v2261
        %v2302 = vunpack.c.h.b16 %v2261
        %v2303 = vunpack.c.l.b16 %v2262
        %v2304 = vunpack.c.h.b16 %v2262
        %v2305 = vunpack.c.l.b16 %v2263
        %v2306 = vunpack.c.h.b16 %v2263
        %v2307 = vunpack.c.l.b16 %v2264
        %v2308 = vunpack.c.h.b16 %v2264
        %v2309 = vunpack.c.l.b16 %v2265
        %v2310 = vunpack.c.h.b16 %v2265
        %v2311 = vunpack.c.l.b16 %v2266
        %v2312 = vunpack.c.h.b16 %v2266
        %v2313 = vunpack.c.l.b16 %v2267
        %v2314 = vunpack.c.h.b16 %v2267
        %v2315 = vunpack.c.l.b16 %v2268
        %v2316 = vunpack.c.h.b16 %v2268
        %v2317 = vunpack.c.l.b16 %v2269
        %v2318 = vunpack.c.h.b16 %v2269
        %v2319 = vunpack.c.l.b16 %v2270
        %v2320 = vunpack.c.h.b16 %v2270
        %v2321 = vunpack.c.l.b16 %v2271
        %v2322 = vunpack.c.h.b16 %v2271
        %v2323 = vpack.c.b16 %v2293, %v2291
        %v2324 = vpack.c.b16 %v2294, %v2292
        %v2325 = vpack.c.b16 %v2297, %v2295
        %v2326 = vpack.c.b16 %v2298, %v2296
        %v2327 = vpack.c.b16 %v2301, %v2299
        %v2328 = vpack.c.b16 %v2302, %v2300
        %v2329 = vpack.c.b16 %v2305, %v2303
        %v2330 = vpack.c.b16 %v2306, %v2304
        %v2331 = vpack.c.b16 %v2309, %v2307
        %v2332 = vpack.c.b16 %v2310, %v2308
        %v2333 = vpack.c.b16 %v2313, %v2311
        %v2334 = vpack.c.b16 %v2314, %v2312
        %v2335 = vpack.c.b16 %v2317, %v2315
        %v2336 = vpack.c.b16 %v2318, %v2316
        %v2337 = vpack.c.b16 %v2321, %v2319
        %v2338 = vpack.c.b16 %v2322, %v2320
        %2355 = vmatprep.subr.bf16.mxu0 %v2338
        %2356 = vmatpush1.bf16.msra.mxu0 %v2337
        %2357 = vmatprep.subr.bf16.mxu0 %v2336
        %2358 = vmatpush1.bf16.msra.mxu0 %v2335
        %2359 = vmatprep.subr.bf16.mxu0 %v2334
        %2360 = vmatpush1.bf16.msra.mxu0 %v2333
        %2361 = vmatprep.subr.bf16.mxu0 %v2332
        %2362 = vmatpush1.bf16.msra.mxu0 %v2331
        %2363 = vmatprep.subr.bf16.mxu0 %v2330
        %2364 = vmatpush1.bf16.msra.mxu0 %v2329
        %2365 = vmatprep.subr.bf16.mxu0 %v2328
        %2366 = vmatpush1.bf16.msra.mxu0 %v2327
        %2367 = vmatprep.subr.bf16.mxu0 %v2326
        %2368 = vmatpush1.bf16.msra.mxu0 %v2325
        %2369 = vmatprep.subr.bf16.mxu0 %v2324
        %2370 = vmatpush1.bf16.msra.mxu0 %v2323
        %2371 = vmatprep.subr.bf16.mxu0 0
        %2372 = vmatpush2.bf16.msra.mxu0 0
        %2373 = vmatprep.subr.bf16.mxu0 0
        %2374 = vmatpush2.bf16.msra.mxu0 0
        %2375 = vmatprep.subr.bf16.mxu0 0
        %2376 = vmatpush2.bf16.msra.mxu0 0
        %2377 = vmatprep.subr.bf16.mxu0 0
        %2378 = vmatpush2.bf16.msra.mxu0 0
        %2379 = vmatprep.subr.bf16.mxu0 0
        %2380 = vmatpush2.bf16.msra.mxu0 0
        %2381 = vmatprep.subr.bf16.mxu0 0
        %2382 = vmatpush2.bf16.msra.mxu0 0
        %2383 = vmatprep.subr.bf16.mxu0 0
        %2384 = vmatpush2.bf16.msra.mxu0 0
        %2385 = vmatprep.subr.bf16.mxu0 0
        %2386 = vmatpush2.bf16.msra.mxu0 0
        %2387 = vmatprep.mubr.bf16.mxu0 0
        %2388 = vmatmul.mubr.bf16.gmra.mxu0 %v2273
        %v2389 = vpop.f32.mrf.mxu0
        %v2390 = vadd.f32 0.0, %v2389
        %v2391 = vpop.f32.mrf.mxu0
        %v2392 = vadd.f32 0.0, %v2391
        %v2393 = vpop.f32.mrf.mxu0
        %v2394 = vpop.f32.mrf.mxu0
        %2395 = vdwg.mxu0
        %v2396 = vadd.f32 %v2253, %v2390
        %v2397 = vadd.f32 %v2254, %v2392
        %2398 = vmatprep.subr.bf16.mxu0 %v1780
        %2399 = vmatpush1.bf16.msra.mxu0 %v1779
        %2400 = vmatprep.subr.bf16.mxu0 %v1778
        %2401 = vmatpush1.bf16.msra.mxu0 %v1777
        %2402 = vmatprep.subr.bf16.mxu0 %v1776
        %2403 = vmatpush1.bf16.msra.mxu0 %v1775
        %2404 = vmatprep.subr.bf16.mxu0 %v1774
        %2405 = vmatpush1.bf16.msra.mxu0 %v1773
        %2406 = vmatprep.subr.bf16.mxu0 %v1772
        %2407 = vmatpush1.bf16.msra.mxu0 %v1771
        %2408 = vmatprep.subr.bf16.mxu0 %v1770
        %2409 = vmatpush1.bf16.msra.mxu0 %v1769
        %2410 = vmatprep.subr.bf16.mxu0 %v1768
        %2411 = vmatpush1.bf16.msra.mxu0 %v1767
        %2412 = vmatprep.subr.bf16.mxu0 %v1766
        %2413 = vmatpush1.bf16.msra.mxu0 %v1765
        %2414 = vmatprep.subr.bf16.mxu0 0
        %2415 = vmatpush2.bf16.msra.mxu0 0
        %2416 = vmatprep.subr.bf16.mxu0 0
        %2417 = vmatpush2.bf16.msra.mxu0 0
        %2418 = vmatprep.subr.bf16.mxu0 0
        %2419 = vmatpush2.bf16.msra.mxu0 0
        %2420 = vmatprep.subr.bf16.mxu0 0
        %2421 = vmatpush2.bf16.msra.mxu0 0
        %2422 = vmatprep.subr.bf16.mxu0 0
        %2423 = vmatpush2.bf16.msra.mxu0 0
        %2424 = vmatprep.subr.bf16.mxu0 0
        %2425 = vmatpush2.bf16.msra.mxu0 0
        %2426 = vmatprep.subr.bf16.mxu0 0
        %2427 = vmatpush2.bf16.msra.mxu0 0
        %2428 = vmatprep.subr.bf16.mxu0 0
        %2429 = vmatpush2.bf16.msra.mxu0 0
        %2430 = vmatprep.mubr.bf16.mxu0 0
        %2431 = vmatmul.mubr.bf16.gmra.mxu0 %v1982
        %v2432 = vpop.f32.mrf.mxu0
        %v2433 = vadd.f32 0.0, %v2432
        %v2434 = vpop.f32.mrf.mxu0
        %v2435 = vadd.f32 0.0, %v2434
        %v2436 = vpop.f32.mrf.mxu0
        %v2437 = vpop.f32.mrf.mxu0
        %2438 = vdwg.mxu0
        %2439 = vmatprep.subr.bf16.mxu0 %v1901
        %2440 = vmatpush1.bf16.msra.mxu0 %v1900
        %2441 = vmatprep.subr.bf16.mxu0 %v1899
        %2442 = vmatpush1.bf16.msra.mxu0 %v1898
        %2443 = vmatprep.subr.bf16.mxu0 %v1897
        %2444 = vmatpush1.bf16.msra.mxu0 %v1896
        %2445 = vmatprep.subr.bf16.mxu0 %v1895
        %2446 = vmatpush1.bf16.msra.mxu0 %v1894
        %2447 = vmatprep.subr.bf16.mxu0 %v1893
        %2448 = vmatpush1.bf16.msra.mxu0 %v1892
        %2449 = vmatprep.subr.bf16.mxu0 %v1891
        %2450 = vmatpush1.bf16.msra.mxu0 %v1890
        %2451 = vmatprep.subr.bf16.mxu0 %v1889
        %2452 = vmatpush1.bf16.msra.mxu0 %v1888
        %2453 = vmatprep.subr.bf16.mxu0 %v1887
        %2454 = vmatpush1.bf16.msra.mxu0 %v1886
        %2455 = vmatprep.subr.bf16.mxu0 0
        %2456 = vmatpush2.bf16.msra.mxu0 0
        %2457 = vmatprep.subr.bf16.mxu0 0
        %2458 = vmatpush2.bf16.msra.mxu0 0
        %2459 = vmatprep.subr.bf16.mxu0 0
        %2460 = vmatpush2.bf16.msra.mxu0 0
        %2461 = vmatprep.subr.bf16.mxu0 0
        %2462 = vmatpush2.bf16.msra.mxu0 0
        %2463 = vmatprep.subr.bf16.mxu0 0
        %2464 = vmatpush2.bf16.msra.mxu0 0
        %2465 = vmatprep.subr.bf16.mxu0 0
        %2466 = vmatpush2.bf16.msra.mxu0 0
        %2467 = vmatprep.subr.bf16.mxu0 0
        %2468 = vmatpush2.bf16.msra.mxu0 0
        %2469 = vmatprep.subr.bf16.mxu0 0
        %2470 = vmatpush2.bf16.msra.mxu0 0
        %2471 = vmatprep.mubr.bf16.mxu0 0
        %2472 = vmatmul.mubr.bf16.gmra.mxu0 %v1699
        %v2473 = vpop.f32.mrf.mxu0
        %v2474 = vadd.f32 %v2433, %v2473
        %v2475 = vpop.f32.mrf.mxu0
        %v2476 = vadd.f32 %v2435, %v2475
        %v2477 = vpop.f32.mrf.mxu0
        %v2478 = vpop.f32.mrf.mxu0
        %2479 = vdwg.mxu0
        %2480 = vmatprep.subr.bf16.mxu0 %v2047
        %2481 = vmatpush1.bf16.msra.mxu0 %v2046
        %2482 = vmatprep.subr.bf16.mxu0 %v2045
        %2483 = vmatpush1.bf16.msra.mxu0 %v2044
        %2484 = vmatprep.subr.bf16.mxu0 %v2043
        %2485 = vmatpush1.bf16.msra.mxu0 %v2042
        %2486 = vmatprep.subr.bf16.mxu0 %v2041
        %2487 = vmatpush1.bf16.msra.mxu0 %v2040
        %2488 = vmatprep.subr.bf16.mxu0 %v2039
        %2489 = vmatpush1.bf16.msra.mxu0 %v2038
        %2490 = vmatprep.subr.bf16.mxu0 %v2037
        %2491 = vmatpush1.bf16.msra.mxu0 %v2036
        %2492 = vmatprep.subr.bf16.mxu0 %v2035
        %2493 = vmatpush1.bf16.msra.mxu0 %v2034
        %2494 = vmatprep.subr.bf16.mxu0 %v2033
        %2495 = vmatpush1.bf16.msra.mxu0 %v2032
        %2496 = vmatprep.subr.bf16.mxu0 0
        %2497 = vmatpush2.bf16.msra.mxu0 0
        %2498 = vmatprep.subr.bf16.mxu0 0
        %2499 = vmatpush2.bf16.msra.mxu0 0
        %2500 = vmatprep.subr.bf16.mxu0 0
        %2501 = vmatpush2.bf16.msra.mxu0 0
        %2502 = vmatprep.subr.bf16.mxu0 0
        %2503 = vmatpush2.bf16.msra.mxu0 0
        %2504 = vmatprep.subr.bf16.mxu0 0
        %2505 = vmatpush2.bf16.msra.mxu0 0
        %2506 = vmatprep.subr.bf16.mxu0 0
        %2507 = vmatpush2.bf16.msra.mxu0 0
        %2508 = vmatprep.subr.bf16.mxu0 0
        %2509 = vmatpush2.bf16.msra.mxu0 0
        %2510 = vmatprep.subr.bf16.mxu0 0
        %2511 = vmatpush2.bf16.msra.mxu0 0
        %2512 = vmatprep.mubr.bf16.mxu0 0
        %2513 = vmatmul.mubr.bf16.gmra.mxu0 %v2130
        %v2514 = vpop.f32.mrf.mxu0
        %v2515 = vadd.f32 0.0, %v2514
        %v2516 = vpop.f32.mrf.mxu0
        %v2517 = vadd.f32 0.0, %v2516
        %v2518 = vpop.f32.mrf.mxu0
        %v2519 = vpop.f32.mrf.mxu0
        %2520 = vdwg.mxu0
        %v2521 = vadd.f32 %v2474, %v2515
        %v2522 = vadd.f32 %v2476, %v2517
        %2523 = vmatprep.subr.bf16.mxu0 %v2195
        %2524 = vmatpush1.bf16.msra.mxu0 %v2194
        %2525 = vmatprep.subr.bf16.mxu0 %v2193
        %2526 = vmatpush1.bf16.msra.mxu0 %v2192
        %2527 = vmatprep.subr.bf16.mxu0 %v2191
        %2528 = vmatpush1.bf16.msra.mxu0 %v2190
        %2529 = vmatprep.subr.bf16.mxu0 %v2189
        %2530 = vmatpush1.bf16.msra.mxu0 %v2188
        %2531 = vmatprep.subr.bf16.mxu0 %v2187
        %2532 = vmatpush1.bf16.msra.mxu0 %v2186
        %2533 = vmatprep.subr.bf16.mxu0 %v2185
        %2534 = vmatpush1.bf16.msra.mxu0 %v2184
        %2535 = vmatprep.subr.bf16.mxu0 %v2183
        %2536 = vmatpush1.bf16.msra.mxu0 %v2182
        %2537 = vmatprep.subr.bf16.mxu0 %v2181
        %2538 = vmatpush1.bf16.msra.mxu0 %v2180
        %2539 = vmatprep.subr.bf16.mxu0 0
        %2540 = vmatpush2.bf16.msra.mxu0 0
        %2541 = vmatprep.subr.bf16.mxu0 0
        %2542 = vmatpush2.bf16.msra.mxu0 0
        %2543 = vmatprep.subr.bf16.mxu0 0
        %2544 = vmatpush2.bf16.msra.mxu0 0
        %2545 = vmatprep.subr.bf16.mxu0 0
        %2546 = vmatpush2.bf16.msra.mxu0 0
        %2547 = vmatprep.subr.bf16.mxu0 0
        %2548 = vmatpush2.bf16.msra.mxu0 0
        %2549 = vmatprep.subr.bf16.mxu0 0
        %2550 = vmatpush2.bf16.msra.mxu0 0
        %2551 = vmatprep.subr.bf16.mxu0 0
        %2552 = vmatpush2.bf16.msra.mxu0 0
        %2553 = vmatprep.subr.bf16.mxu0 0
        %2554 = vmatpush2.bf16.msra.mxu0 0
        %2555 = vmatprep.mubr.bf16.mxu0 0
        %2556 = vmatmul.mubr.bf16.gmra.mxu0 %v2273
        %v2557 = vpop.f32.mrf.mxu0
        %v2558 = vadd.f32 0.0, %v2557
        %v2559 = vpop.f32.mrf.mxu0
        %v2560 = vadd.f32 0.0, %v2559
        %v2561 = vpop.f32.mrf.mxu0
        %v2562 = vpop.f32.mrf.mxu0
        %2563 = vdwg.mxu0
        %v2564 = vadd.f32 %v2521, %v2558
        %v2565 = vadd.f32 %v2522, %v2560
        %v2567 = vrot.slane %v1699, 1
        %2569 = vmatprep.subr.bf16.mxu0 %v2338
        %2570 = vmatpush1.bf16.msra.mxu0 %v2337
        %2571 = vmatprep.subr.bf16.mxu0 %v2336
        %2572 = vmatpush1.bf16.msra.mxu0 %v2335
        %2573 = vmatprep.subr.bf16.mxu0 %v2334
        %2574 = vmatpush1.bf16.msra.mxu0 %v2333
        %2575 = vmatprep.subr.bf16.mxu0 %v2332
        %2576 = vmatpush1.bf16.msra.mxu0 %v2331
        %2577 = vmatprep.subr.bf16.mxu0 %v2330
        %2578 = vmatpush1.bf16.msra.mxu0 %v2329
        %2579 = vmatprep.subr.bf16.mxu0 %v2328
        %2580 = vmatpush1.bf16.msra.mxu0 %v2327
        %2581 = vmatprep.subr.bf16.mxu0 %v2326
        %2582 = vmatpush1.bf16.msra.mxu0 %v2325
        %2583 = vmatprep.subr.bf16.mxu0 %v2324
        %2584 = vmatpush1.bf16.msra.mxu0 %v2323
        %2585 = vmatprep.subr.bf16.mxu0 0
        %2586 = vmatpush2.bf16.msra.mxu0 0
        %2587 = vmatprep.subr.bf16.mxu0 0
        %2588 = vmatpush2.bf16.msra.mxu0 0
        %2589 = vmatprep.subr.bf16.mxu0 0
        %2590 = vmatpush2.bf16.msra.mxu0 0
        %2591 = vmatprep.subr.bf16.mxu0 0
        %2592 = vmatpush2.bf16.msra.mxu0 0
        %2593 = vmatprep.subr.bf16.mxu0 0
        %2594 = vmatpush2.bf16.msra.mxu0 0
        %2595 = vmatprep.subr.bf16.mxu0 0
        %2596 = vmatpush2.bf16.msra.mxu0 0
        %2597 = vmatprep.subr.bf16.mxu0 0
        %2598 = vmatpush2.bf16.msra.mxu0 0
        %2599 = vmatprep.subr.bf16.mxu0 0
        %2600 = vmatpush2.bf16.msra.mxu0 0
        %2601 = vmatprep.mubr.bf16.mxu0 0
        %2602 = vmatmul.mubr.bf16.gmra.mxu0 %v2567
        %v2603 = vpop.f32.mrf.mxu0
        %v2604 = vadd.f32 0.0, %v2603
        %v2605 = vpop.f32.mrf.mxu0
        %v2606 = vadd.f32 0.0, %v2605
        %v2607 = vpop.f32.mrf.mxu0
        %v2608 = vpop.f32.mrf.mxu0
        %2609 = vdwg.mxu0
        %v2610 = vadd.f32 %v2564, %v2604
        %v2611 = vadd.f32 %v2565, %v2606
        %v2612 = vmax.f32 %v2396, %v2397
        %v2613 = vmax.f32 %v2610, %v2611
        %v2614 = vmax.f32 %v2612, %v2613
        %v2615 = vld [vmem:[%s4] sm:$0x1]
        %v2617 = vlaneseq
        %v2618 = vshrl.u32 %v2617, 7
        %v2619 = vsub.s32 0, %v2618
        %v2620 = vrot.slane %v2615, %v2619
        %v2622 = vadd.f32 %v2614, %v2620
        %v2623 = vmax.f32 %v2622, 0.0
        %v2624 = vpack.c.bf16 %v2623, %v2623
        %v2625 = vld [vmem:[%s5] sm:$0xf]
        %v2626 = vld [vmem:[%s5 + $0x4] sm:$0xf]
        %v2627 = vld [vmem:[%s5 + $0x8] sm:$0xf]
        %v2628 = vld [vmem:[%s5 + $0xc] sm:$0xf]
        %v2629 = vld [vmem:[%s5 + $0x10] sm:$0xf]
        %v2630 = vld [vmem:[%s5 + $0x14] sm:$0xf]
        %v2631 = vld [vmem:[%s5 + $0x18] sm:$0xf]
        %v2632 = vld [vmem:[%s5 + $0x1c] sm:$0xf]
        %v2633 = vld [vmem:[%s5 + $0x20] sm:$0xf]
        %v2634 = vld [vmem:[%s5 + $0x24] sm:$0xf]
        %v2635 = vld [vmem:[%s5 + $0x28] sm:$0xf]
        %v2636 = vld [vmem:[%s5 + $0x2c] sm:$0xf]
        %v2637 = vld [vmem:[%s5 + $0x30] sm:$0xf]
        %v2638 = vld [vmem:[%s5 + $0x34] sm:$0xf]
        %v2639 = vld [vmem:[%s5 + $0x38] sm:$0xf]
        %v2640 = vld [vmem:[%s5 + $0x3c] sm:$0xf]
        %s2641 = scalar_lea.vmem %s5, 64
        %v2642 = vld [vmem:[%s2641] sm:$0xf]
        %v2643 = vld [vmem:[%s2641 + $0x4] sm:$0xf]
        %v2644 = vld [vmem:[%s2641 + $0x8] sm:$0xf]
        %v2645 = vld [vmem:[%s2641 + $0xc] sm:$0xf]
        %v2646 = vld [vmem:[%s2641 + $0x10] sm:$0xf]
        %v2647 = vld [vmem:[%s2641 + $0x14] sm:$0xf]
        %v2648 = vld [vmem:[%s2641 + $0x18] sm:$0xf]
        %v2649 = vld [vmem:[%s2641 + $0x1c] sm:$0xf]
        %v2650 = vld [vmem:[%s2641 + $0x20] sm:$0xf]
        %v2651 = vld [vmem:[%s2641 + $0x24] sm:$0xf]
        %v2652 = vld [vmem:[%s2641 + $0x28] sm:$0xf]
        %v2653 = vld [vmem:[%s2641 + $0x2c] sm:$0xf]
        %v2654 = vld [vmem:[%s2641 + $0x30] sm:$0xf]
        %v2655 = vld [vmem:[%s2641 + $0x34] sm:$0xf]
        %v2656 = vld [vmem:[%s2641 + $0x38] sm:$0xf]
        %v2657 = vld [vmem:[%s2641 + $0x3c] sm:$0xf]
        %v2659 = vshrl.u32 %v2624, 16
        %v2678 = vunpack.c.l.b16 %v2642
        %v2679 = vunpack.c.l.b16 %v2643
        %v2680 = vunpack.c.l.b16 %v2644
        %v2681 = vunpack.c.l.b16 %v2645
        %v2682 = vunpack.c.l.b16 %v2646
        %v2683 = vunpack.c.l.b16 %v2647
        %v2684 = vunpack.c.l.b16 %v2648
        %v2685 = vunpack.c.l.b16 %v2649
        %v2686 = vunpack.c.l.b16 %v2650
        %v2687 = vunpack.c.l.b16 %v2651
        %v2688 = vunpack.c.l.b16 %v2652
        %v2689 = vunpack.c.l.b16 %v2653
        %v2690 = vunpack.c.l.b16 %v2654
        %v2691 = vunpack.c.l.b16 %v2655
        %v2692 = vunpack.c.l.b16 %v2656
        %v2693 = vunpack.c.l.b16 %v2657
        %v2694 = vpack.c.b16 %v2679, %v2678
        %v2695 = vpack.c.b16 %v2681, %v2680
        %v2696 = vpack.c.b16 %v2683, %v2682
        %v2697 = vpack.c.b16 %v2685, %v2684
        %v2698 = vpack.c.b16 %v2687, %v2686
        %v2699 = vpack.c.b16 %v2689, %v2688
        %v2700 = vpack.c.b16 %v2691, %v2690
        %v2701 = vpack.c.b16 %v2693, %v2692
        %2710 = vmatprep.subr.bf16.mxu0 0
        %2711 = vmatpush1.bf16.msra.mxu0 %v2701
        %2712 = vmatprep.subr.bf16.mxu0 0
        %2713 = vmatpush1.bf16.msra.mxu0 %v2700
        %2714 = vmatprep.subr.bf16.mxu0 0
        %2715 = vmatpush1.bf16.msra.mxu0 %v2699
        %2716 = vmatprep.subr.bf16.mxu0 0
        %2717 = vmatpush1.bf16.msra.mxu0 %v2698
        %2718 = vmatprep.subr.bf16.mxu0 0
        %2719 = vmatpush1.bf16.msra.mxu0 %v2697
        %2720 = vmatprep.subr.bf16.mxu0 0
        %2721 = vmatpush1.bf16.msra.mxu0 %v2696
        %2722 = vmatprep.subr.bf16.mxu0 0
        %2723 = vmatpush1.bf16.msra.mxu0 %v2695
        %2724 = vmatprep.subr.bf16.mxu0 0
        %2725 = vmatpush1.bf16.msra.mxu0 %v2694
        %2726 = vmatprep.subr.bf16.mxu0 0
        %2727 = vmatpush2.bf16.msra.mxu0 0
        %2728 = vmatprep.subr.bf16.mxu0 0
        %2729 = vmatpush2.bf16.msra.mxu0 0
        %2730 = vmatprep.subr.bf16.mxu0 0
        %2731 = vmatpush2.bf16.msra.mxu0 0
        %2732 = vmatprep.subr.bf16.mxu0 0
        %2733 = vmatpush2.bf16.msra.mxu0 0
        %2734 = vmatprep.subr.bf16.mxu0 0
        %2735 = vmatpush2.bf16.msra.mxu0 0
        %2736 = vmatprep.subr.bf16.mxu0 0
        %2737 = vmatpush2.bf16.msra.mxu0 0
        %2738 = vmatprep.subr.bf16.mxu0 0
        %2739 = vmatpush2.bf16.msra.mxu0 0
        %2740 = vmatprep.subr.bf16.mxu0 0
        %2741 = vmatpush2.bf16.msra.mxu0 0
        %2742 = vmatprep.mubr.bf16.mxu0 0
        %2743 = vmatmul.mubr.bf16.gmra.mxu0 %v2659
        %v2744 = vpop.f32.mrf.mxu0
        %v2745 = vadd.f32 0.0, %v2744
        %v2746 = vpop.f32.mrf.mxu0
        %v2747 = vpop.f32.mrf.mxu0
        %v2748 = vpop.f32.mrf.mxu0
        %2749 = vdwg.mxu0
        %v2766 = vunpack.c.l.b16 %v2625
        %v2767 = vunpack.c.l.b16 %v2626
        %v2768 = vunpack.c.l.b16 %v2627
        %v2769 = vunpack.c.l.b16 %v2628
        %v2770 = vunpack.c.l.b16 %v2629
        %v2771 = vunpack.c.l.b16 %v2630
        %v2772 = vunpack.c.l.b16 %v2631
        %v2773 = vunpack.c.l.b16 %v2632
        %v2774 = vunpack.c.l.b16 %v2633
        %v2775 = vunpack.c.l.b16 %v2634
        %v2776 = vunpack.c.l.b16 %v2635
        %v2777 = vunpack.c.l.b16 %v2636
        %v2778 = vunpack.c.l.b16 %v2637
        %v2779 = vunpack.c.l.b16 %v2638
        %v2780 = vunpack.c.l.b16 %v2639
        %v2781 = vunpack.c.l.b16 %v2640
        %v2782 = vpack.c.b16 %v2767, %v2766
        %v2783 = vpack.c.b16 %v2769, %v2768
        %v2784 = vpack.c.b16 %v2771, %v2770
        %v2785 = vpack.c.b16 %v2773, %v2772
        %v2786 = vpack.c.b16 %v2775, %v2774
        %v2787 = vpack.c.b16 %v2777, %v2776
        %v2788 = vpack.c.b16 %v2779, %v2778
        %v2789 = vpack.c.b16 %v2781, %v2780
        %2798 = vmatprep.subr.bf16.mxu0 0
        %2799 = vmatpush1.bf16.msra.mxu0 %v2789
        %2800 = vmatprep.subr.bf16.mxu0 0
        %2801 = vmatpush1.bf16.msra.mxu0 %v2788
        %2802 = vmatprep.subr.bf16.mxu0 0
        %2803 = vmatpush1.bf16.msra.mxu0 %v2787
        %2804 = vmatprep.subr.bf16.mxu0 0
        %2805 = vmatpush1.bf16.msra.mxu0 %v2786
        %2806 = vmatprep.subr.bf16.mxu0 0
        %2807 = vmatpush1.bf16.msra.mxu0 %v2785
        %2808 = vmatprep.subr.bf16.mxu0 0
        %2809 = vmatpush1.bf16.msra.mxu0 %v2784
        %2810 = vmatprep.subr.bf16.mxu0 0
        %2811 = vmatpush1.bf16.msra.mxu0 %v2783
        %2812 = vmatprep.subr.bf16.mxu0 0
        %2813 = vmatpush1.bf16.msra.mxu0 %v2782
        %2814 = vmatprep.subr.bf16.mxu0 0
        %2815 = vmatpush2.bf16.msra.mxu0 0
        %2816 = vmatprep.subr.bf16.mxu0 0
        %2817 = vmatpush2.bf16.msra.mxu0 0
        %2818 = vmatprep.subr.bf16.mxu0 0
        %2819 = vmatpush2.bf16.msra.mxu0 0
        %2820 = vmatprep.subr.bf16.mxu0 0
        %2821 = vmatpush2.bf16.msra.mxu0 0
        %2822 = vmatprep.subr.bf16.mxu0 0
        %2823 = vmatpush2.bf16.msra.mxu0 0
        %2824 = vmatprep.subr.bf16.mxu0 0
        %2825 = vmatpush2.bf16.msra.mxu0 0
        %2826 = vmatprep.subr.bf16.mxu0 0
        %2827 = vmatpush2.bf16.msra.mxu0 0
        %2828 = vmatprep.subr.bf16.mxu0 0
        %2829 = vmatpush2.bf16.msra.mxu0 0
        %2830 = vmatprep.mubr.bf16.mxu0 0
        %2831 = vmatmul.mubr.bf16.gmra.mxu0 %v2624
        %v2832 = vpop.f32.mrf.mxu0
        %v2833 = vadd.f32 %v2745, %v2832
        %v2834 = vpop.f32.mrf.mxu0
        %v2835 = vpop.f32.mrf.mxu0
        %v2836 = vpop.f32.mrf.mxu0
        %2837 = vdwg.mxu0
        %s2838 = scalar_lea.vmem %s5, 128
        %v2839 = vld [vmem:[%s2838] sm:$0xf]
        %v2840 = vld [vmem:[%s2838 + $0x4] sm:$0xf]
        %v2841 = vld [vmem:[%s2838 + $0x8] sm:$0xf]
        %v2842 = vld [vmem:[%s2838 + $0xc] sm:$0xf]
        %v2843 = vld [vmem:[%s2838 + $0x10] sm:$0xf]
        %v2844 = vld [vmem:[%s2838 + $0x14] sm:$0xf]
        %v2845 = vld [vmem:[%s2838 + $0x18] sm:$0xf]
        %v2846 = vld [vmem:[%s2838 + $0x1c] sm:$0xf]
        %v2847 = vld [vmem:[%s2838 + $0x20] sm:$0xf]
        %v2848 = vld [vmem:[%s2838 + $0x24] sm:$0xf]
        %v2849 = vld [vmem:[%s2838 + $0x28] sm:$0xf]
        %v2850 = vld [vmem:[%s2838 + $0x2c] sm:$0xf]
        %v2851 = vld [vmem:[%s2838 + $0x30] sm:$0xf]
        %v2852 = vld [vmem:[%s2838 + $0x34] sm:$0xf]
        %v2853 = vld [vmem:[%s2838 + $0x38] sm:$0xf]
        %v2854 = vld [vmem:[%s2838 + $0x3c] sm:$0xf]
        %v2856 = vrot.slane %v2624, 1
        %v2874 = vunpack.c.l.b16 %v2839
        %v2875 = vunpack.c.l.b16 %v2840
        %v2876 = vunpack.c.l.b16 %v2841
        %v2877 = vunpack.c.l.b16 %v2842
        %v2878 = vunpack.c.l.b16 %v2843
        %v2879 = vunpack.c.l.b16 %v2844
        %v2880 = vunpack.c.l.b16 %v2845
        %v2881 = vunpack.c.l.b16 %v2846
        %v2882 = vunpack.c.l.b16 %v2847
        %v2883 = vunpack.c.l.b16 %v2848
        %v2884 = vunpack.c.l.b16 %v2849
        %v2885 = vunpack.c.l.b16 %v2850
        %v2886 = vunpack.c.l.b16 %v2851
        %v2887 = vunpack.c.l.b16 %v2852
        %v2888 = vunpack.c.l.b16 %v2853
        %v2889 = vunpack.c.l.b16 %v2854
        %v2890 = vpack.c.b16 %v2875, %v2874
        %v2891 = vpack.c.b16 %v2877, %v2876
        %v2892 = vpack.c.b16 %v2879, %v2878
        %v2893 = vpack.c.b16 %v2881, %v2880
        %v2894 = vpack.c.b16 %v2883, %v2882
        %v2895 = vpack.c.b16 %v2885, %v2884
        %v2896 = vpack.c.b16 %v2887, %v2886
        %v2897 = vpack.c.b16 %v2889, %v2888
        %2906 = vmatprep.subr.bf16.mxu0 0
        %2907 = vmatpush1.bf16.msra.mxu0 %v2897
        %2908 = vmatprep.subr.bf16.mxu0 0
        %2909 = vmatpush1.bf16.msra.mxu0 %v2896
        %2910 = vmatprep.subr.bf16.mxu0 0
        %2911 = vmatpush1.bf16.msra.mxu0 %v2895
        %2912 = vmatprep.subr.bf16.mxu0 0
        %2913 = vmatpush1.bf16.msra.mxu0 %v2894
        %2914 = vmatprep.subr.bf16.mxu0 0
        %2915 = vmatpush1.bf16.msra.mxu0 %v2893
        %2916 = vmatprep.subr.bf16.mxu0 0
        %2917 = vmatpush1.bf16.msra.mxu0 %v2892
        %2918 = vmatprep.subr.bf16.mxu0 0
        %2919 = vmatpush1.bf16.msra.mxu0 %v2891
        %2920 = vmatprep.subr.bf16.mxu0 0
        %2921 = vmatpush1.bf16.msra.mxu0 %v2890
        %2922 = vmatprep.subr.bf16.mxu0 0
        %2923 = vmatpush2.bf16.msra.mxu0 0
        %2924 = vmatprep.subr.bf16.mxu0 0
        %2925 = vmatpush2.bf16.msra.mxu0 0
        %2926 = vmatprep.subr.bf16.mxu0 0
        %2927 = vmatpush2.bf16.msra.mxu0 0
        %2928 = vmatprep.subr.bf16.mxu0 0
        %2929 = vmatpush2.bf16.msra.mxu0 0
        %2930 = vmatprep.subr.bf16.mxu0 0
        %2931 = vmatpush2.bf16.msra.mxu0 0
        %2932 = vmatprep.subr.bf16.mxu0 0
        %2933 = vmatpush2.bf16.msra.mxu0 0
        %2934 = vmatprep.subr.bf16.mxu0 0
        %2935 = vmatpush2.bf16.msra.mxu0 0
        %2936 = vmatprep.subr.bf16.mxu0 0
        %2937 = vmatpush2.bf16.msra.mxu0 0
        %2938 = vmatprep.mubr.bf16.mxu0 0
        %2939 = vmatmul.mubr.bf16.gmra.mxu0 %v2856
        %v2940 = vpop.f32.mrf.mxu0
        %v2941 = vadd.f32 0.0, %v2940
        %v2942 = vpop.f32.mrf.mxu0
        %v2943 = vpop.f32.mrf.mxu0
        %v2944 = vpop.f32.mrf.mxu0
        %2945 = vdwg.mxu0
        %v2946 = vadd.f32 %v2833, %v2941
        %s2947 = scalar_lea.vmem %s5, 192
        %v2948 = vld [vmem:[%s2947] sm:$0xf]
        %v2949 = vld [vmem:[%s2947 + $0x4] sm:$0xf]
        %v2950 = vld [vmem:[%s2947 + $0x8] sm:$0xf]
        %v2951 = vld [vmem:[%s2947 + $0xc] sm:$0xf]
        %v2952 = vld [vmem:[%s2947 + $0x10] sm:$0xf]
        %v2953 = vld [vmem:[%s2947 + $0x14] sm:$0xf]
        %v2954 = vld [vmem:[%s2947 + $0x18] sm:$0xf]
        %v2955 = vld [vmem:[%s2947 + $0x1c] sm:$0xf]
        %v2956 = vld [vmem:[%s2947 + $0x20] sm:$0xf]
        %v2957 = vld [vmem:[%s2947 + $0x24] sm:$0xf]
        %v2958 = vld [vmem:[%s2947 + $0x28] sm:$0xf]
        %v2959 = vld [vmem:[%s2947 + $0x2c] sm:$0xf]
        %v2960 = vld [vmem:[%s2947 + $0x30] sm:$0xf]
        %v2961 = vld [vmem:[%s2947 + $0x34] sm:$0xf]
        %v2962 = vld [vmem:[%s2947 + $0x38] sm:$0xf]
        %v2963 = vld [vmem:[%s2947 + $0x3c] sm:$0xf]
        %v2964 = vrot.slane %v2659, 1
        %v2982 = vunpack.c.l.b16 %v2948
        %v2983 = vunpack.c.l.b16 %v2949
        %v2984 = vunpack.c.l.b16 %v2950
        %v2985 = vunpack.c.l.b16 %v2951
        %v2986 = vunpack.c.l.b16 %v2952
        %v2987 = vunpack.c.l.b16 %v2953
        %v2988 = vunpack.c.l.b16 %v2954
        %v2989 = vunpack.c.l.b16 %v2955
        %v2990 = vunpack.c.l.b16 %v2956
        %v2991 = vunpack.c.l.b16 %v2957
        %v2992 = vunpack.c.l.b16 %v2958
        %v2993 = vunpack.c.l.b16 %v2959
        %v2994 = vunpack.c.l.b16 %v2960
        %v2995 = vunpack.c.l.b16 %v2961
        %v2996 = vunpack.c.l.b16 %v2962
        %v2997 = vunpack.c.l.b16 %v2963
        %v2998 = vpack.c.b16 %v2983, %v2982
        %v2999 = vpack.c.b16 %v2985, %v2984
        %v3000 = vpack.c.b16 %v2987, %v2986
        %v3001 = vpack.c.b16 %v2989, %v2988
        %v3002 = vpack.c.b16 %v2991, %v2990
        %v3003 = vpack.c.b16 %v2993, %v2992
        %v3004 = vpack.c.b16 %v2995, %v2994
        %v3005 = vpack.c.b16 %v2997, %v2996
        %3014 = vmatprep.subr.bf16.mxu0 0
        %3015 = vmatpush1.bf16.msra.mxu0 %v3005
        %3016 = vmatprep.subr.bf16.mxu0 0
        %3017 = vmatpush1.bf16.msra.mxu0 %v3004
        %3018 = vmatprep.subr.bf16.mxu0 0
        %3019 = vmatpush1.bf16.msra.mxu0 %v3003
        %3020 = vmatprep.subr.bf16.mxu0 0
        %3021 = vmatpush1.bf16.msra.mxu0 %v3002
        %3022 = vmatprep.subr.bf16.mxu0 0
        %3023 = vmatpush1.bf16.msra.mxu0 %v3001
        %3024 = vmatprep.subr.bf16.mxu0 0
        %3025 = vmatpush1.bf16.msra.mxu0 %v3000
        %3026 = vmatprep.subr.bf16.mxu0 0
        %3027 = vmatpush1.bf16.msra.mxu0 %v2999
        %3028 = vmatprep.subr.bf16.mxu0 0
        %3029 = vmatpush1.bf16.msra.mxu0 %v2998
        %3030 = vmatprep.subr.bf16.mxu0 0
        %3031 = vmatpush2.bf16.msra.mxu0 0
        %3032 = vmatprep.subr.bf16.mxu0 0
        %3033 = vmatpush2.bf16.msra.mxu0 0
        %3034 = vmatprep.subr.bf16.mxu0 0
        %3035 = vmatpush2.bf16.msra.mxu0 0
        %3036 = vmatprep.subr.bf16.mxu0 0
        %3037 = vmatpush2.bf16.msra.mxu0 0
        %3038 = vmatprep.subr.bf16.mxu0 0
        %3039 = vmatpush2.bf16.msra.mxu0 0
        %3040 = vmatprep.subr.bf16.mxu0 0
        %3041 = vmatpush2.bf16.msra.mxu0 0
        %3042 = vmatprep.subr.bf16.mxu0 0
        %3043 = vmatpush2.bf16.msra.mxu0 0
        %3044 = vmatprep.subr.bf16.mxu0 0
        %3045 = vmatpush2.bf16.msra.mxu0 0
        %3046 = vmatprep.mubr.bf16.mxu0 0
        %3047 = vmatmul.mubr.bf16.gmra.mxu0 %v2964
        %v3048 = vpop.f32.mrf.mxu0
        %v3049 = vadd.f32 0.0, %v3048
        %v3050 = vpop.f32.mrf.mxu0
        %v3051 = vpop.f32.mrf.mxu0
        %v3052 = vpop.f32.mrf.mxu0
        %3053 = vdwg.mxu0
        %v3054 = vadd.f32 %v2946, %v3049
        %s3055 = scalar_lea.vmem %s5, 256
        %v3056 = vld [vmem:[%s3055] sm:$0xf]
        %v3057 = vld [vmem:[%s3055 + $0x4] sm:$0xf]
        %v3058 = vld [vmem:[%s3055 + $0x8] sm:$0xf]
        %v3059 = vld [vmem:[%s3055 + $0xc] sm:$0xf]
        %v3060 = vld [vmem:[%s3055 + $0x10] sm:$0xf]
        %v3061 = vld [vmem:[%s3055 + $0x14] sm:$0xf]
        %v3062 = vld [vmem:[%s3055 + $0x18] sm:$0xf]
        %v3063 = vld [vmem:[%s3055 + $0x1c] sm:$0xf]
        %v3064 = vld [vmem:[%s3055 + $0x20] sm:$0xf]
        %v3065 = vld [vmem:[%s3055 + $0x24] sm:$0xf]
        %v3066 = vld [vmem:[%s3055 + $0x28] sm:$0xf]
        %v3067 = vld [vmem:[%s3055 + $0x2c] sm:$0xf]
        %v3068 = vld [vmem:[%s3055 + $0x30] sm:$0xf]
        %v3069 = vld [vmem:[%s3055 + $0x34] sm:$0xf]
        %v3070 = vld [vmem:[%s3055 + $0x38] sm:$0xf]
        %v3071 = vld [vmem:[%s3055 + $0x3c] sm:$0xf]
        %v3072 = vrot.slane %v2624, 2
        %v3090 = vunpack.c.l.b16 %v3056
        %v3091 = vunpack.c.l.b16 %v3057
        %v3092 = vunpack.c.l.b16 %v3058
        %v3093 = vunpack.c.l.b16 %v3059
        %v3094 = vunpack.c.l.b16 %v3060
        %v3095 = vunpack.c.l.b16 %v3061
        %v3096 = vunpack.c.l.b16 %v3062
        %v3097 = vunpack.c.l.b16 %v3063
        %v3098 = vunpack.c.l.b16 %v3064
        %v3099 = vunpack.c.l.b16 %v3065
        %v3100 = vunpack.c.l.b16 %v3066
        %v3101 = vunpack.c.l.b16 %v3067
        %v3102 = vunpack.c.l.b16 %v3068
        %v3103 = vunpack.c.l.b16 %v3069
        %v3104 = vunpack.c.l.b16 %v3070
        %v3105 = vunpack.c.l.b16 %v3071
        %v3106 = vpack.c.b16 %v3091, %v3090
        %v3107 = vpack.c.b16 %v3093, %v3092
        %v3108 = vpack.c.b16 %v3095, %v3094
        %v3109 = vpack.c.b16 %v3097, %v3096
        %v3110 = vpack.c.b16 %v3099, %v3098
        %v3111 = vpack.c.b16 %v3101, %v3100
        %v3112 = vpack.c.b16 %v3103, %v3102
        %v3113 = vpack.c.b16 %v3105, %v3104
        %3122 = vmatprep.subr.bf16.mxu0 0
        %3123 = vmatpush1.bf16.msra.mxu0 %v3113
        %3124 = vmatprep.subr.bf16.mxu0 0
        %3125 = vmatpush1.bf16.msra.mxu0 %v3112
        %3126 = vmatprep.subr.bf16.mxu0 0
        %3127 = vmatpush1.bf16.msra.mxu0 %v3111
        %3128 = vmatprep.subr.bf16.mxu0 0
        %3129 = vmatpush1.bf16.msra.mxu0 %v3110
        %3130 = vmatprep.subr.bf16.mxu0 0
        %3131 = vmatpush1.bf16.msra.mxu0 %v3109
        %3132 = vmatprep.subr.bf16.mxu0 0
        %3133 = vmatpush1.bf16.msra.mxu0 %v3108
        %3134 = vmatprep.subr.bf16.mxu0 0
        %3135 = vmatpush1.bf16.msra.mxu0 %v3107
        %3136 = vmatprep.subr.bf16.mxu0 0
        %3137 = vmatpush1.bf16.msra.mxu0 %v3106
        %3138 = vmatprep.subr.bf16.mxu0 0
        %3139 = vmatpush2.bf16.msra.mxu0 0
        %3140 = vmatprep.subr.bf16.mxu0 0
        %3141 = vmatpush2.bf16.msra.mxu0 0
        %3142 = vmatprep.subr.bf16.mxu0 0
        %3143 = vmatpush2.bf16.msra.mxu0 0
        %3144 = vmatprep.subr.bf16.mxu0 0
        %3145 = vmatpush2.bf16.msra.mxu0 0
        %3146 = vmatprep.subr.bf16.mxu0 0
        %3147 = vmatpush2.bf16.msra.mxu0 0
        %3148 = vmatprep.subr.bf16.mxu0 0
        %3149 = vmatpush2.bf16.msra.mxu0 0
        %3150 = vmatprep.subr.bf16.mxu0 0
        %3151 = vmatpush2.bf16.msra.mxu0 0
        %3152 = vmatprep.subr.bf16.mxu0 0
        %3153 = vmatpush2.bf16.msra.mxu0 0
        %3154 = vmatprep.mubr.bf16.mxu0 0
        %3155 = vmatmul.mubr.bf16.gmra.mxu0 %v3072
        %v3156 = vpop.f32.mrf.mxu0
        %v3157 = vadd.f32 0.0, %v3156
        %v3158 = vpop.f32.mrf.mxu0
        %v3159 = vpop.f32.mrf.mxu0
        %v3160 = vpop.f32.mrf.mxu0
        %3161 = vdwg.mxu0
        %v3162 = vadd.f32 %v3054, %v3157
        %v3163 = vld [vmem:[%s6] sm:$0x1]
        %v3164 = vadd.f32 %v3162, %v3163
        %v3165 = vmax.f32 %v3164, 0.0
        %v3166 = vpack.c.bf16 %v3165, %v3165
        %v3167 = vld [vmem:[%s7] sm:$0xf]
        %v3168 = vld [vmem:[%s7 + $0x4] sm:$0xf]
        %v3169 = vld [vmem:[%s7 + $0x8] sm:$0xf]
        %v3170 = vld [vmem:[%s7 + $0xc] sm:$0xf]
        %v3171 = vld [vmem:[%s7 + $0x10] sm:$0xf]
        %v3172 = vld [vmem:[%s7 + $0x14] sm:$0xf]
        %v3173 = vld [vmem:[%s7 + $0x18] sm:$0xf]
        %v3174 = vld [vmem:[%s7 + $0x1c] sm:$0xf]
        %v3175 = vld [vmem:[%s7 + $0x20] sm:$0xf]
        %v3176 = vld [vmem:[%s7 + $0x24] sm:$0xf]
        %v3177 = vld [vmem:[%s7 + $0x28] sm:$0xf]
        %v3178 = vld [vmem:[%s7 + $0x2c] sm:$0xf]
        %v3179 = vld [vmem:[%s7 + $0x30] sm:$0xf]
        %v3180 = vld [vmem:[%s7 + $0x34] sm:$0xf]
        %v3181 = vld [vmem:[%s7 + $0x38] sm:$0xf]
        %v3182 = vld [vmem:[%s7 + $0x3c] sm:$0xf]
        %v3183 = vld [vmem:[%s8] sm:$0x1]
        %v3200 = vunpack.c.l.b16 %v3167
        %v3201 = vunpack.c.l.b16 %v3168
        %v3202 = vunpack.c.l.b16 %v3169
        %v3203 = vunpack.c.l.b16 %v3170
        %v3204 = vunpack.c.l.b16 %v3171
        %v3205 = vunpack.c.l.b16 %v3172
        %v3206 = vunpack.c.l.b16 %v3173
        %v3207 = vunpack.c.l.b16 %v3174
        %v3208 = vunpack.c.l.b16 %v3175
        %v3209 = vunpack.c.l.b16 %v3176
        %v3210 = vunpack.c.l.b16 %v3177
        %v3211 = vunpack.c.l.b16 %v3178
        %v3212 = vunpack.c.l.b16 %v3179
        %v3213 = vunpack.c.l.b16 %v3180
        %v3214 = vunpack.c.l.b16 %v3181
        %v3215 = vunpack.c.l.b16 %v3182
        %v3216 = vpack.c.b16 %v3201, %v3200
        %v3217 = vpack.c.b16 %v3203, %v3202
        %v3218 = vpack.c.b16 %v3205, %v3204
        %v3219 = vpack.c.b16 %v3207, %v3206
        %v3220 = vpack.c.b16 %v3209, %v3208
        %v3221 = vpack.c.b16 %v3211, %v3210
        %v3222 = vpack.c.b16 %v3213, %v3212
        %v3223 = vpack.c.b16 %v3215, %v3214
        %3232 = vmatprep.subr.bf16.mxu0 0
        %3233 = vmatpush1.bf16.msra.mxu0 %v3223
        %3234 = vmatprep.subr.bf16.mxu0 0
        %3235 = vmatpush1.bf16.msra.mxu0 %v3222
        %3236 = vmatprep.subr.bf16.mxu0 0
        %3237 = vmatpush1.bf16.msra.mxu0 %v3221
        %3238 = vmatprep.subr.bf16.mxu0 0
        %3239 = vmatpush1.bf16.msra.mxu0 %v3220
        %3240 = vmatprep.subr.bf16.mxu0 0
        %3241 = vmatpush1.bf16.msra.mxu0 %v3219
        %3242 = vmatprep.subr.bf16.mxu0 0
        %3243 = vmatpush1.bf16.msra.mxu0 %v3218
        %3244 = vmatprep.subr.bf16.mxu0 0
        %3245 = vmatpush1.bf16.msra.mxu0 %v3217
        %3246 = vmatprep.subr.bf16.mxu0 0
        %3247 = vmatpush1.bf16.msra.mxu0 %v3216
        %3248 = vmatprep.subr.bf16.mxu0 0
        %3249 = vmatpush2.bf16.msra.mxu0 0
        %3250 = vmatprep.subr.bf16.mxu0 0
        %3251 = vmatpush2.bf16.msra.mxu0 0
        %3252 = vmatprep.subr.bf16.mxu0 0
        %3253 = vmatpush2.bf16.msra.mxu0 0
        %3254 = vmatprep.subr.bf16.mxu0 0
        %3255 = vmatpush2.bf16.msra.mxu0 0
        %3256 = vmatprep.subr.bf16.mxu0 0
        %3257 = vmatpush2.bf16.msra.mxu0 0
        %3258 = vmatprep.subr.bf16.mxu0 0
        %3259 = vmatpush2.bf16.msra.mxu0 0
        %3260 = vmatprep.subr.bf16.mxu0 0
        %3261 = vmatpush2.bf16.msra.mxu0 0
        %3262 = vmatprep.subr.bf16.mxu0 0
        %3263 = vmatpush2.bf16.msra.mxu0 0
        %3264 = vmatprep.mubr.bf16.mxu0 0
        %3265 = vmatmul.mubr.bf16.gmra.mxu0 %v3166
        %v3266 = vpop.f32.mrf.mxu0
        %v3267 = vadd.f32 %v3183, %v3266
        %v3268 = vpop.f32.mrf.mxu0
        %v3269 = vpop.f32.mrf.mxu0
        %v3270 = vpop.f32.mrf.mxu0
        %3271 = vdwg.mxu0
        %v3272 = vmax.f32 %v3267, 0.0
        %v3273 = vpack.c.bf16 %v3272, %v3272
        %v3274 = vld [vmem:[%s9] sm:$0xf]
        %v3275 = vld [vmem:[%s9 + $0x4] sm:$0xf]
        %v3276 = vld [vmem:[%s9 + $0x8] sm:$0xf]
        %v3277 = vld [vmem:[%s9 + $0xc] sm:$0xf]
        %v3278 = vld [vmem:[%s9 + $0x10] sm:$0xf]
        %v3279 = vld [vmem:[%s9 + $0x14] sm:$0xf]
        %v3280 = vld [vmem:[%s9 + $0x18] sm:$0xf]
        %v3281 = vld [vmem:[%s9 + $0x1c] sm:$0xf]
        %v3282 = vld [vmem:[%s9 + $0x20] sm:$0xf]
        %v3283 = vld [vmem:[%s9 + $0x24] sm:$0xf]
        %v3284 = vld [vmem:[%s9 + $0x28] sm:$0xf]
        %v3285 = vld [vmem:[%s9 + $0x2c] sm:$0xf]
        %v3286 = vld [vmem:[%s9 + $0x30] sm:$0xf]
        %v3287 = vld [vmem:[%s9 + $0x34] sm:$0xf]
        %v3288 = vld [vmem:[%s9 + $0x38] sm:$0xf]
        %v3289 = vld [vmem:[%s9 + $0x3c] sm:$0xf]
        %v3290 = vld [vmem:[%s10] sm:$0x1]
        %v3307 = vunpack.c.l.b16 %v3274
        %v3308 = vunpack.c.l.b16 %v3275
        %v3309 = vunpack.c.l.b16 %v3276
        %v3310 = vunpack.c.l.b16 %v3277
        %v3311 = vunpack.c.l.b16 %v3278
        %v3312 = vunpack.c.l.b16 %v3279
        %v3313 = vunpack.c.l.b16 %v3280
        %v3314 = vunpack.c.l.b16 %v3281
        %v3315 = vunpack.c.l.b16 %v3282
        %v3316 = vunpack.c.l.b16 %v3283
        %v3317 = vunpack.c.l.b16 %v3284
        %v3318 = vunpack.c.l.b16 %v3285
        %v3319 = vunpack.c.l.b16 %v3286
        %v3320 = vunpack.c.l.b16 %v3287
        %v3321 = vunpack.c.l.b16 %v3288
        %v3322 = vunpack.c.l.b16 %v3289
        %v3323 = vpack.c.b16 %v3308, %v3307
        %v3324 = vpack.c.b16 %v3310, %v3309
        %v3325 = vpack.c.b16 %v3312, %v3311
        %v3326 = vpack.c.b16 %v3314, %v3313
        %v3327 = vpack.c.b16 %v3316, %v3315
        %v3328 = vpack.c.b16 %v3318, %v3317
        %v3329 = vpack.c.b16 %v3320, %v3319
        %v3330 = vpack.c.b16 %v3322, %v3321
        %3339 = vmatprep.subr.bf16.mxu0 0
        %3340 = vmatpush1.bf16.msra.mxu0 %v3330
        %3341 = vmatprep.subr.bf16.mxu0 0
        %3342 = vmatpush1.bf16.msra.mxu0 %v3329
        %3343 = vmatprep.subr.bf16.mxu0 0
        %3344 = vmatpush1.bf16.msra.mxu0 %v3328
        %3345 = vmatprep.subr.bf16.mxu0 0
        %3346 = vmatpush1.bf16.msra.mxu0 %v3327
        %3347 = vmatprep.subr.bf16.mxu0 0
        %3348 = vmatpush1.bf16.msra.mxu0 %v3326
        %3349 = vmatprep.subr.bf16.mxu0 0
        %3350 = vmatpush1.bf16.msra.mxu0 %v3325
        %3351 = vmatprep.subr.bf16.mxu0 0
        %3352 = vmatpush1.bf16.msra.mxu0 %v3324
        %3353 = vmatprep.subr.bf16.mxu0 0
        %3354 = vmatpush1.bf16.msra.mxu0 %v3323
        %3355 = vmatprep.subr.bf16.mxu0 0
        %3356 = vmatpush2.bf16.msra.mxu0 0
        %3357 = vmatprep.subr.bf16.mxu0 0
        %3358 = vmatpush2.bf16.msra.mxu0 0
        %3359 = vmatprep.subr.bf16.mxu0 0
        %3360 = vmatpush2.bf16.msra.mxu0 0
        %3361 = vmatprep.subr.bf16.mxu0 0
        %3362 = vmatpush2.bf16.msra.mxu0 0
        %3363 = vmatprep.subr.bf16.mxu0 0
        %3364 = vmatpush2.bf16.msra.mxu0 0
        %3365 = vmatprep.subr.bf16.mxu0 0
        %3366 = vmatpush2.bf16.msra.mxu0 0
        %3367 = vmatprep.subr.bf16.mxu0 0
        %3368 = vmatpush2.bf16.msra.mxu0 0
        %3369 = vmatprep.subr.bf16.mxu0 0
        %3370 = vmatpush2.bf16.msra.mxu0 0
        %3371 = vmatprep.mubr.bf16.mxu0 0
        %3372 = vmatmul.mubr.bf16.gmra.mxu0 %v3273
        %v3373 = vpop.f32.mrf.mxu0
        %v3374 = vadd.f32 %v3290, %v3373
        %v3375 = vpop.f32.mrf.mxu0
        %v3376 = vpop.f32.mrf.mxu0
        %v3377 = vpop.f32.mrf.mxu0
        %3378 = vdwg.mxu0
        %vm3379 = vcmask 1040384
        %v3380 = vsel %vm3379, %v3374, -inf
        %3381 = vmax.xlane.f32.xlu0 %v3380
        %v3382 = vpop.xlane.xlu0 %3381
        %v3383 = vsub.f32 %v3374, %v3382
        %v3384 = vmul.f32 %v3383, 1.442695
        %v3385 = vpow.pop %v3384
        %v3386 = vsel %vm3379, %v3385, 0.0
        %3387 = vadd.xlane.f32.xlu0 %v3386
        %v3388 = vpop.xlane.xlu0 %3387
        %v3389 = vlog2.pop %v3388
        %v3390 = vmul.f32 %v3389, 0.6931472
        %v3391 = vsub.f32 %v3383, %v3390
        %3392 = vst [vmem:[%s378] sm:$0x1] %v3391
        %s3393 = sand.u32 %s269, 1
        %s3394 = scalar_lea.sflag [#allocation3], %s3393
        %s3395 = sand.u32 %s269, 1
        %s3396 = scalar_lea.vmem [#allocation2], %s3395
        // Predicated region
        $region65: #{forward.1} parent=63 // pred_check
          %p3397 = pneg %p279
        $region66: #{forward.1} parent=63 // pred_check_branch
          %3399 = sbr.rel (%p3397) target = $region68
        $region67: #{forward.1} parent=63 // pred_region
          %s3401 = ssub.s32 16, 16
          %3402 = vsyncadd %s3394, %s3401
          %s3403 = smul.addr %s25, 16
          %s3404 = scalar_lea.hbm %s11, %s3403
          %s3406 = sshll.u32 %s3396, 4
          %s3407 = int_to_ptr.vmem [resolvable:$true] %s3406
          %3409 = dma.vmem_to_hbm [thread:$0]  %s3407, 16, %s3404, %s3394
        $region68: #{forward.1} parent=63 // pred_fallthru
          _
      $region64: #{forward.1} parent=5 // pred_fallthru
        _
      %p3410 = scmp.le.s32.totalorder 2, %s20
      // Predicated region
      $region69: #{forward.1} parent=5 // pred_check
        %p3411 = pneg %p3410
      $region70: #{forward.1} parent=5 // pred_check_branch
        %3413 = sbr.rel (%p3411) target = $region72
      $region71: #{forward.1} parent=5 // pred_region
        %s3414 = ssub.s32 %s20, 2
        // Predicated region
        $region73: #{forward.1} parent=71 // pred_check
          %p3415 = pneg %p285
        $region74: #{forward.1} parent=71 // pred_check_branch
          %3417 = sbr.rel (%p3415) target = $region76
        $region75: #{forward.1} parent=71 // pred_region
          %s3418 = sand.u32 %s270, 1
          %s3419 = scalar_lea.sflag [#allocation3], %s3418
          %s3420 = sand.u32 %s270, 1
          %s3421 = scalar_lea.vmem [#allocation2], %s3420
          %3422 = dma.done %s3419, 16
        $region76: #{forward.1} parent=71 // pred_fallthru
          _
      $region72: #{forward.1} parent=5 // pred_fallthru
        _
    $region6: #{forward.1} parent=1 // loop_footer
      %s24 = sadd.s32 1, %s20
    $region7: #{forward.1} parent=1 // loop_footer_branch
      %19 = sbr.rel target = $region3
    $region8: #{forward.1} parent=1 // loop_exit
      _
    %3423 = vsyncpa [#allocation3], 1
    %s3424 = scalar_lea.sflag [#allocation3], 1
    %3425 = vsyncpa %s3424, 1

</llo_original>
